<compile_context>
chip_gen: v6e
topology: v6e:2x2x1
jax: 0.10.0
libtpu: 0.0.40
codegen_flags: <defaults>
</compile_context>

<pallas_src>
import functools
import math

import jax
import jax.numpy as jnp
from jax.experimental import pallas as pl
from jax.experimental.pallas import tpu as pltpu


# ----------------------------------------------------------------------------
# Tiling helpers
# ----------------------------------------------------------------------------
def _round_up(x, m):
    return (x + m - 1) // m * m


def _pick_tiles(M, K, N):
    """Tile sizes for a bf16-input / f32-accumulate GEMM.

    Sublane granularity 16 (bf16), lane granularity 128.  Tiles are capped so
    double-buffered VMEM stays small on every generation (incl. v7x's 64 MiB).
    """
    tm = min(256, _round_up(M, 16))
    tk = min(512, _round_up(K, 128))
    tn = min(256, _round_up(N, 128))
    Mp = _round_up(M, tm)
    Kp = _round_up(K, tk)
    Np = _round_up(N, tn)
    return tm, tk, tn, Mp, Kp, Np


def _compiler_params():
    return pltpu.CompilerParams(
        dimension_semantics=("parallel", "parallel", "arbitrary"))


# ----------------------------------------------------------------------------
# Kernel 1: tiled GEMM, bias folded into the accumulator init, optional ReLU
# ----------------------------------------------------------------------------
def _gemm_bias_act_kernel(a_ref, b_ref, bias_ref, o_ref, acc_ref, *, relu):
    k = pl.program_id(2)

    @pl.when(k == 0)
    def _init():
        # Initialize the accumulator with the broadcast bias (saves an epilogue add).
        acc_ref[...] = jnp.broadcast_to(bias_ref[...], acc_ref.shape)

    acc_ref[...] += jnp.dot(a_ref[...], b_ref[...],
                            preferred_element_type=jnp.float32)

    @pl.when(k == pl.num_programs(2) - 1)
    def _finalize():
        acc = acc_ref[...]
        if relu:
            acc = jnp.maximum(acc, 0.0)
        o_ref[...] = acc.astype(o_ref.dtype)


def gemm_bias_act(a, b, bias, *, relu=False, out_dtype=jnp.float32):
    """out = act(a @ b + bias).  a:(M,K)  b:(K,N)  bias:(N,)."""
    M, K = a.shape
    K2, N = b.shape
    assert K == K2
    tm, tk, tn, Mp, Kp, Np = _pick_tiles(M, K, N)

    a_p = jnp.pad(a.astype(jnp.bfloat16), ((0, Mp - M), (0, Kp - K)))
    b_p = jnp.pad(b.astype(jnp.bfloat16), ((0, Kp - K), (0, Np - N)))
    bias_p = jnp.pad(bias.astype(jnp.float32).reshape(1, -1),
                     ((0, 0), (0, Np - N)))

    out = pl.pallas_call(
        functools.partial(_gemm_bias_act_kernel, relu=relu),
        out_shape=jax.ShapeDtypeStruct((Mp, Np), out_dtype),
        grid_spec=pltpu.PrefetchScalarGridSpec(
            num_scalar_prefetch=0,
            grid=(Mp // tm, Np // tn, Kp // tk),
            in_specs=[
                pl.BlockSpec((tm, tk), lambda i, j, k: (i, k)),   # A
                pl.BlockSpec((tk, tn), lambda i, j, k: (k, j)),   # B
                pl.BlockSpec((1, tn), lambda i, j, k: (0, j)),    # bias
            ],
            out_specs=pl.BlockSpec((tm, tn), lambda i, j, k: (i, j)),
            scratch_shapes=[pltpu.VMEM((tm, tn), jnp.float32)],
        ),
        compiler_params=_compiler_params(),
    )(a_p, b_p, bias_p)
    return out[:M, :N]


# ----------------------------------------------------------------------------
# Kernel 2: fused gamma/beta GEMMs + BatchNorm apply + SPADE modulation
#   out = (x*scale + shift) * (1 + A@Wg + bg) + (A@Wb + bb)
# ----------------------------------------------------------------------------
def _spade_mod_kernel(a_ref, wg_ref, wb_ref, bg_ref, bb_ref,
                      x_ref, sc_ref, sh_ref, o_ref,
                      accg_ref, accb_ref):
    k = pl.program_id(2)

    @pl.when(k == 0)
    def _init():
        accg_ref[...] = jnp.broadcast_to(bg_ref[...], accg_ref.shape)
        accb_ref[...] = jnp.broadcast_to(bb_ref[...], accb_ref.shape)

    a = a_ref[...]
    accg_ref[...] += jnp.dot(a, wg_ref[...], preferred_element_type=jnp.float32)
    accb_ref[...] += jnp.dot(a, wb_ref[...], preferred_element_type=jnp.float32)

    @pl.when(k == pl.num_programs(2) - 1)
    def _finalize():
        x_norm = x_ref[...] * sc_ref[...] + sh_ref[...]          # BatchNorm apply
        out = x_norm * (1.0 + accg_ref[...]) + accb_ref[...]     # SPADE modulation
        o_ref[...] = out.astype(o_ref.dtype)


def spade_modulated_gemm(a, wg, wb, bg, bb, x2d, scale, shift):
    """a:(M,K) im2col(actv); wg/wb:(K,C); bg/bb:(C,); x2d:(M,C); scale/shift:(C,)."""
    M, K = a.shape
    N = wg.shape[1]
    tm, tk, tn, Mp, Kp, Np = _pick_tiles(M, K, N)

    a_p = jnp.pad(a.astype(jnp.bfloat16), ((0, Mp - M), (0, Kp - K)))
    wg_p = jnp.pad(wg.astype(jnp.bfloat16), ((0, Kp - K), (0, Np - N)))
    wb_p = jnp.pad(wb.astype(jnp.bfloat16), ((0, Kp - K), (0, Np - N)))
    bg_p = jnp.pad(bg.astype(jnp.float32).reshape(1, -1), ((0, 0), (0, Np - N)))
    bb_p = jnp.pad(bb.astype(jnp.float32).reshape(1, -1), ((0, 0), (0, Np - N)))
    x_p = jnp.pad(x2d.astype(jnp.float32), ((0, Mp - M), (0, Np - N)))
    sc_p = jnp.pad(scale.astype(jnp.float32).reshape(1, -1), ((0, 0), (0, Np - N)))
    sh_p = jnp.pad(shift.astype(jnp.float32).reshape(1, -1), ((0, 0), (0, Np - N)))

    out = pl.pallas_call(
        _spade_mod_kernel,
        out_shape=jax.ShapeDtypeStruct((Mp, Np), jnp.float32),
        grid_spec=pltpu.PrefetchScalarGridSpec(
            num_scalar_prefetch=0,
            grid=(Mp // tm, Np // tn, Kp // tk),
            in_specs=[
                pl.BlockSpec((tm, tk), lambda i, j, k: (i, k)),   # A = im2col(actv)
                pl.BlockSpec((tk, tn), lambda i, j, k: (k, j)),   # W_gamma
                pl.BlockSpec((tk, tn), lambda i, j, k: (k, j)),   # W_beta
                pl.BlockSpec((1, tn), lambda i, j, k: (0, j)),    # b_gamma
                pl.BlockSpec((1, tn), lambda i, j, k: (0, j)),    # b_beta
                pl.BlockSpec((tm, tn), lambda i, j, k: (i, j)),   # x (pre-norm)
                pl.BlockSpec((1, tn), lambda i, j, k: (0, j)),    # BN scale
                pl.BlockSpec((1, tn), lambda i, j, k: (0, j)),    # BN shift
            ],
            out_specs=pl.BlockSpec((tm, tn), lambda i, j, k: (i, j)),
            scratch_shapes=[pltpu.VMEM((tm, tn), jnp.float32),
                            pltpu.VMEM((tm, tn), jnp.float32)],
        ),
        compiler_params=_compiler_params(),
    )(a_p, wg_p, wb_p, bg_p, bb_p, x_p, sc_p, sh_p)
    return out[:M, :N]


# ----------------------------------------------------------------------------
# Conv lowering glue (plain JAX): 3x3 / stride 1 / pad 1 im2col, weight reshape
# ----------------------------------------------------------------------------
# TODO(synk): im2col still materializes the 9x-expanded activation matrix in HBM
# (emitted in bf16 to halve the traffic); in-kernel per-tap K-block accumulation
# would remove that entirely for large feature maps.
def _im2col_3x3(x):
    """x: (N,H,W,C) -> (N*H*W, 9*C), column order (kh, kw, c)."""
    N, H, W, C = x.shape
    xp = jnp.pad(x, ((0, 0), (1, 1), (1, 1), (0, 0)))
    cols = []
    for kh in range(3):
        for kw in range(3):
            cols.append(xp[:, kh:kh + H, kw:kw + W, :])
    a = jnp.concatenate(cols, axis=-1)
    return a.reshape(N * H * W, 9 * C)


def _w_to_gemm(w):
    """torch Conv2d weight (Cout, Cin, 3, 3) -> (9*Cin, Cout), rows = (kh, kw, cin)."""
    cout = w.shape[0]
    return jnp.transpose(w, (2, 3, 1, 0)).reshape(-1, cout)


# ----------------------------------------------------------------------------
# SPADE forward
# ----------------------------------------------------------------------------
def spade_forward(params, x_nchw, seg_nchw, eps=1e-5):
    if x_nchw.shape[2:] != seg_nchw.shape[2:]:
        raise ValueError("x and condition_map have different sizes.")

    x = jnp.transpose(x_nchw, (0, 2, 3, 1))      # NCHW -> NHWC
    seg = jnp.transpose(seg_nchw, (0, 2, 3, 1))
    N, H, W, C = x.shape

    # BatchNorm2d(affine=False), training-mode batch statistics.
    # (Tiny per-channel reduction kept in plain JAX; the normalize-APPLY is
    #  fused into the modulation kernel's epilogue.)
    mean = jnp.mean(x, axis=(0, 1, 2))
    var = jnp.mean((x - mean) ** 2, axis=(0, 1, 2))
    scale = 1.0 / jnp.sqrt(var + eps)
    shift = -mean * scale

    # mlp_shared: Conv3x3(label_nc -> nhidden) + ReLU (ReLU fused in epilogue).
    a1 = _im2col_3x3(seg.astype(jnp.bfloat16))
    w1 = _w_to_gemm(params["w_shared"])
    nhidden = w1.shape[1]
    actv = gemm_bias_act(a1, w1, params["b_shared"],
                         relu=True, out_dtype=jnp.bfloat16)
    actv = actv.reshape(N, H, W, nhidden)

    # mlp_gamma / mlp_beta + BatchNorm apply + SPADE modulation, all fused.
    a2 = _im2col_3x3(actv)
    wg = _w_to_gemm(params["w_gamma"])
    wb = _w_to_gemm(params["w_beta"])
    x2d = x.reshape(N * H * W, C).astype(jnp.float32)
    out2d = spade_modulated_gemm(a2, wg, wb,
                                 params["b_gamma"], params["b_beta"],
                                 x2d, scale, shift)
    out = out2d.reshape(N, H, W, C)
    return jnp.transpose(out, (0, 3, 1, 2))      # NHWC -> NCHW


# ----------------------------------------------------------------------------
# Parameter init (torch Conv2d-style kaiming-uniform bounds)
# ----------------------------------------------------------------------------
def init_spade_params(key, input_channel, label_nc):
    nhidden = label_nc * 2
    ks = jax.random.split(key, 6)

    def conv_w(k, cout, cin):
        bound = 1.0 / math.sqrt(cin * 9)
        return jax.random.uniform(k, (cout, cin, 3, 3), jnp.float32, -bound, bound)

    def conv_b(k, cout, fan_in):
        bound = 1.0 / math.sqrt(fan_in)
        return jax.random.uniform(k, (cout,), jnp.float32, -bound, bound)

    return dict(
        w_shared=conv_w(ks[0], nhidden, label_nc),
        b_shared=conv_b(ks[1], nhidden, label_nc * 9),
        w_gamma=conv_w(ks[2], input_channel, nhidden),
        b_gamma=conv_b(ks[3], input_channel, nhidden * 9),
        w_beta=conv_w(ks[4], input_channel, nhidden),
        b_beta=conv_b(ks[5], input_channel, nhidden * 9),
    )


# ----------------------------------------------------------------------------
# Plain-JAX (f32) reference for a sanity check
# ----------------------------------------------------------------------------
def spade_reference(params, x_nchw, seg_nchw, eps=1e-5):
    def conv3x3(x, w, b):
        y = jax.lax.conv_general_dilated(
            x, w, window_strides=(1, 1), padding=((1, 1), (1, 1)),
            dimension_numbers=("NCHW", "OIHW", "NCHW"))
        return y + b.reshape(1, -1, 1, 1)

    mean = jnp.mean(x_nchw, axis=(0, 2, 3), keepdims=True)
    var = jnp.mean((x_nchw - mean) ** 2, axis=(0, 2, 3), keepdims=True)
    normalized = (x_nchw - mean) / jnp.sqrt(var + eps)
    actv = jnp.maximum(conv3x3(seg_nchw, params["w_shared"], params["b_shared"]), 0.0)
    gamma = conv3x3(actv, params["w_gamma"], params["b_gamma"])
    beta = conv3x3(actv, params["w_beta"], params["b_beta"])
    return normalized * (1.0 + gamma) + beta


# ----------------------------------------------------------------------------
if __name__ == "__main__":
    # Small SPADE: input_channel=32 (channels of x), label_nc=16 (condition map).
    input_channel, label_nc = 32, 16
    N, H, W = 2, 16, 16

    key = jax.random.PRNGKey(0)
    pkey, xkey, skey = jax.random.split(key, 3)
    params = init_spade_params(pkey, input_channel, label_nc)
    x = jax.random.normal(xkey, (N, input_channel, H, W), jnp.float32)
    seg = jax.random.normal(skey, (N, label_nc, H, W), jnp.float32)

    fwd = jax.jit(lambda xx, ss: spade_forward(params, xx, ss))
    y = fwd(x, seg)
    jax.block_until_ready(y)

    assert y.shape == (N, input_channel, H, W), y.shape
    assert bool(jnp.all(jnp.isfinite(y)))

    # Loose tolerance: the Pallas path feeds the MXU bf16 (f32 accumulation).
    y_ref = spade_reference(params, x, seg)
    err = float(jnp.max(jnp.abs(y - y_ref)))
    assert err < 0.25, f"max abs err vs f32 reference: {err}"

    print("KERNEL_OK")
</pallas_src>

<mosaic_0001>
module attributes {stable_mosaic.version = 11 : i64} {
  func.func @_gemm_bias_act_kernel(%arg0: i32, %arg1: i32, %arg2: i32, %arg3: memref<256x256xbf16, #tpu.memory_space<vmem>>, %arg4: memref<256x128xbf16, #tpu.memory_space<vmem>>, %arg5: memref<1x128xf32, #tpu.memory_space<vmem>>, %arg6: memref<256x128xbf16, #tpu.memory_space<vmem>>, %arg7: memref<256x128xf32, #tpu.memory_space<vmem>>) attributes {dimension_semantics = [#tpu.dimension_semantics<parallel>, #tpu.dimension_semantics<parallel>, #tpu.dimension_semantics<arbitrary>], iteration_bounds = array<i64: 2, 1, 1>, scalar_prefetch = 0 : i64, scratch_operands = 1 : i64, tpu.core_type = #tpu.core_type<tc>, window_params = [{transform_indices = @transform_0, window_bounds = array<i64: 256, 256>}, {transform_indices = @transform_1, window_bounds = array<i64: 256, 128>}, {transform_indices = @transform_2, window_bounds = array<i64: 1, 128>}, {transform_indices = @transform_3, window_bounds = array<i64: 256, 128>}]} {
    %c0_i32 = arith.constant 0 : i32
    %0 = arith.cmpi eq, %arg2, %c0_i32 : i32
    %1 = arith.extui %0 : i1 to i32
    %c0_i32_0 = arith.constant 0 : i32
    %2 = arith.cmpi ne, %1, %c0_i32_0 : i32
    scf.if %2 {
      %c0_10 = arith.constant 0 : index
      %c0_11 = arith.constant 0 : index
      %12 = vector.load %arg5[%c0_10, %c0_11] : memref<1x128xf32, #tpu.memory_space<vmem>>, vector<1x128xf32>
      %13 = vector.shape_cast %12 : vector<1x128xf32> to vector<1x128xf32>
      %14 = vector.broadcast %13 : vector<1x128xf32> to vector<256x128xf32>
      %c0_12 = arith.constant 0 : index
      %c0_13 = arith.constant 0 : index
      %15 = vector.load %arg7[%c0_12, %c0_13] : memref<256x128xf32, #tpu.memory_space<vmem>>, vector<256x128xf32>
      tpu.vector_store %arg7[%c0_12, %c0_13], %14 {strides = array<i32>} : memref<256x128xf32, #tpu.memory_space<vmem>>, vector<256x128xf32>,
    } else {
    }
    %c0 = arith.constant 0 : index
    %c0_1 = arith.constant 0 : index
    %3 = vector.load %arg7[%c0, %c0_1] : memref<256x128xf32, #tpu.memory_space<vmem>>, vector<256x128xf32>
    %c0_2 = arith.constant 0 : index
    %c0_3 = arith.constant 0 : index
    %4 = vector.load %arg3[%c0_2, %c0_3] : memref<256x256xbf16, #tpu.memory_space<vmem>>, vector<256x256xbf16>
    %c0_4 = arith.constant 0 : index
    %c0_5 = arith.constant 0 : index
    %5 = vector.load %arg4[%c0_4, %c0_5] : memref<256x128xbf16, #tpu.memory_space<vmem>>, vector<256x128xbf16>
    %cst = arith.constant dense<0.000000e+00> : vector<256x128xf32>
    %6 = tpu.matmul %4, %5, %cst {dimension_numbers = #tpu.dot_dimension_numbers<[1], [0], [0], [1], [0, 0, 1, 1], [], []>} : vector<256x256xbf16>, vector<256x128xbf16>, vector<256x128xf32> -> vector<256x128xf32>
    %7 = arith.addf %3, %6 : vector<256x128xf32>
    %c0_6 = arith.constant 0 : index
    %c0_7 = arith.constant 0 : index
    %8 = vector.load %arg7[%c0_6, %c0_7] : memref<256x128xf32, #tpu.memory_space<vmem>>, vector<256x128xf32>
    tpu.vector_store %arg7[%c0_6, %c0_7], %7 {strides = array<i32>} : memref<256x128xf32, #tpu.memory_space<vmem>>, vector<256x128xf32>,
    %c0_i32_8 = arith.constant 0 : i32
    %9 = arith.cmpi eq, %arg2, %c0_i32_8 : i32
    %10 = arith.extui %9 : i1 to i32
    %c0_i32_9 = arith.constant 0 : i32
    %11 = arith.cmpi ne, %10, %c0_i32_9 : i32
    scf.if %11 {
      %c0_10 = arith.constant 0 : index
      %c0_11 = arith.constant 0 : index
      %12 = vector.load %arg7[%c0_10, %c0_11] : memref<256x128xf32, #tpu.memory_space<vmem>>, vector<256x128xf32>
      %cst_12 = arith.constant 0.000000e+00 : f32
      %13 = vector.broadcast %cst_12 : f32 to vector<256x128xf32>
      %14 = arith.maximumf %12, %13 : vector<256x128xf32>
      %15 = arith.truncf %14 : vector<256x128xf32> to vector<256x128xbf16>
      %c0_13 = arith.constant 0 : index
      %c0_14 = arith.constant 0 : index
      %16 = vector.load %arg6[%c0_13, %c0_14] : memref<256x128xbf16, #tpu.memory_space<vmem>>, vector<256x128xbf16>
      tpu.vector_store %arg6[%c0_13, %c0_14], %15 {strides = array<i32>} : memref<256x128xbf16, #tpu.memory_space<vmem>>, vector<256x128xbf16>,
    } else {
    }
    return
  }
  func.func @transform_0(%arg0: i32, %arg1: i32, %arg2: i32) -> (i32, i32) {
    %c0_i32 = arith.constant 0 : i32
    return %arg0, %arg2 : i32, i32
  }
  func.func @transform_1(%arg0: i32, %arg1: i32, %arg2: i32) -> (i32, i32) {
    %c0_i32 = arith.constant 0 : i32
    return %arg2, %arg1 : i32, i32
  }
  func.func @transform_2(%arg0: i32, %arg1: i32, %arg2: i32) -> (i32, i32) {
    %c0_i32 = arith.constant 0 : i32
    %c0_i32_0 = arith.constant 0 : i32
    return %c0_i32, %arg1 : i32, i32
  }
  func.func @transform_3(%arg0: i32, %arg1: i32, %arg2: i32) -> (i32, i32) {
    %c0_i32 = arith.constant 0 : i32
    return %arg0, %arg1 : i32, i32
  }
}

module attributes {stable_mosaic.version = 11 : i64} {
  func.func @_spade_mod_kernel(%arg0: i32, %arg1: i32, %arg2: i32, %arg3: memref<256x384xbf16, #tpu.memory_space<vmem>>, %arg4: memref<384x128xbf16, #tpu.memory_space<vmem>>, %arg5: memref<384x128xbf16, #tpu.memory_space<vmem>>, %arg6: memref<1x128xf32, #tpu.memory_space<vmem>>, %arg7: memref<1x128xf32, #tpu.memory_space<vmem>>, %arg8: memref<256x128xf32, #tpu.memory_space<vmem>>, %arg9: memref<1x128xf32, #tpu.memory_space<vmem>>, %arg10: memref<1x128xf32, #tpu.memory_space<vmem>>, %arg11: memref<256x128xf32, #tpu.memory_space<vmem>>, %arg12: memref<256x128xf32, #tpu.memory_space<vmem>>, %arg13: memref<256x128xf32, #tpu.memory_space<vmem>>) attributes {dimension_semantics = [#tpu.dimension_semantics<parallel>, #tpu.dimension_semantics<parallel>, #tpu.dimension_semantics<arbitrary>], iteration_bounds = array<i64: 2, 1, 1>, scalar_prefetch = 0 : i64, scratch_operands = 2 : i64, tpu.core_type = #tpu.core_type<tc>, window_params = [{transform_indices = @transform_0, window_bounds = array<i64: 256, 384>}, {transform_indices = @transform_1, window_bounds = array<i64: 384, 128>}, {transform_indices = @transform_2, window_bounds = array<i64: 384, 128>}, {transform_indices = @transform_3, window_bounds = array<i64: 1, 128>}, {transform_indices = @transform_4, window_bounds = array<i64: 1, 128>}, {transform_indices = @transform_5, window_bounds = array<i64: 256, 128>}, {transform_indices = @transform_6, window_bounds = array<i64: 1, 128>}, {transform_indices = @transform_7, window_bounds = array<i64: 1, 128>}, {transform_indices = @transform_8, window_bounds = array<i64: 256, 128>}]} {
    %c0_i32 = arith.constant 0 : i32
    %0 = arith.cmpi eq, %arg2, %c0_i32 : i32
    %1 = arith.extui %0 : i1 to i32
    %c0_i32_0 = arith.constant 0 : i32
    %2 = arith.cmpi ne, %1, %c0_i32_0 : i32
    scf.if %2 {
      %c0_17 = arith.constant 0 : index
      %c0_18 = arith.constant 0 : index
      %17 = vector.load %arg6[%c0_17, %c0_18] : memref<1x128xf32, #tpu.memory_space<vmem>>, vector<1x128xf32>
      %18 = vector.shape_cast %17 : vector<1x128xf32> to vector<1x128xf32>
      %19 = vector.broadcast %18 : vector<1x128xf32> to vector<256x128xf32>
      %c0_19 = arith.constant 0 : index
      %c0_20 = arith.constant 0 : index
      %20 = vector.load %arg12[%c0_19, %c0_20] : memref<256x128xf32, #tpu.memory_space<vmem>>, vector<256x128xf32>
      tpu.vector_store %arg12[%c0_19, %c0_20], %19 {strides = array<i32>} : memref<256x128xf32, #tpu.memory_space<vmem>>, vector<256x128xf32>,
      %c0_21 = arith.constant 0 : index
      %c0_22 = arith.constant 0 : index
      %21 = vector.load %arg7[%c0_21, %c0_22] : memref<1x128xf32, #tpu.memory_space<vmem>>, vector<1x128xf32>
      %22 = vector.shape_cast %21 : vector<1x128xf32> to vector<1x128xf32>
      %23 = vector.broadcast %22 : vector<1x128xf32> to vector<256x128xf32>
      %c0_23 = arith.constant 0 : index
      %c0_24 = arith.constant 0 : index
      %24 = vector.load %arg13[%c0_23, %c0_24] : memref<256x128xf32, #tpu.memory_space<vmem>>, vector<256x128xf32>
      tpu.vector_store %arg13[%c0_23, %c0_24], %23 {strides = array<i32>} : memref<256x128xf32, #tpu.memory_space<vmem>>, vector<256x128xf32>,
    } else {
    }
    %c0 = arith.constant 0 : index
    %c0_1 = arith.constant 0 : index
    %3 = vector.load %arg3[%c0, %c0_1] : memref<256x384xbf16, #tpu.memory_space<vmem>>, vector<256x384xbf16>
    %c0_2 = arith.constant 0 : index
    %c0_3 = arith.constant 0 : index
    %4 = vector.load %arg12[%c0_2, %c0_3] : memref<256x128xf32, #tpu.memory_space<vmem>>, vector<256x128xf32>
    %c0_4 = arith.constant 0 : index
    %c0_5 = arith.constant 0 : index
    %5 = vector.load %arg4[%c0_4, %c0_5] : memref<384x128xbf16, #tpu.memory_space<vmem>>, vector<384x128xbf16>
    %cst = arith.constant dense<0.000000e+00> : vector<256x128xf32>
    %6 = tpu.matmul %3, %5, %cst {dimension_numbers = #tpu.dot_dimension_numbers<[1], [0], [0], [1], [0, 0, 1, 1], [], []>} : vector<256x384xbf16>, vector<384x128xbf16>, vector<256x128xf32> -> vector<256x128xf32>
    %7 = arith.addf %4, %6 : vector<256x128xf32>
    %c0_6 = arith.constant 0 : index
    %c0_7 = arith.constant 0 : index
    %8 = vector.load %arg12[%c0_6, %c0_7] : memref<256x128xf32, #tpu.memory_space<vmem>>, vector<256x128xf32>
    tpu.vector_store %arg12[%c0_6, %c0_7], %7 {strides = array<i32>} : memref<256x128xf32, #tpu.memory_space<vmem>>, vector<256x128xf32>,
    %c0_8 = arith.constant 0 : index
    %c0_9 = arith.constant 0 : index
    %9 = vector.load %arg13[%c0_8, %c0_9] : memref<256x128xf32, #tpu.memory_space<vmem>>, vector<256x128xf32>
    %c0_10 = arith.constant 0 : index
    %c0_11 = arith.constant 0 : index
    %10 = vector.load %arg5[%c0_10, %c0_11] : memref<384x128xbf16, #tpu.memory_space<vmem>>, vector<384x128xbf16>
    %cst_12 = arith.constant dense<0.000000e+00> : vector<256x128xf32>
    %11 = tpu.matmul %3, %10, %cst_12 {dimension_numbers = #tpu.dot_dimension_numbers<[1], [0], [0], [1], [0, 0, 1, 1], [], []>} : vector<256x384xbf16>, vector<384x128xbf16>, vector<256x128xf32> -> vector<256x128xf32>
    %12 = arith.addf %9, %11 : vector<256x128xf32>
    %c0_13 = arith.constant 0 : index
    %c0_14 = arith.constant 0 : index
    %13 = vector.load %arg13[%c0_13, %c0_14] : memref<256x128xf32, #tpu.memory_space<vmem>>, vector<256x128xf32>
    tpu.vector_store %arg13[%c0_13, %c0_14], %12 {strides = array<i32>} : memref<256x128xf32, #tpu.memory_space<vmem>>, vector<256x128xf32>,
    %c0_i32_15 = arith.constant 0 : i32
    %14 = arith.cmpi eq, %arg2, %c0_i32_15 : i32
    %15 = arith.extui %14 : i1 to i32
    %c0_i32_16 = arith.constant 0 : i32
    %16 = arith.cmpi ne, %15, %c0_i32_16 : i32
    scf.if %16 {
      %c0_17 = arith.constant 0 : index
      %c0_18 = arith.constant 0 : index
      %17 = vector.load %arg8[%c0_17, %c0_18] : memref<256x128xf32, #tpu.memory_space<vmem>>, vector<256x128xf32>
      %c0_19 = arith.constant 0 : index
      %c0_20 = arith.constant 0 : index
      %18 = vector.load %arg9[%c0_19, %c0_20] : memref<1x128xf32, #tpu.memory_space<vmem>>, vector<1x128xf32>
      %19 = vector.broadcast %18 : vector<1x128xf32> to vector<256x128xf32>
      %20 = arith.mulf %17, %19 : vector<256x128xf32>
      %c0_21 = arith.constant 0 : index
      %c0_22 = arith.constant 0 : index
      %21 = vector.load %arg10[%c0_21, %c0_22] : memref<1x128xf32, #tpu.memory_space<vmem>>, vector<1x128xf32>
      %22 = vector.broadcast %21 : vector<1x128xf32> to vector<256x128xf32>
      %23 = arith.addf %20, %22 : vector<256x128xf32>
      %c0_23 = arith.constant 0 : index
      %c0_24 = arith.constant 0 : index
      %24 = vector.load %arg12[%c0_23, %c0_24] : memref<256x128xf32, #tpu.memory_space<vmem>>, vector<256x128xf32>
      %cst_25 = arith.constant 1.000000e+00 : f32
      %25 = vector.broadcast %cst_25 : f32 to vector<256x128xf32>
      %26 = arith.addf %25, %24 : vector<256x128xf32>
      %27 = arith.mulf %23, %26 : vector<256x128xf32>
      %c0_26 = arith.constant 0 : index
      %c0_27 = arith.constant 0 : index
      %28 = vector.load %arg13[%c0_26, %c0_27] : memref<256x128xf32, #tpu.memory_space<vmem>>, vector<256x128xf32>
      %29 = arith.addf %27, %28 : vector<256x128xf32>
      %c0_28 = arith.constant 0 : index
      %c0_29 = arith.constant 0 : index
      %30 = vector.load %arg11[%c0_28, %c0_29] : memref<256x128xf32, #tpu.memory_space<vmem>>, vector<256x128xf32>
      tpu.vector_store %arg11[%c0_28, %c0_29], %29 {strides = array<i32>} : memref<256x128xf32, #tpu.memory_space<vmem>>, vector<256x128xf32>,
    } else {
    }
    return
  }
  func.func @transform_0(%arg0: i32, %arg1: i32, %arg2: i32) -> (i32, i32) {
    %c0_i32 = arith.constant 0 : i32
    return %arg0, %arg2 : i32, i32
  }
  func.func @transform_1(%arg0: i32, %arg1: i32, %arg2: i32) -> (i32, i32) {
    %c0_i32 = arith.constant 0 : i32
    return %arg2, %arg1 : i32, i32
  }
  func.func @transform_2(%arg0: i32, %arg1: i32, %arg2: i32) -> (i32, i32) {
    %c0_i32 = arith.constant 0 : i32
    return %arg2, %arg1 : i32, i32
  }
  func.func @transform_3(%arg0: i32, %arg1: i32, %arg2: i32) -> (i32, i32) {
    %c0_i32 = arith.constant 0 : i32
    %c0_i32_0 = arith.constant 0 : i32
    return %c0_i32, %arg1 : i32, i32
  }
  func.func @transform_4(%arg0: i32, %arg1: i32, %arg2: i32) -> (i32, i32) {
    %c0_i32 = arith.constant 0 : i32
    %c0_i32_0 = arith.constant 0 : i32
    return %c0_i32, %arg1 : i32, i32
  }
  func.func @transform_5(%arg0: i32, %arg1: i32, %arg2: i32) -> (i32, i32) {
    %c0_i32 = arith.constant 0 : i32
    return %arg0, %arg1 : i32, i32
  }
  func.func @transform_6(%arg0: i32, %arg1: i32, %arg2: i32) -> (i32, i32) {
    %c0_i32 = arith.constant 0 : i32
    %c0_i32_0 = arith.constant 0 : i32
    return %c0_i32, %arg1 : i32, i32
  }
  func.func @transform_7(%arg0: i32, %arg1: i32, %arg2: i32) -> (i32, i32) {
    %c0_i32 = arith.constant 0 : i32
    %c0_i32_0 = arith.constant 0 : i32
    return %c0_i32, %arg1 : i32, i32
  }
  func.func @transform_8(%arg0: i32, %arg1: i32, %arg2: i32) -> (i32, i32) {
    %c0_i32 = arith.constant 0 : i32
    return %arg0, %arg1 : i32, i32
  }
}

</mosaic_0001>

<llo_original>
// kernel: _lambda_.2
$region0: #{_lambda_.2}
  #allocation0 [shape = 'u32[]', space=smem, size = 0x4, offset = 0x4, fixed_abs, tag = 'smem constant byte address 0x4 - core index']
  #allocation1 [shape = 'u32[144,128]{1,0:T(1,128)}', space=vmem, size = 0x12000, scoped, tag = 'internal scratch']
  #allocation2 [shape = 'f32[256,128]{1,0:T(8,128)}', space=vmem, size = 0x20000, scoped, tag = 'scratch operand']
  %s0 = inlined_call_operand.vmem [shape: bf16[512,256], index: 0, kind: input, shape index: {}]
  %s1 = inlined_call_operand.vmem [shape: bf16[256,128], index: 1, kind: input, shape index: {}]
  %s2 = inlined_call_operand.vmem [shape: f32[1,128], index: 2, kind: input, shape index: {}]
  %s3 = inlined_call_operand.vmem [shape: bf16[512,128], index: 3, kind: output, shape index: {}]
  %s4 = sld [smem:[#allocation0]]
  $region53: #{_lambda_.2} parent=0
    _
  %s6 = ssub.s32 1, %s4
  %s7 = scalar_select 0, %s6, %s4
  loop: start=0, step=1, limit=4
  $region2: #{_lambda_.2} parent=0 // loop_pre_header
    _
  $region3: #{_lambda_.2} parent=0 // loop_header
    %s9 = sphi 0, %s13
    %p10 = scmp.ge.s32.totalorder %s9, 4
    %s16 = sphi 0, %s35
    %s17 = sphi 0, %s31
    %s18 = sphi 0, %s27
    %s19 = sphi 0, %s16
    %s20 = sphi 0, %s17
    %s21 = sphi 0, %s18
    %s22 = sphi 0, %s19
    %s23 = sphi 0, %s20
    %s24 = sphi 0, %s21
    %s40 = sphi 0, %s42
    %s43 = sphi 0, %s40
    %s44 = sphi 0, %s43
    %s60 = sphi 0, %s44
    %s68 = sphi 0, %s70
    %s71 = sphi 0, %s68
    %s72 = sphi 0, %s71
    %s88 = sphi 0, %s72
    %s94 = sphi 0, %s96
    %s97 = sphi 0, %s94
    %s98 = sphi 0, %s97
    %s114 = sphi 0, %s98
    %s122 = sphi 0, %s124
    %s125 = sphi 0, %s122
    %s126 = sphi 0, %s125
    %s142 = sphi 0, %s126
  $region4: #{_lambda_.2} parent=0 // loop_header_branch
    %12 = sbr.rel (%p10) target = $region8
  $region5: #{_lambda_.2} parent=0 // loop_body
    %s14 = ssub.s32 %s9, 1
    %s15 = ssub.s32 %s9, 2
    %s25 = sadd.s32 1, %s18
    %p26 = scmp.ge.s32.totalorder %s25, 1
    %s27 = scalar_select %p26, 0, %s25
    %s28 = sadd.s32 1, %s17
    %s29 = scalar_select %p26, %s28, %s17
    %p30 = scmp.ge.s32.totalorder %s29, 1
    %s31 = scalar_select %p30, 0, %s29
    %s32 = sadd.s32 1, %s16
    %s33 = scalar_select %p30, %s32, %s16
    %p34 = scmp.ge.s32.totalorder %s33, 2
    %s35 = scalar_select %p34, 0, %s33
    %s36 = ssub.s32 %s16, %s35
    %s37 = ssub.s32 %s18, %s27
    %s38 = sor.u32 %s36, %s37
    %p39 = scmp.eq.s32.totalorder %s38, 0
    %s41 = sadd.s32 %s40, 1
    %s42 = scalar_select %p39, %s40, %s41
    %p45 = pneg %p39
    %p46 = scmp.eq.s32.totalorder %s9, 1
    %p47 = por %p45, %p46
    %p48 = scmp.ne.s32.totalorder %s40, %s43
    %p49 = scmp.eq.s32.totalorder %s9, 0
    %p50 = por %p48, %p49
    %p51 = scmp.ne.s32.totalorder %s40, %s43
    %p52 = scmp.eq.s32.totalorder %s14, 1
    %p53 = por %p51, %p52
    %p54 = scmp.ne.s32.totalorder %s43, %s44
    %p55 = scmp.eq.s32.totalorder %s14, 0
    %p56 = por %p54, %p55
    %p57 = scmp.ne.s32.totalorder %s43, %s44
    %p58 = scmp.eq.s32.totalorder %s15, 1
    %p59 = por %p57, %p58
    %p61 = scmp.ne.s32.totalorder %s44, %s60
    %p62 = scmp.eq.s32.totalorder %s15, 0
    %p63 = por %p61, %p62
    %s64 = ssub.s32 %s18, %s27
    %s65 = ssub.s32 %s17, %s31
    %s66 = sor.u32 %s64, %s65
    %p67 = scmp.eq.s32.totalorder %s66, 0
    %s69 = sadd.s32 %s68, 1
    %s70 = scalar_select %p67, %s68, %s69
    %p73 = pneg %p67
    %p74 = scmp.eq.s32.totalorder %s9, 1
    %p75 = por %p73, %p74
    %p76 = scmp.ne.s32.totalorder %s68, %s71
    %p77 = scmp.eq.s32.totalorder %s9, 0
    %p78 = por %p76, %p77
    %p79 = scmp.ne.s32.totalorder %s68, %s71
    %p80 = scmp.eq.s32.totalorder %s14, 1
    %p81 = por %p79, %p80
    %p82 = scmp.ne.s32.totalorder %s71, %s72
    %p83 = scmp.eq.s32.totalorder %s14, 0
    %p84 = por %p82, %p83
    %p85 = scmp.ne.s32.totalorder %s71, %s72
    %p86 = scmp.eq.s32.totalorder %s15, 1
    %p87 = por %p85, %p86
    %p89 = scmp.ne.s32.totalorder %s72, %s88
    %p90 = scmp.eq.s32.totalorder %s15, 0
    %p91 = por %p89, %p90
    %s92 = ssub.s32 %s17, %s31
    %p93 = scmp.eq.s32.totalorder %s92, 0
    %s95 = sadd.s32 %s94, 1
    %s96 = scalar_select %p93, %s94, %s95
    %p99 = pneg %p93
    %p100 = scmp.eq.s32.totalorder %s9, 1
    %p101 = por %p99, %p100
    %p102 = scmp.ne.s32.totalorder %s94, %s97
    %p103 = scmp.eq.s32.totalorder %s9, 0
    %p104 = por %p102, %p103
    %p105 = scmp.ne.s32.totalorder %s94, %s97
    %p106 = scmp.eq.s32.totalorder %s14, 1
    %p107 = por %p105, %p106
    %p108 = scmp.ne.s32.totalorder %s97, %s98
    %p109 = scmp.eq.s32.totalorder %s14, 0
    %p110 = por %p108, %p109
    %p111 = scmp.ne.s32.totalorder %s97, %s98
    %p112 = scmp.eq.s32.totalorder %s15, 1
    %p113 = por %p111, %p112
    %p115 = scmp.ne.s32.totalorder %s98, %s114
    %p116 = scmp.eq.s32.totalorder %s15, 0
    %p117 = por %p115, %p116
    %s118 = ssub.s32 %s16, %s35
    %s119 = ssub.s32 %s17, %s31
    %s120 = sor.u32 %s118, %s119
    %p121 = scmp.eq.s32.totalorder %s120, 0
    %s123 = sadd.s32 %s122, 1
    %s124 = scalar_select %p121, %s122, %s123
    %p127 = pneg %p121
    %p128 = scmp.eq.s32.totalorder %s9, 1
    %p129 = por %p127, %p128
    %p130 = scmp.ne.s32.totalorder %s122, %s125
    %p131 = scmp.eq.s32.totalorder %s9, 0
    %p132 = por %p130, %p131
    %p133 = scmp.ne.s32.totalorder %s122, %s125
    %p134 = scmp.eq.s32.totalorder %s14, 1
    %p135 = por %p133, %p134
    %p136 = scmp.ne.s32.totalorder %s125, %s126
    %p137 = scmp.eq.s32.totalorder %s14, 0
    %p138 = por %p136, %p137
    %p139 = scmp.ne.s32.totalorder %s125, %s126
    %p140 = scmp.eq.s32.totalorder %s15, 1
    %p141 = por %p139, %p140
    %p143 = scmp.ne.s32.totalorder %s126, %s142
    %p144 = scmp.eq.s32.totalorder %s15, 0
    %p145 = por %p143, %p144
    %p146 = scmp.le.s32.totalorder 1, %s9
    %p147 = scmp.lt.s32.totalorder %s9, 3
    %p148 = pnand %p146, %p147
    %p149 = pneg %p148
    // Predicated region
    $region9: #{_lambda_.2} parent=5 // pred_check
      _
    $region10: #{_lambda_.2} parent=5 // pred_check_branch
      %151 = sbr.rel (%p148) target = $region12
    $region11: #{_lambda_.2} parent=5 // pred_region
      %s152 = ssub.s32 %s9, 1
      // Predicated region
      $region13: #{_lambda_.2} parent=11 // pred_check
        %p153 = pneg %p84
      $region14: #{_lambda_.2} parent=11 // pred_check_branch
        %155 = sbr.rel (%p153) target = $region16
      $region15: #{_lambda_.2} parent=11 // pred_region
        %s156 = smul.u32 32, %s21
        %p157 = scmp.lt.s32.totalorder %s156, 31
        %s158 = scalar_select %p157, %s156, 31
        %p159 = scmp.lt.s32.totalorder %s20, 0
        %s160 = scalar_select %p159, %s20, 0
        %s161 = sadd.s32 %s160, %s158
        %s162 = smul.addr %s161, 4
        %s163 = scalar_lea.vmem %s1, %s162
        %s164 = smul.u32 32, %s21
      $region16: #{_lambda_.2} parent=11 // pred_fallthru
        _
      // Predicated region
      $region17: #{_lambda_.2} parent=11 // pred_check
        %p165 = pneg %p110
      $region18: #{_lambda_.2} parent=11 // pred_check_branch
        %167 = sbr.rel (%p165) target = $region20
      $region19: #{_lambda_.2} parent=11 // pred_region
        %p168 = scmp.lt.s32.totalorder %s20, 0
        %s169 = scalar_select %p168, %s20, 0
        %s170 = scalar_lea.vmem %s2, %s169
      $region20: #{_lambda_.2} parent=11 // pred_fallthru
        _
    $region12: #{_lambda_.2} parent=5 // pred_fallthru
      _
    %p171 = scmp.lt.s32.totalorder %s9, 2
    // Predicated region
    $region21: #{_lambda_.2} parent=5 // pred_check
      %p172 = pneg %p171
    $region22: #{_lambda_.2} parent=5 // pred_check_branch
      %174 = sbr.rel (%p172) target = $region24
    $region23: #{_lambda_.2} parent=5 // pred_region
      // Predicated region
      $region25: #{_lambda_.2} parent=23 // pred_check
        %p175 = pneg %p50
      $region26: #{_lambda_.2} parent=23 // pred_check_branch
        %177 = sbr.rel (%p175) target = $region28
      $region27: #{_lambda_.2} parent=23 // pred_region
        %s178 = smul.u32 32, %s16
        %s179 = smul.u32 2, %s18
        %p180 = scmp.lt.s32.totalorder %s178, 63
        %s181 = scalar_select %p180, %s178, 63
        %p182 = scmp.lt.s32.totalorder %s179, 1
        %s183 = scalar_select %p182, %s179, 1
        %s184 = smul.addr %s181, 2
        %s185 = sadd.s32 %s183, %s184
        %s186 = smul.addr %s185, 4
        %s187 = scalar_lea.vmem %s0, %s186
        %s188 = smul.u32 32, %s16
        %s189 = smul.u32 2, %s18
      $region28: #{_lambda_.2} parent=23 // pred_fallthru
        _
    $region24: #{_lambda_.2} parent=5 // pred_fallthru
      _
    %p190 = scmp.le.s32.totalorder 1, %s9
    %p191 = scmp.lt.s32.totalorder %s9, 3
    %p192 = pnand %p190, %p191
    %p193 = pneg %p192
    // Predicated region
    $region29: #{_lambda_.2} parent=5 // pred_check
      _
    $region30: #{_lambda_.2} parent=5 // pred_check_branch
      %195 = sbr.rel (%p192) target = $region32
    $region31: #{_lambda_.2} parent=5 // pred_region
      %s196 = ssub.s32 %s9, 1
      %s197 = smul.u32 32, %s19
      %s198 = smul.u32 2, %s21
      %p199 = scmp.lt.s32.totalorder %s197, 63
      %s200 = scalar_select %p199, %s197, 63
      %p201 = scmp.lt.s32.totalorder %s198, 1
      %s202 = scalar_select %p201, %s198, 1
      %s203 = smul.addr %s200, 2
      %s204 = sadd.s32 %s202, %s203
      %s205 = smul.addr %s204, 4
      %s206 = scalar_lea.vmem %s0, %s205
      %p207 = pneg %p56
      %p208 = pneg %p53
      %s209 = smul.u32 32, %s21
      %p210 = scmp.lt.s32.totalorder %s209, 31
      %s211 = scalar_select %p210, %s209, 31
      %p212 = scmp.lt.s32.totalorder %s20, 0
      %s213 = scalar_select %p212, %s20, 0
      %s214 = sadd.s32 %s213, %s211
      %s215 = smul.addr %s214, 4
      %s216 = scalar_lea.vmem %s1, %s215
      %p217 = pneg %p84
      %p218 = pneg %p81
      %p219 = scmp.lt.s32.totalorder %s20, 0
      %s220 = scalar_select %p219, %s20, 0
      %s221 = scalar_lea.vmem %s2, %s220
      %p222 = pneg %p110
      %p223 = pneg %p107
      %p224 = pneg %p138
      %p225 = pneg %p135
      %s226 = smul.u32 32, %s19
      %p227 = scmp.lt.s32.totalorder %s226, 63
      %s228 = scalar_select %p227, %s226, 63
      %p229 = scmp.lt.s32.totalorder %s20, 0
      %s230 = scalar_select %p229, %s20, 0
      %s231 = sadd.s32 %s230, %s228
      %s232 = smul.addr %s231, 4
      %s233 = scalar_lea.vmem %s3, %s232
      %s234 = smul.u32 32, %s19
      %s235 = smul.u32 2, %s21
      %p236 = scmp.lt.s32.totalorder %s234, 63
      %s237 = scalar_select %p236, %s234, 63
      %p238 = scmp.lt.s32.totalorder %s235, 1
      %s239 = scalar_select %p238, %s235, 1
      %s240 = smul.addr %s237, 2
      %s241 = sadd.s32 %s239, %s240
      %s242 = smul.addr %s241, 4
      %s243 = scalar_lea.vmem %s0, %s242
      %s244 = smul.u32 32, %s19
      %s245 = smul.u32 2, %s21
      %s246 = smul.u32 32, %s21
      %p247 = scmp.lt.s32.totalorder %s246, 31
      %s248 = scalar_select %p247, %s246, 31
      %p249 = scmp.lt.s32.totalorder %s20, 0
      %s250 = scalar_select %p249, %s20, 0
      %s251 = sadd.s32 %s250, %s248
      %s252 = smul.addr %s251, 4
      %s253 = scalar_lea.vmem %s1, %s252
      %s254 = smul.u32 32, %s21
      %p255 = scmp.lt.s32.totalorder %s20, 0
      %s256 = scalar_select %p255, %s20, 0
      %s257 = scalar_lea.vmem %s2, %s256
      %s258 = smul.u32 32, %s19
      %p259 = scmp.lt.s32.totalorder %s258, 63
      %s260 = scalar_select %p259, %s258, 63
      %p261 = scmp.lt.s32.totalorder %s20, 0
      %s262 = scalar_select %p261, %s20, 0
      %s263 = sadd.s32 %s262, %s260
      %s264 = smul.addr %s263, 4
      %s265 = scalar_lea.vmem %s3, %s264
      %s266 = smul.u32 32, %s19
      %p268 = scmp.eq.s32.totalorder %s21, 0
      // Predicated region
      $region33: #{_lambda_.2} parent=31 // pred_check
        %p269 = pneg %p268
      $region34: #{_lambda_.2} parent=31 // pred_check_branch
        %271 = sbr.rel (%p269) target = $region36
      $region35: #{_lambda_.2} parent=31 // pred_region
        %v272 = vld [vmem:[%s257] sm:$0x1]
        %v274 = vlaneseq
        %v275 = vshrl.u32 %v274, 7
        %v276 = vsub.s32 0, %v275
        %v277 = vrot.slane %v272, %v276
        %279 = vst [vmem:[#allocation2] sm:$0xff] %v277
        %280 = vst [vmem:[#allocation2 + $0x8] sm:$0xff] %v277
        %281 = vst [vmem:[#allocation2 + $0x10] sm:$0xff] %v277
        %282 = vst [vmem:[#allocation2 + $0x18] sm:$0xff] %v277
        %283 = vst [vmem:[#allocation2 + $0x20] sm:$0xff] %v277
        %284 = vst [vmem:[#allocation2 + $0x28] sm:$0xff] %v277
        %285 = vst [vmem:[#allocation2 + $0x30] sm:$0xff] %v277
        %286 = vst [vmem:[#allocation2 + $0x38] sm:$0xff] %v277
        %287 = vst [vmem:[#allocation2 + $0x40] sm:$0xff] %v277
        %288 = vst [vmem:[#allocation2 + $0x48] sm:$0xff] %v277
        %289 = vst [vmem:[#allocation2 + $0x50] sm:$0xff] %v277
        %290 = vst [vmem:[#allocation2 + $0x58] sm:$0xff] %v277
        %291 = vst [vmem:[#allocation2 + $0x60] sm:$0xff] %v277
        %292 = vst [vmem:[#allocation2 + $0x68] sm:$0xff] %v277
        %293 = vst [vmem:[#allocation2 + $0x70] sm:$0xff] %v277
        %294 = vst [vmem:[#allocation2 + $0x78] sm:$0xff] %v277
        %295 = vst [vmem:[#allocation2 + $0x80] sm:$0xff] %v277
        %296 = vst [vmem:[#allocation2 + $0x88] sm:$0xff] %v277
        %297 = vst [vmem:[#allocation2 + $0x90] sm:$0xff] %v277
        %298 = vst [vmem:[#allocation2 + $0x98] sm:$0xff] %v277
        %299 = vst [vmem:[#allocation2 + $0xa0] sm:$0xff] %v277
        %300 = vst [vmem:[#allocation2 + $0xa8] sm:$0xff] %v277
        %301 = vst [vmem:[#allocation2 + $0xb0] sm:$0xff] %v277
        %302 = vst [vmem:[#allocation2 + $0xb8] sm:$0xff] %v277
        %303 = vst [vmem:[#allocation2 + $0xc0] sm:$0xff] %v277
        %304 = vst [vmem:[#allocation2 + $0xc8] sm:$0xff] %v277
        %305 = vst [vmem:[#allocation2 + $0xd0] sm:$0xff] %v277
        %306 = vst [vmem:[#allocation2 + $0xd8] sm:$0xff] %v277
        %307 = vst [vmem:[#allocation2 + $0xe0] sm:$0xff] %v277
        %308 = vst [vmem:[#allocation2 + $0xe8] sm:$0xff] %v277
        %309 = vst [vmem:[#allocation2 + $0xf0] sm:$0xff] %v277
        %310 = vst [vmem:[#allocation2 + $0xf8] sm:$0xff] %v277
      $region36: #{_lambda_.2} parent=31 // pred_fallthru
        _
      %v311 = vld [vmem:[#allocation2] sm:$0xff]
      %v312 = vld [vmem:[#allocation2 + $0x8] sm:$0xff]
      %v313 = vld [vmem:[#allocation2 + $0x10] sm:$0xff]
      %v314 = vld [vmem:[#allocation2 + $0x18] sm:$0xff]
      %v315 = vld [vmem:[#allocation2 + $0x20] sm:$0xff]
      %v316 = vld [vmem:[#allocation2 + $0x28] sm:$0xff]
      %v317 = vld [vmem:[#allocation2 + $0x30] sm:$0xff]
      %v318 = vld [vmem:[#allocation2 + $0x38] sm:$0xff]
      %v319 = vld [vmem:[#allocation2 + $0x40] sm:$0xff]
      %v320 = vld [vmem:[#allocation2 + $0x48] sm:$0xff]
      %v321 = vld [vmem:[#allocation2 + $0x50] sm:$0xff]
      %v322 = vld [vmem:[#allocation2 + $0x58] sm:$0xff]
      %v323 = vld [vmem:[#allocation2 + $0x60] sm:$0xff]
      %v324 = vld [vmem:[#allocation2 + $0x68] sm:$0xff]
      %v325 = vld [vmem:[#allocation2 + $0x70] sm:$0xff]
      %v326 = vld [vmem:[#allocation2 + $0x78] sm:$0xff]
      %v327 = vld [vmem:[#allocation2 + $0x80] sm:$0xff]
      %v328 = vld [vmem:[#allocation2 + $0x88] sm:$0xff]
      %v329 = vld [vmem:[#allocation2 + $0x90] sm:$0xff]
      %v330 = vld [vmem:[#allocation2 + $0x98] sm:$0xff]
      %v331 = vld [vmem:[#allocation2 + $0xa0] sm:$0xff]
      %v332 = vld [vmem:[#allocation2 + $0xa8] sm:$0xff]
      %v333 = vld [vmem:[#allocation2 + $0xb0] sm:$0xff]
      %v334 = vld [vmem:[#allocation2 + $0xb8] sm:$0xff]
      %v335 = vld [vmem:[#allocation2 + $0xc0] sm:$0xff]
      %v336 = vld [vmem:[#allocation2 + $0xc8] sm:$0xff]
      %v337 = vld [vmem:[#allocation2 + $0xd0] sm:$0xff]
      %v338 = vld [vmem:[#allocation2 + $0xd8] sm:$0xff]
      %v339 = vld [vmem:[#allocation2 + $0xe0] sm:$0xff]
      %v340 = vld [vmem:[#allocation2 + $0xe8] sm:$0xff]
      %v341 = vld [vmem:[#allocation2 + $0xf0] sm:$0xff]
      %v342 = vld [vmem:[#allocation2 + $0xf8] sm:$0xff]
      %v343 = vld [vmem:[%s243] sm:$0xff]
      %v344 = vld [vmem:[%s243 + $0x8] sm:$0xff]
      %v345 = vld [vmem:[%s243 + $0x10] sm:$0xff]
      %v346 = vld [vmem:[%s243 + $0x18] sm:$0xff]
      %v347 = vld [vmem:[%s243 + $0x20] sm:$0xff]
      %v348 = vld [vmem:[%s243 + $0x28] sm:$0xff]
      %v349 = vld [vmem:[%s243 + $0x30] sm:$0xff]
      %v350 = vld [vmem:[%s243 + $0x38] sm:$0xff]
      %v351 = vld [vmem:[%s243 + $0x40] sm:$0xff]
      %v352 = vld [vmem:[%s243 + $0x48] sm:$0xff]
      %v353 = vld [vmem:[%s243 + $0x50] sm:$0xff]
      %v354 = vld [vmem:[%s243 + $0x58] sm:$0xff]
      %v355 = vld [vmem:[%s243 + $0x60] sm:$0xff]
      %v356 = vld [vmem:[%s243 + $0x68] sm:$0xff]
      %v357 = vld [vmem:[%s243 + $0x70] sm:$0xff]
      %v358 = vld [vmem:[%s243 + $0x78] sm:$0xff]
      %v359 = vld [vmem:[%s243 + $0x80] sm:$0xff]
      %v360 = vld [vmem:[%s243 + $0x88] sm:$0xff]
      %v361 = vld [vmem:[%s243 + $0x90] sm:$0xff]
      %v362 = vld [vmem:[%s243 + $0x98] sm:$0xff]
      %v363 = vld [vmem:[%s243 + $0xa0] sm:$0xff]
      %v364 = vld [vmem:[%s243 + $0xa8] sm:$0xff]
      %v365 = vld [vmem:[%s243 + $0xb0] sm:$0xff]
      %v366 = vld [vmem:[%s243 + $0xb8] sm:$0xff]
      %v367 = vld [vmem:[%s243 + $0xc0] sm:$0xff]
      %v368 = vld [vmem:[%s243 + $0xc8] sm:$0xff]
      %v369 = vld [vmem:[%s243 + $0xd0] sm:$0xff]
      %v370 = vld [vmem:[%s243 + $0xd8] sm:$0xff]
      %v371 = vld [vmem:[%s243 + $0xe0] sm:$0xff]
      %v372 = vld [vmem:[%s243 + $0xe8] sm:$0xff]
      %v373 = vld [vmem:[%s243 + $0xf0] sm:$0xff]
      %v374 = vld [vmem:[%s243 + $0xf8] sm:$0xff]
      %v375 = vld [vmem:[%s253] sm:$0xf]
      %v376 = vld [vmem:[%s253 + $0x4] sm:$0xf]
      %v377 = vld [vmem:[%s253 + $0x8] sm:$0xf]
      %v378 = vld [vmem:[%s253 + $0xc] sm:$0xf]
      %v379 = vld [vmem:[%s253 + $0x10] sm:$0xf]
      %v380 = vld [vmem:[%s253 + $0x14] sm:$0xf]
      %v381 = vld [vmem:[%s253 + $0x18] sm:$0xf]
      %v382 = vld [vmem:[%s253 + $0x1c] sm:$0xf]
      %v383 = vld [vmem:[%s253 + $0x20] sm:$0xf]
      %v384 = vld [vmem:[%s253 + $0x24] sm:$0xf]
      %v385 = vld [vmem:[%s253 + $0x28] sm:$0xf]
      %v386 = vld [vmem:[%s253 + $0x2c] sm:$0xf]
      %v387 = vld [vmem:[%s253 + $0x30] sm:$0xf]
      %v388 = vld [vmem:[%s253 + $0x34] sm:$0xf]
      %v389 = vld [vmem:[%s253 + $0x38] sm:$0xf]
      %v390 = vld [vmem:[%s253 + $0x3c] sm:$0xf]
      %v391 = vld [vmem:[%s253 + $0x40] sm:$0xf]
      %v392 = vld [vmem:[%s253 + $0x44] sm:$0xf]
      %v393 = vld [vmem:[%s253 + $0x48] sm:$0xf]
      %v394 = vld [vmem:[%s253 + $0x4c] sm:$0xf]
      %v395 = vld [vmem:[%s253 + $0x50] sm:$0xf]
      %v396 = vld [vmem:[%s253 + $0x54] sm:$0xf]
      %v397 = vld [vmem:[%s253 + $0x58] sm:$0xf]
      %v398 = vld [vmem:[%s253 + $0x5c] sm:$0xf]
      %v399 = vld [vmem:[%s253 + $0x60] sm:$0xf]
      %v400 = vld [vmem:[%s253 + $0x64] sm:$0xf]
      %v401 = vld [vmem:[%s253 + $0x68] sm:$0xf]
      %v402 = vld [vmem:[%s253 + $0x6c] sm:$0xf]
      %v403 = vld [vmem:[%s253 + $0x70] sm:$0xf]
      %v404 = vld [vmem:[%s253 + $0x74] sm:$0xf]
      %v405 = vld [vmem:[%s253 + $0x78] sm:$0xf]
      %v406 = vld [vmem:[%s253 + $0x7c] sm:$0xf]
      %v439 = vunpack.c.l.b16 %v343
      %v440 = vunpack.c.h.b16 %v343
      %v441 = vunpack.c.l.b16 %v344
      %v442 = vunpack.c.h.b16 %v344
      %v443 = vunpack.c.l.b16 %v345
      %v444 = vunpack.c.h.b16 %v345
      %v445 = vunpack.c.l.b16 %v346
      %v446 = vunpack.c.h.b16 %v346
      %v447 = vunpack.c.l.b16 %v347
      %v448 = vunpack.c.h.b16 %v347
      %v449 = vunpack.c.l.b16 %v348
      %v450 = vunpack.c.h.b16 %v348
      %v451 = vunpack.c.l.b16 %v349
      %v452 = vunpack.c.h.b16 %v349
      %v453 = vunpack.c.l.b16 %v350
      %v454 = vunpack.c.h.b16 %v350
      %v455 = vunpack.c.l.b16 %v351
      %v456 = vunpack.c.h.b16 %v351
      %v457 = vunpack.c.l.b16 %v352
      %v458 = vunpack.c.h.b16 %v352
      %v459 = vunpack.c.l.b16 %v353
      %v460 = vunpack.c.h.b16 %v353
      %v461 = vunpack.c.l.b16 %v354
      %v462 = vunpack.c.h.b16 %v354
      %v463 = vunpack.c.l.b16 %v355
      %v464 = vunpack.c.h.b16 %v355
      %v465 = vunpack.c.l.b16 %v356
      %v466 = vunpack.c.h.b16 %v356
      %v467 = vunpack.c.l.b16 %v357
      %v468 = vunpack.c.h.b16 %v357
      %v469 = vunpack.c.l.b16 %v358
      %v470 = vunpack.c.h.b16 %v358
      %v471 = vunpack.c.l.b16 %v359
      %v472 = vunpack.c.h.b16 %v359
      %v473 = vunpack.c.l.b16 %v360
      %v474 = vunpack.c.h.b16 %v360
      %v475 = vunpack.c.l.b16 %v361
      %v476 = vunpack.c.h.b16 %v361
      %v477 = vunpack.c.l.b16 %v362
      %v478 = vunpack.c.h.b16 %v362
      %v479 = vunpack.c.l.b16 %v363
      %v480 = vunpack.c.h.b16 %v363
      %v481 = vunpack.c.l.b16 %v364
      %v482 = vunpack.c.h.b16 %v364
      %v483 = vunpack.c.l.b16 %v365
      %v484 = vunpack.c.h.b16 %v365
      %v485 = vunpack.c.l.b16 %v366
      %v486 = vunpack.c.h.b16 %v366
      %v487 = vunpack.c.l.b16 %v367
      %v488 = vunpack.c.h.b16 %v367
      %v489 = vunpack.c.l.b16 %v368
      %v490 = vunpack.c.h.b16 %v368
      %v491 = vunpack.c.l.b16 %v369
      %v492 = vunpack.c.h.b16 %v369
      %v493 = vunpack.c.l.b16 %v370
      %v494 = vunpack.c.h.b16 %v370
      %v495 = vunpack.c.l.b16 %v371
      %v496 = vunpack.c.h.b16 %v371
      %v497 = vunpack.c.l.b16 %v372
      %v498 = vunpack.c.h.b16 %v372
      %v499 = vunpack.c.l.b16 %v373
      %v500 = vunpack.c.h.b16 %v373
      %v501 = vunpack.c.l.b16 %v374
      %v502 = vunpack.c.h.b16 %v374
      %v503 = vpack.c.b16 %v441, %v439
      %v504 = vpack.c.b16 %v442, %v440
      %v505 = vpack.c.b16 %v445, %v443
      %v506 = vpack.c.b16 %v446, %v444
      %v507 = vpack.c.b16 %v449, %v447
      %v508 = vpack.c.b16 %v450, %v448
      %v509 = vpack.c.b16 %v453, %v451
      %v510 = vpack.c.b16 %v454, %v452
      %v511 = vpack.c.b16 %v457, %v455
      %v512 = vpack.c.b16 %v458, %v456
      %v513 = vpack.c.b16 %v461, %v459
      %v514 = vpack.c.b16 %v462, %v460
      %v515 = vpack.c.b16 %v465, %v463
      %v516 = vpack.c.b16 %v466, %v464
      %v517 = vpack.c.b16 %v469, %v467
      %v518 = vpack.c.b16 %v470, %v468
      %v519 = vpack.c.b16 %v473, %v471
      %v520 = vpack.c.b16 %v474, %v472
      %v521 = vpack.c.b16 %v477, %v475
      %v522 = vpack.c.b16 %v478, %v476
      %v523 = vpack.c.b16 %v481, %v479
      %v524 = vpack.c.b16 %v482, %v480
      %v525 = vpack.c.b16 %v485, %v483
      %v526 = vpack.c.b16 %v486, %v484
      %v527 = vpack.c.b16 %v489, %v487
      %v528 = vpack.c.b16 %v490, %v488
      %v529 = vpack.c.b16 %v493, %v491
      %v530 = vpack.c.b16 %v494, %v492
      %v531 = vpack.c.b16 %v497, %v495
      %v532 = vpack.c.b16 %v498, %v496
      %v533 = vpack.c.b16 %v501, %v499
      %v534 = vpack.c.b16 %v502, %v500
      %v599 = vunpack.c.l.b16 %v375
      %v600 = vunpack.c.l.b16 %v376
      %v601 = vunpack.c.l.b16 %v377
      %v602 = vunpack.c.l.b16 %v378
      %v603 = vunpack.c.l.b16 %v379
      %v604 = vunpack.c.l.b16 %v380
      %v605 = vunpack.c.l.b16 %v381
      %v606 = vunpack.c.l.b16 %v382
      %v607 = vunpack.c.l.b16 %v383
      %v608 = vunpack.c.l.b16 %v384
      %v609 = vunpack.c.l.b16 %v385
      %v610 = vunpack.c.l.b16 %v386
      %v611 = vunpack.c.l.b16 %v387
      %v612 = vunpack.c.l.b16 %v388
      %v613 = vunpack.c.l.b16 %v389
      %v614 = vunpack.c.l.b16 %v390
      %v615 = vunpack.c.l.b16 %v391
      %v616 = vunpack.c.l.b16 %v392
      %v617 = vunpack.c.l.b16 %v393
      %v618 = vunpack.c.l.b16 %v394
      %v619 = vunpack.c.l.b16 %v395
      %v620 = vunpack.c.l.b16 %v396
      %v621 = vunpack.c.l.b16 %v397
      %v622 = vunpack.c.l.b16 %v398
      %v623 = vunpack.c.l.b16 %v399
      %v624 = vunpack.c.l.b16 %v400
      %v625 = vunpack.c.l.b16 %v401
      %v626 = vunpack.c.l.b16 %v402
      %v627 = vunpack.c.l.b16 %v403
      %v628 = vunpack.c.l.b16 %v404
      %v629 = vunpack.c.l.b16 %v405
      %v630 = vunpack.c.l.b16 %v406
      %v631 = vpack.c.b16 %v600, %v599
      %v632 = vpack.c.b16 %v602, %v601
      %v633 = vpack.c.b16 %v604, %v603
      %v634 = vpack.c.b16 %v606, %v605
      %v635 = vpack.c.b16 %v608, %v607
      %v636 = vpack.c.b16 %v610, %v609
      %v637 = vpack.c.b16 %v612, %v611
      %v638 = vpack.c.b16 %v614, %v613
      %v639 = vpack.c.b16 %v616, %v615
      %v640 = vpack.c.b16 %v618, %v617
      %v641 = vpack.c.b16 %v620, %v619
      %v642 = vpack.c.b16 %v622, %v621
      %v643 = vpack.c.b16 %v624, %v623
      %v644 = vpack.c.b16 %v626, %v625
      %v645 = vpack.c.b16 %v628, %v627
      %v646 = vpack.c.b16 %v630, %v629
      %663 = vmatprep.subr.bf16.mxu0 0
      %664 = vmatpush1.bf16.msra.mxu0 %v638
      %665 = vmatprep.subr.bf16.mxu0 0
      %666 = vmatpush1.bf16.msra.mxu0 %v637
      %667 = vmatprep.subr.bf16.mxu0 0
      %668 = vmatpush1.bf16.msra.mxu0 %v636
      %669 = vmatprep.subr.bf16.mxu0 0
      %670 = vmatpush1.bf16.msra.mxu0 %v635
      %671 = vmatprep.subr.bf16.mxu0 0
      %672 = vmatpush1.bf16.msra.mxu0 %v634
      %673 = vmatprep.subr.bf16.mxu0 0
      %674 = vmatpush1.bf16.msra.mxu0 %v633
      %675 = vmatprep.subr.bf16.mxu0 0
      %676 = vmatpush1.bf16.msra.mxu0 %v632
      %677 = vmatprep.subr.bf16.mxu0 0
      %678 = vmatpush1.bf16.msra.mxu0 %v631
      %679 = vmatprep.subr.bf16.mxu0 0
      %680 = vmatpush2.bf16.msra.mxu0 %v646
      %681 = vmatprep.subr.bf16.mxu0 0
      %682 = vmatpush2.bf16.msra.mxu0 %v645
      %683 = vmatprep.subr.bf16.mxu0 0
      %684 = vmatpush2.bf16.msra.mxu0 %v644
      %685 = vmatprep.subr.bf16.mxu0 0
      %686 = vmatpush2.bf16.msra.mxu0 %v643
      %687 = vmatprep.subr.bf16.mxu0 0
      %688 = vmatpush2.bf16.msra.mxu0 %v642
      %689 = vmatprep.subr.bf16.mxu0 0
      %690 = vmatpush2.bf16.msra.mxu0 %v641
      %691 = vmatprep.subr.bf16.mxu0 0
      %692 = vmatpush2.bf16.msra.mxu0 %v640
      %693 = vmatprep.subr.bf16.mxu0 0
      %694 = vmatpush2.bf16.msra.mxu0 %v639
      %695 = vmatprep.mubr.bf16.mxu0 %v504
      %696 = vmatmul.mubr.bf16.gmra.mxu0 %v503
      %v697 = vpop.f32.mrf.mxu0
      %v698 = vadd.f32 0.0, %v697
      %v699 = vpop.f32.mrf.mxu0
      %v700 = vpop.f32.mrf.mxu0
      %v701 = vadd.f32 0.0, %v700
      %v702 = vpop.f32.mrf.mxu0
      %703 = vmatprep.mubr.bf16.mxu0 %v506
      %704 = vmatmul.mubr.bf16.gmra.mxu0 %v505
      %v705 = vpop.f32.mrf.mxu0
      %v706 = vadd.f32 0.0, %v705
      %v707 = vpop.f32.mrf.mxu0
      %v708 = vpop.f32.mrf.mxu0
      %v709 = vadd.f32 0.0, %v708
      %v710 = vpop.f32.mrf.mxu0
      %711 = vmatprep.mubr.bf16.mxu0 %v508
      %712 = vmatmul.mubr.bf16.gmra.mxu0 %v507
      %v713 = vpop.f32.mrf.mxu0
      %v714 = vadd.f32 0.0, %v713
      %v715 = vpop.f32.mrf.mxu0
      %v716 = vpop.f32.mrf.mxu0
      %v717 = vadd.f32 0.0, %v716
      %v718 = vpop.f32.mrf.mxu0
      %719 = vmatprep.mubr.bf16.mxu0 %v510
      %720 = vmatmul.mubr.bf16.gmra.mxu0 %v509
      %v721 = vpop.f32.mrf.mxu0
      %v722 = vadd.f32 0.0, %v721
      %v723 = vpop.f32.mrf.mxu0
      %v724 = vpop.f32.mrf.mxu0
      %v725 = vadd.f32 0.0, %v724
      %v726 = vpop.f32.mrf.mxu0
      %727 = vmatprep.mubr.bf16.mxu0 %v512
      %728 = vmatmul.mubr.bf16.gmra.mxu0 %v511
      %v729 = vpop.f32.mrf.mxu0
      %v730 = vadd.f32 0.0, %v729
      %v731 = vpop.f32.mrf.mxu0
      %v732 = vpop.f32.mrf.mxu0
      %v733 = vadd.f32 0.0, %v732
      %v734 = vpop.f32.mrf.mxu0
      %735 = vmatprep.mubr.bf16.mxu0 %v514
      %736 = vmatmul.mubr.bf16.gmra.mxu0 %v513
      %v737 = vpop.f32.mrf.mxu0
      %v738 = vadd.f32 0.0, %v737
      %v739 = vpop.f32.mrf.mxu0
      %v740 = vpop.f32.mrf.mxu0
      %v741 = vadd.f32 0.0, %v740
      %v742 = vpop.f32.mrf.mxu0
      %743 = vmatprep.mubr.bf16.mxu0 %v516
      %744 = vmatmul.mubr.bf16.gmra.mxu0 %v515
      %v745 = vpop.f32.mrf.mxu0
      %v746 = vadd.f32 0.0, %v745
      %v747 = vpop.f32.mrf.mxu0
      %v748 = vpop.f32.mrf.mxu0
      %v749 = vadd.f32 0.0, %v748
      %v750 = vpop.f32.mrf.mxu0
      %751 = vmatprep.mubr.bf16.mxu0 %v518
      %752 = vmatmul.mubr.bf16.gmra.mxu0 %v517
      %v753 = vpop.f32.mrf.mxu0
      %v754 = vadd.f32 0.0, %v753
      %v755 = vpop.f32.mrf.mxu0
      %v756 = vpop.f32.mrf.mxu0
      %v757 = vadd.f32 0.0, %v756
      %v758 = vpop.f32.mrf.mxu0
      %759 = vmatprep.mubr.bf16.mxu0 %v520
      %760 = vmatmul.mubr.bf16.gmra.mxu0 %v519
      %v761 = vpop.f32.mrf.mxu0
      %v762 = vadd.f32 0.0, %v761
      %v763 = vpop.f32.mrf.mxu0
      %v764 = vpop.f32.mrf.mxu0
      %v765 = vadd.f32 0.0, %v764
      %v766 = vpop.f32.mrf.mxu0
      %767 = vmatprep.mubr.bf16.mxu0 %v522
      %768 = vmatmul.mubr.bf16.gmra.mxu0 %v521
      %v769 = vpop.f32.mrf.mxu0
      %v770 = vadd.f32 0.0, %v769
      %v771 = vpop.f32.mrf.mxu0
      %v772 = vpop.f32.mrf.mxu0
      %v773 = vadd.f32 0.0, %v772
      %v774 = vpop.f32.mrf.mxu0
      %775 = vmatprep.mubr.bf16.mxu0 %v524
      %776 = vmatmul.mubr.bf16.gmra.mxu0 %v523
      %v777 = vpop.f32.mrf.mxu0
      %v778 = vadd.f32 0.0, %v777
      %v779 = vpop.f32.mrf.mxu0
      %v780 = vpop.f32.mrf.mxu0
      %v781 = vadd.f32 0.0, %v780
      %v782 = vpop.f32.mrf.mxu0
      %783 = vmatprep.mubr.bf16.mxu0 %v526
      %784 = vmatmul.mubr.bf16.gmra.mxu0 %v525
      %v785 = vpop.f32.mrf.mxu0
      %v786 = vadd.f32 0.0, %v785
      %v787 = vpop.f32.mrf.mxu0
      %v788 = vpop.f32.mrf.mxu0
      %v789 = vadd.f32 0.0, %v788
      %v790 = vpop.f32.mrf.mxu0
      %791 = vmatprep.mubr.bf16.mxu0 %v528
      %792 = vmatmul.mubr.bf16.gmra.mxu0 %v527
      %v793 = vpop.f32.mrf.mxu0
      %v794 = vadd.f32 0.0, %v793
      %v795 = vpop.f32.mrf.mxu0
      %v796 = vpop.f32.mrf.mxu0
      %v797 = vadd.f32 0.0, %v796
      %v798 = vpop.f32.mrf.mxu0
      %799 = vmatprep.mubr.bf16.mxu0 %v530
      %800 = vmatmul.mubr.bf16.gmra.mxu0 %v529
      %v801 = vpop.f32.mrf.mxu0
      %v802 = vadd.f32 0.0, %v801
      %v803 = vpop.f32.mrf.mxu0
      %v804 = vpop.f32.mrf.mxu0
      %v805 = vadd.f32 0.0, %v804
      %v806 = vpop.f32.mrf.mxu0
      %807 = vmatprep.mubr.bf16.mxu0 %v532
      %808 = vmatmul.mubr.bf16.gmra.mxu0 %v531
      %v809 = vpop.f32.mrf.mxu0
      %v810 = vadd.f32 0.0, %v809
      %v811 = vpop.f32.mrf.mxu0
      %v812 = vpop.f32.mrf.mxu0
      %v813 = vadd.f32 0.0, %v812
      %v814 = vpop.f32.mrf.mxu0
      %815 = vmatprep.mubr.bf16.mxu0 %v534
      %816 = vmatmul.mubr.bf16.gmra.mxu0 %v533
      %v817 = vpop.f32.mrf.mxu0
      %v818 = vadd.f32 0.0, %v817
      %v819 = vpop.f32.mrf.mxu0
      %v820 = vpop.f32.mrf.mxu0
      %v821 = vadd.f32 0.0, %v820
      %v822 = vpop.f32.mrf.mxu0
      %823 = vdwg.mxu0
      %v824 = vadd.f32 %v311, %v698
      %v825 = vadd.f32 %v312, %v701
      %v826 = vadd.f32 %v313, %v706
      %v827 = vadd.f32 %v314, %v709
      %v828 = vadd.f32 %v315, %v714
      %v829 = vadd.f32 %v316, %v717
      %v830 = vadd.f32 %v317, %v722
      %v831 = vadd.f32 %v318, %v725
      %v832 = vadd.f32 %v319, %v730
      %v833 = vadd.f32 %v320, %v733
      %v834 = vadd.f32 %v321, %v738
      %v835 = vadd.f32 %v322, %v741
      %v836 = vadd.f32 %v323, %v746
      %v837 = vadd.f32 %v324, %v749
      %v838 = vadd.f32 %v325, %v754
      %v839 = vadd.f32 %v326, %v757
      %v840 = vadd.f32 %v327, %v762
      %v841 = vadd.f32 %v328, %v765
      %v842 = vadd.f32 %v329, %v770
      %v843 = vadd.f32 %v330, %v773
      %v844 = vadd.f32 %v331, %v778
      %v845 = vadd.f32 %v332, %v781
      %v846 = vadd.f32 %v333, %v786
      %v847 = vadd.f32 %v334, %v789
      %v848 = vadd.f32 %v335, %v794
      %v849 = vadd.f32 %v336, %v797
      %v850 = vadd.f32 %v337, %v802
      %v851 = vadd.f32 %v338, %v805
      %v852 = vadd.f32 %v339, %v810
      %v853 = vadd.f32 %v340, %v813
      %v854 = vadd.f32 %v341, %v818
      %v855 = vadd.f32 %v342, %v821
      %856 = vst [vmem:[#allocation2] sm:$0xff] %v824
      %857 = vst [vmem:[#allocation2 + $0x8] sm:$0xff] %v825
      %858 = vst [vmem:[#allocation2 + $0x10] sm:$0xff] %v826
      %859 = vst [vmem:[#allocation2 + $0x18] sm:$0xff] %v827
      %860 = vst [vmem:[#allocation2 + $0x20] sm:$0xff] %v828
      %861 = vst [vmem:[#allocation2 + $0x28] sm:$0xff] %v829
      %862 = vst [vmem:[#allocation2 + $0x30] sm:$0xff] %v830
      %863 = vst [vmem:[#allocation2 + $0x38] sm:$0xff] %v831
      %864 = vst [vmem:[#allocation2 + $0x40] sm:$0xff] %v832
      %865 = vst [vmem:[#allocation2 + $0x48] sm:$0xff] %v833
      %866 = vst [vmem:[#allocation2 + $0x50] sm:$0xff] %v834
      %867 = vst [vmem:[#allocation2 + $0x58] sm:$0xff] %v835
      %868 = vst [vmem:[#allocation2 + $0x60] sm:$0xff] %v836
      %869 = vst [vmem:[#allocation2 + $0x68] sm:$0xff] %v837
      %870 = vst [vmem:[#allocation2 + $0x70] sm:$0xff] %v838
      %871 = vst [vmem:[#allocation2 + $0x78] sm:$0xff] %v839
      %872 = vst [vmem:[#allocation2 + $0x80] sm:$0xff] %v840
      %873 = vst [vmem:[#allocation2 + $0x88] sm:$0xff] %v841
      %874 = vst [vmem:[#allocation2 + $0x90] sm:$0xff] %v842
      %875 = vst [vmem:[#allocation2 + $0x98] sm:$0xff] %v843
      %876 = vst [vmem:[#allocation2 + $0xa0] sm:$0xff] %v844
      %877 = vst [vmem:[#allocation2 + $0xa8] sm:$0xff] %v845
      %878 = vst [vmem:[#allocation2 + $0xb0] sm:$0xff] %v846
      %879 = vst [vmem:[#allocation2 + $0xb8] sm:$0xff] %v847
      %880 = vst [vmem:[#allocation2 + $0xc0] sm:$0xff] %v848
      %881 = vst [vmem:[#allocation2 + $0xc8] sm:$0xff] %v849
      %882 = vst [vmem:[#allocation2 + $0xd0] sm:$0xff] %v850
      %883 = vst [vmem:[#allocation2 + $0xd8] sm:$0xff] %v851
      %884 = vst [vmem:[#allocation2 + $0xe0] sm:$0xff] %v852
      %885 = vst [vmem:[#allocation2 + $0xe8] sm:$0xff] %v853
      %886 = vst [vmem:[#allocation2 + $0xf0] sm:$0xff] %v854
      %887 = vst [vmem:[#allocation2 + $0xf8] sm:$0xff] %v855
      // Predicated region
      $region37: #{_lambda_.2} parent=31 // pred_check
        %p888 = pneg %p268
      $region38: #{_lambda_.2} parent=31 // pred_check_branch
        %890 = sbr.rel (%p888) target = $region40
      $region39: #{_lambda_.2} parent=31 // pred_region
        %v891 = vld [vmem:[#allocation2] sm:$0xff]
        %v892 = vld [vmem:[#allocation2 + $0x8] sm:$0xff]
        %v893 = vld [vmem:[#allocation2 + $0x10] sm:$0xff]
        %v894 = vld [vmem:[#allocation2 + $0x18] sm:$0xff]
        %v895 = vld [vmem:[#allocation2 + $0x20] sm:$0xff]
        %v896 = vld [vmem:[#allocation2 + $0x28] sm:$0xff]
        %v897 = vld [vmem:[#allocation2 + $0x30] sm:$0xff]
        %v898 = vld [vmem:[#allocation2 + $0x38] sm:$0xff]
        %v899 = vld [vmem:[#allocation2 + $0x40] sm:$0xff]
        %v900 = vld [vmem:[#allocation2 + $0x48] sm:$0xff]
        %v901 = vld [vmem:[#allocation2 + $0x50] sm:$0xff]
        %v902 = vld [vmem:[#allocation2 + $0x58] sm:$0xff]
        %v903 = vld [vmem:[#allocation2 + $0x60] sm:$0xff]
        %v904 = vld [vmem:[#allocation2 + $0x68] sm:$0xff]
        %v905 = vld [vmem:[#allocation2 + $0x70] sm:$0xff]
        %v906 = vld [vmem:[#allocation2 + $0x78] sm:$0xff]
        %v907 = vld [vmem:[#allocation2 + $0x80] sm:$0xff]
        %v908 = vld [vmem:[#allocation2 + $0x88] sm:$0xff]
        %v909 = vld [vmem:[#allocation2 + $0x90] sm:$0xff]
        %v910 = vld [vmem:[#allocation2 + $0x98] sm:$0xff]
        %v911 = vld [vmem:[#allocation2 + $0xa0] sm:$0xff]
        %v912 = vld [vmem:[#allocation2 + $0xa8] sm:$0xff]
        %v913 = vld [vmem:[#allocation2 + $0xb0] sm:$0xff]
        %v914 = vld [vmem:[#allocation2 + $0xb8] sm:$0xff]
        %v915 = vld [vmem:[#allocation2 + $0xc0] sm:$0xff]
        %v916 = vld [vmem:[#allocation2 + $0xc8] sm:$0xff]
        %v917 = vld [vmem:[#allocation2 + $0xd0] sm:$0xff]
        %v918 = vld [vmem:[#allocation2 + $0xd8] sm:$0xff]
        %v919 = vld [vmem:[#allocation2 + $0xe0] sm:$0xff]
        %v920 = vld [vmem:[#allocation2 + $0xe8] sm:$0xff]
        %v921 = vld [vmem:[#allocation2 + $0xf0] sm:$0xff]
        %v922 = vld [vmem:[#allocation2 + $0xf8] sm:$0xff]
        %v923 = vmax.f32 %v891, 0.0
        %v924 = vmax.f32 %v892, 0.0
        %v925 = vmax.f32 %v893, 0.0
        %v926 = vmax.f32 %v894, 0.0
        %v927 = vmax.f32 %v895, 0.0
        %v928 = vmax.f32 %v896, 0.0
        %v929 = vmax.f32 %v897, 0.0
        %v930 = vmax.f32 %v898, 0.0
        %v931 = vmax.f32 %v899, 0.0
        %v932 = vmax.f32 %v900, 0.0
        %v933 = vmax.f32 %v901, 0.0
        %v934 = vmax.f32 %v902, 0.0
        %v935 = vmax.f32 %v903, 0.0
        %v936 = vmax.f32 %v904, 0.0
        %v937 = vmax.f32 %v905, 0.0
        %v938 = vmax.f32 %v906, 0.0
        %v939 = vmax.f32 %v907, 0.0
        %v940 = vmax.f32 %v908, 0.0
        %v941 = vmax.f32 %v909, 0.0
        %v942 = vmax.f32 %v910, 0.0
        %v943 = vmax.f32 %v911, 0.0
        %v944 = vmax.f32 %v912, 0.0
        %v945 = vmax.f32 %v913, 0.0
        %v946 = vmax.f32 %v914, 0.0
        %v947 = vmax.f32 %v915, 0.0
        %v948 = vmax.f32 %v916, 0.0
        %v949 = vmax.f32 %v917, 0.0
        %v950 = vmax.f32 %v918, 0.0
        %v951 = vmax.f32 %v919, 0.0
        %v952 = vmax.f32 %v920, 0.0
        %v953 = vmax.f32 %v921, 0.0
        %v954 = vmax.f32 %v922, 0.0
        %v955 = vpack.c.bf16 %v924, %v923
        %v956 = vpack.c.bf16 %v926, %v925
        %v957 = vpack.c.bf16 %v928, %v927
        %v958 = vpack.c.bf16 %v930, %v929
        %v959 = vpack.c.bf16 %v932, %v931
        %v960 = vpack.c.bf16 %v934, %v933
        %v961 = vpack.c.bf16 %v936, %v935
        %v962 = vpack.c.bf16 %v938, %v937
        %v963 = vpack.c.bf16 %v940, %v939
        %v964 = vpack.c.bf16 %v942, %v941
        %v965 = vpack.c.bf16 %v944, %v943
        %v966 = vpack.c.bf16 %v946, %v945
        %v967 = vpack.c.bf16 %v948, %v947
        %v968 = vpack.c.bf16 %v950, %v949
        %v969 = vpack.c.bf16 %v952, %v951
        %v970 = vpack.c.bf16 %v954, %v953
        %v987 = vunpack.c.l.b16 %v955
        %v988 = vunpack.c.h.b16 %v955
        %v989 = vunpack.c.l.b16 %v956
        %v990 = vunpack.c.h.b16 %v956
        %v991 = vunpack.c.l.b16 %v957
        %v992 = vunpack.c.h.b16 %v957
        %v993 = vunpack.c.l.b16 %v958
        %v994 = vunpack.c.h.b16 %v958
        %v995 = vunpack.c.l.b16 %v959
        %v996 = vunpack.c.h.b16 %v959
        %v997 = vunpack.c.l.b16 %v960
        %v998 = vunpack.c.h.b16 %v960
        %v999 = vunpack.c.l.b16 %v961
        %v1000 = vunpack.c.h.b16 %v961
        %v1001 = vunpack.c.l.b16 %v962
        %v1002 = vunpack.c.h.b16 %v962
        %v1003 = vunpack.c.l.b16 %v963
        %v1004 = vunpack.c.h.b16 %v963
        %v1005 = vunpack.c.l.b16 %v964
        %v1006 = vunpack.c.h.b16 %v964
        %v1007 = vunpack.c.l.b16 %v965
        %v1008 = vunpack.c.h.b16 %v965
        %v1009 = vunpack.c.l.b16 %v966
        %v1010 = vunpack.c.h.b16 %v966
        %v1011 = vunpack.c.l.b16 %v967
        %v1012 = vunpack.c.h.b16 %v967
        %v1013 = vunpack.c.l.b16 %v968
        %v1014 = vunpack.c.h.b16 %v968
        %v1015 = vunpack.c.l.b16 %v969
        %v1016 = vunpack.c.h.b16 %v969
        %v1017 = vunpack.c.l.b16 %v970
        %v1018 = vunpack.c.h.b16 %v970
        %v1019 = vpack.c.b16 %v987, %v987
        %v1020 = vpack.c.b16 %v988, %v988
        %v1021 = vpack.c.b16 %v989, %v989
        %v1022 = vpack.c.b16 %v990, %v990
        %v1023 = vpack.c.b16 %v991, %v991
        %v1024 = vpack.c.b16 %v992, %v992
        %v1025 = vpack.c.b16 %v993, %v993
        %v1026 = vpack.c.b16 %v994, %v994
        %v1027 = vpack.c.b16 %v995, %v995
        %v1028 = vpack.c.b16 %v996, %v996
        %v1029 = vpack.c.b16 %v997, %v997
        %v1030 = vpack.c.b16 %v998, %v998
        %v1031 = vpack.c.b16 %v999, %v999
        %v1032 = vpack.c.b16 %v1000, %v1000
        %v1033 = vpack.c.b16 %v1001, %v1001
        %v1034 = vpack.c.b16 %v1002, %v1002
        %v1035 = vpack.c.b16 %v1003, %v1003
        %v1036 = vpack.c.b16 %v1004, %v1004
        %v1037 = vpack.c.b16 %v1005, %v1005
        %v1038 = vpack.c.b16 %v1006, %v1006
        %v1039 = vpack.c.b16 %v1007, %v1007
        %v1040 = vpack.c.b16 %v1008, %v1008
        %v1041 = vpack.c.b16 %v1009, %v1009
        %v1042 = vpack.c.b16 %v1010, %v1010
        %v1043 = vpack.c.b16 %v1011, %v1011
        %v1044 = vpack.c.b16 %v1012, %v1012
        %v1045 = vpack.c.b16 %v1013, %v1013
        %v1046 = vpack.c.b16 %v1014, %v1014
        %v1047 = vpack.c.b16 %v1015, %v1015
        %v1048 = vpack.c.b16 %v1016, %v1016
        %v1049 = vpack.c.b16 %v1017, %v1017
        %v1050 = vpack.c.b16 %v1018, %v1018
        %1083 = vst [vmem:[%s265] sm:$0xf] %v1019
        %1084 = vst [vmem:[%s265 + $0x4] sm:$0xf] %v1020
        %1085 = vst [vmem:[%s265 + $0x8] sm:$0xf] %v1021
        %1086 = vst [vmem:[%s265 + $0xc] sm:$0xf] %v1022
        %1087 = vst [vmem:[%s265 + $0x10] sm:$0xf] %v1023
        %1088 = vst [vmem:[%s265 + $0x14] sm:$0xf] %v1024
        %1089 = vst [vmem:[%s265 + $0x18] sm:$0xf] %v1025
        %1090 = vst [vmem:[%s265 + $0x1c] sm:$0xf] %v1026
        %1091 = vst [vmem:[%s265 + $0x20] sm:$0xf] %v1027
        %1092 = vst [vmem:[%s265 + $0x24] sm:$0xf] %v1028
        %1093 = vst [vmem:[%s265 + $0x28] sm:$0xf] %v1029
        %1094 = vst [vmem:[%s265 + $0x2c] sm:$0xf] %v1030
        %1095 = vst [vmem:[%s265 + $0x30] sm:$0xf] %v1031
        %1096 = vst [vmem:[%s265 + $0x34] sm:$0xf] %v1032
        %1097 = vst [vmem:[%s265 + $0x38] sm:$0xf] %v1033
        %1098 = vst [vmem:[%s265 + $0x3c] sm:$0xf] %v1034
        %1099 = vst [vmem:[%s265 + $0x40] sm:$0xf] %v1035
        %1100 = vst [vmem:[%s265 + $0x44] sm:$0xf] %v1036
        %1101 = vst [vmem:[%s265 + $0x48] sm:$0xf] %v1037
        %1102 = vst [vmem:[%s265 + $0x4c] sm:$0xf] %v1038
        %1103 = vst [vmem:[%s265 + $0x50] sm:$0xf] %v1039
        %1104 = vst [vmem:[%s265 + $0x54] sm:$0xf] %v1040
        %1105 = vst [vmem:[%s265 + $0x58] sm:$0xf] %v1041
        %1106 = vst [vmem:[%s265 + $0x5c] sm:$0xf] %v1042
        %1107 = vst [vmem:[%s265 + $0x60] sm:$0xf] %v1043
        %1108 = vst [vmem:[%s265 + $0x64] sm:$0xf] %v1044
        %1109 = vst [vmem:[%s265 + $0x68] sm:$0xf] %v1045
        %1110 = vst [vmem:[%s265 + $0x6c] sm:$0xf] %v1046
        %1111 = vst [vmem:[%s265 + $0x70] sm:$0xf] %v1047
        %1112 = vst [vmem:[%s265 + $0x74] sm:$0xf] %v1048
        %1113 = vst [vmem:[%s265 + $0x78] sm:$0xf] %v1049
        %1114 = vst [vmem:[%s265 + $0x7c] sm:$0xf] %v1050
      $region40: #{_lambda_.2} parent=31 // pred_fallthru
        _
      %s1115 = smul.u32 32, %s19
      %p1116 = scmp.lt.s32.totalorder %s1115, 63
      %s1117 = scalar_select %p1116, %s1115, 63
      %p1118 = scmp.lt.s32.totalorder %s20, 0
      %s1119 = scalar_select %p1118, %s20, 0
      %s1120 = sadd.s32 %s1119, %s1117
      %s1121 = smul.addr %s1120, 4
      %s1122 = scalar_lea.vmem %s3, %s1121
      // Predicated region
      $region41: #{_lambda_.2} parent=31 // pred_check
        %p1123 = pneg %p135
      $region42: #{_lambda_.2} parent=31 // pred_check_branch
        %1125 = sbr.rel (%p1123) target = $region44
      $region43: #{_lambda_.2} parent=31 // pred_region
        %s1126 = smul.u32 32, %s19
      $region44: #{_lambda_.2} parent=31 // pred_fallthru
        _
    $region32: #{_lambda_.2} parent=5 // pred_fallthru
      _
    %p1127 = scmp.le.s32.totalorder 2, %s9
    // Predicated region
    $region45: #{_lambda_.2} parent=5 // pred_check
      %p1128 = pneg %p1127
    $region46: #{_lambda_.2} parent=5 // pred_check_branch
      %1130 = sbr.rel (%p1128) target = $region48
    $region47: #{_lambda_.2} parent=5 // pred_region
      %s1131 = ssub.s32 %s9, 2
      // Predicated region
      $region49: #{_lambda_.2} parent=47 // pred_check
        %p1132 = pneg %p141
      $region50: #{_lambda_.2} parent=47 // pred_check_branch
        %1134 = sbr.rel (%p1132) target = $region52
      $region51: #{_lambda_.2} parent=47 // pred_region
        %s1135 = smul.u32 32, %s22
        %p1136 = scmp.lt.s32.totalorder %s1135, 63
        %s1137 = scalar_select %p1136, %s1135, 63
        %p1138 = scmp.lt.s32.totalorder %s23, 0
        %s1139 = scalar_select %p1138, %s23, 0
        %s1140 = sadd.s32 %s1139, %s1137
        %s1141 = smul.addr %s1140, 4
        %s1142 = scalar_lea.vmem %s3, %s1141
      $region52: #{_lambda_.2} parent=47 // pred_fallthru
        _
    $region48: #{_lambda_.2} parent=5 // pred_fallthru
      _
  $region6: #{_lambda_.2} parent=0 // loop_footer
    %s13 = sadd.s32 1, %s9
  $region7: #{_lambda_.2} parent=0 // loop_footer_branch
    %8 = sbr.rel target = $region3
  $region8: #{_lambda_.2} parent=0 // loop_exit
    _

// kernel: _lambda_.3
$region0: #{_lambda_.3}
  #allocation0 [shape = 'u32[]', space=smem, size = 0x4, offset = 0x4, fixed_abs, tag = 'smem constant byte address 0x4 - core index']
  #allocation1 [shape = 'u32[144,128]{1,0:T(1,128)}', space=vmem, size = 0x12000, scoped, tag = 'internal scratch']
  #allocation2 [shape = 'f32[256,128]{1,0:T(8,128)}', space=vmem, size = 0x20000, scoped, tag = 'scratch operand']
  #allocation3 [shape = 'f32[256,128]{1,0:T(8,128)}', space=vmem, size = 0x20000, scoped, tag = 'scratch operand']
  %s0 = inlined_call_operand.vmem [shape: bf16[512,384], index: 0, kind: input, shape index: {}]
  %s1 = inlined_call_operand.vmem [shape: bf16[384,128], index: 1, kind: input, shape index: {}]
  %s2 = inlined_call_operand.vmem [shape: bf16[384,128], index: 2, kind: input, shape index: {}]
  %s3 = inlined_call_operand.vmem [shape: f32[1,128], index: 3, kind: input, shape index: {}]
  %s4 = inlined_call_operand.vmem [shape: f32[1,128], index: 4, kind: input, shape index: {}]
  %s5 = inlined_call_operand.vmem [shape: f32[512,128], index: 5, kind: input, shape index: {}]
  %s6 = inlined_call_operand.vmem [shape: f32[1,128], index: 6, kind: input, shape index: {}]
  %s7 = inlined_call_operand.vmem [shape: f32[1,128], index: 7, kind: input, shape index: {}]
  %s8 = inlined_call_operand.hbm [shape: f32[512,128], index: 8, kind: output, shape index: {}]
  %s9 = sld [smem:[#allocation0]]
  $region73: #{_lambda_.3} parent=0
    _
  %s11 = ssub.s32 1, %s9
  %s12 = scalar_select 0, %s11, %s9
  $region1: #{_lambda_.3} parent=0
    #allocation4 [shape = 'u8[262144]{0}', space=vmem, size = 0x40000, scoped, tag = 'output window, operand 0']
    #allocation5 [shape = 's32[2]{0}', space=sflag, size = 0x8, scoped, tag = 'scoped memory for _lambda_.3']
    %13 = vsyncpa [#allocation5], 0
    %s14 = scalar_lea.sflag [#allocation5], 1
    %15 = vsyncpa %s14, 0
    loop: start=0, step=1, limit=4
    $region2: #{_lambda_.3} parent=1 // loop_pre_header
      _
    $region3: #{_lambda_.3} parent=1 // loop_header
      %s17 = sphi 0, %s21
      %p18 = scmp.ge.s32.totalorder %s17, 4
      %s24 = sphi 0, %s43
      %s25 = sphi 0, %s39
      %s26 = sphi 0, %s35
      %s27 = sphi 0, %s24
      %s28 = sphi 0, %s25
      %s29 = sphi 0, %s26
      %s30 = sphi 0, %s27
      %s31 = sphi 0, %s28
      %s32 = sphi 0, %s29
      %s48 = sphi 0, %s50
      %s51 = sphi 0, %s48
      %s52 = sphi 0, %s51
      %s68 = sphi 0, %s52
      %s76 = sphi 0, %s78
      %s79 = sphi 0, %s76
      %s80 = sphi 0, %s79
      %s96 = sphi 0, %s80
      %s104 = sphi 0, %s106
      %s107 = sphi 0, %s104
      %s108 = sphi 0, %s107
      %s124 = sphi 0, %s108
      %s130 = sphi 0, %s132
      %s133 = sphi 0, %s130
      %s134 = sphi 0, %s133
      %s150 = sphi 0, %s134
      %s156 = sphi 0, %s158
      %s159 = sphi 0, %s156
      %s160 = sphi 0, %s159
      %s176 = sphi 0, %s160
      %s184 = sphi 0, %s186
      %s187 = sphi 0, %s184
      %s188 = sphi 0, %s187
      %s204 = sphi 0, %s188
      %s210 = sphi 0, %s212
      %s213 = sphi 0, %s210
      %s214 = sphi 0, %s213
      %s230 = sphi 0, %s214
      %s236 = sphi 0, %s238
      %s239 = sphi 0, %s236
      %s240 = sphi 0, %s239
      %s256 = sphi 0, %s240
      %s264 = sphi 0, %s266
      %s267 = sphi 0, %s264
      %s268 = sphi 0, %s267
      %s284 = sphi 0, %s268
    $region4: #{_lambda_.3} parent=1 // loop_header_branch
      %20 = sbr.rel (%p18) target = $region8
    $region5: #{_lambda_.3} parent=1 // loop_body
      %s22 = ssub.s32 %s17, 1
      %s23 = ssub.s32 %s17, 2
      %s33 = sadd.s32 1, %s26
      %p34 = scmp.ge.s32.totalorder %s33, 1
      %s35 = scalar_select %p34, 0, %s33
      %s36 = sadd.s32 1, %s25
      %s37 = scalar_select %p34, %s36, %s25
      %p38 = scmp.ge.s32.totalorder %s37, 1
      %s39 = scalar_select %p38, 0, %s37
      %s40 = sadd.s32 1, %s24
      %s41 = scalar_select %p38, %s40, %s24
      %p42 = scmp.ge.s32.totalorder %s41, 2
      %s43 = scalar_select %p42, 0, %s41
      %s44 = ssub.s32 %s24, %s43
      %s45 = ssub.s32 %s26, %s35
      %s46 = sor.u32 %s44, %s45
      %p47 = scmp.eq.s32.totalorder %s46, 0
      %s49 = sadd.s32 %s48, 1
      %s50 = scalar_select %p47, %s48, %s49
      %p53 = pneg %p47
      %p54 = scmp.eq.s32.totalorder %s17, 1
      %p55 = por %p53, %p54
      %p56 = scmp.ne.s32.totalorder %s48, %s51
      %p57 = scmp.eq.s32.totalorder %s17, 0
      %p58 = por %p56, %p57
      %p59 = scmp.ne.s32.totalorder %s48, %s51
      %p60 = scmp.eq.s32.totalorder %s22, 1
      %p61 = por %p59, %p60
      %p62 = scmp.ne.s32.totalorder %s51, %s52
      %p63 = scmp.eq.s32.totalorder %s22, 0
      %p64 = por %p62, %p63
      %p65 = scmp.ne.s32.totalorder %s51, %s52
      %p66 = scmp.eq.s32.totalorder %s23, 1
      %p67 = por %p65, %p66
      %p69 = scmp.ne.s32.totalorder %s52, %s68
      %p70 = scmp.eq.s32.totalorder %s23, 0
      %p71 = por %p69, %p70
      %s72 = ssub.s32 %s26, %s35
      %s73 = ssub.s32 %s25, %s39
      %s74 = sor.u32 %s72, %s73
      %p75 = scmp.eq.s32.totalorder %s74, 0
      %s77 = sadd.s32 %s76, 1
      %s78 = scalar_select %p75, %s76, %s77
      %p81 = pneg %p75
      %p82 = scmp.eq.s32.totalorder %s17, 1
      %p83 = por %p81, %p82
      %p84 = scmp.ne.s32.totalorder %s76, %s79
      %p85 = scmp.eq.s32.totalorder %s17, 0
      %p86 = por %p84, %p85
      %p87 = scmp.ne.s32.totalorder %s76, %s79
      %p88 = scmp.eq.s32.totalorder %s22, 1
      %p89 = por %p87, %p88
      %p90 = scmp.ne.s32.totalorder %s79, %s80
      %p91 = scmp.eq.s32.totalorder %s22, 0
      %p92 = por %p90, %p91
      %p93 = scmp.ne.s32.totalorder %s79, %s80
      %p94 = scmp.eq.s32.totalorder %s23, 1
      %p95 = por %p93, %p94
      %p97 = scmp.ne.s32.totalorder %s80, %s96
      %p98 = scmp.eq.s32.totalorder %s23, 0
      %p99 = por %p97, %p98
      %s100 = ssub.s32 %s26, %s35
      %s101 = ssub.s32 %s25, %s39
      %s102 = sor.u32 %s100, %s101
      %p103 = scmp.eq.s32.totalorder %s102, 0
      %s105 = sadd.s32 %s104, 1
      %s106 = scalar_select %p103, %s104, %s105
      %p109 = pneg %p103
      %p110 = scmp.eq.s32.totalorder %s17, 1
      %p111 = por %p109, %p110
      %p112 = scmp.ne.s32.totalorder %s104, %s107
      %p113 = scmp.eq.s32.totalorder %s17, 0
      %p114 = por %p112, %p113
      %p115 = scmp.ne.s32.totalorder %s104, %s107
      %p116 = scmp.eq.s32.totalorder %s22, 1
      %p117 = por %p115, %p116
      %p118 = scmp.ne.s32.totalorder %s107, %s108
      %p119 = scmp.eq.s32.totalorder %s22, 0
      %p120 = por %p118, %p119
      %p121 = scmp.ne.s32.totalorder %s107, %s108
      %p122 = scmp.eq.s32.totalorder %s23, 1
      %p123 = por %p121, %p122
      %p125 = scmp.ne.s32.totalorder %s108, %s124
      %p126 = scmp.eq.s32.totalorder %s23, 0
      %p127 = por %p125, %p126
      %s128 = ssub.s32 %s25, %s39
      %p129 = scmp.eq.s32.totalorder %s128, 0
      %s131 = sadd.s32 %s130, 1
      %s132 = scalar_select %p129, %s130, %s131
      %p135 = pneg %p129
      %p136 = scmp.eq.s32.totalorder %s17, 1
      %p137 = por %p135, %p136
      %p138 = scmp.ne.s32.totalorder %s130, %s133
      %p139 = scmp.eq.s32.totalorder %s17, 0
      %p140 = por %p138, %p139
      %p141 = scmp.ne.s32.totalorder %s130, %s133
      %p142 = scmp.eq.s32.totalorder %s22, 1
      %p143 = por %p141, %p142
      %p144 = scmp.ne.s32.totalorder %s133, %s134
      %p145 = scmp.eq.s32.totalorder %s22, 0
      %p146 = por %p144, %p145
      %p147 = scmp.ne.s32.totalorder %s133, %s134
      %p148 = scmp.eq.s32.totalorder %s23, 1
      %p149 = por %p147, %p148
      %p151 = scmp.ne.s32.totalorder %s134, %s150
      %p152 = scmp.eq.s32.totalorder %s23, 0
      %p153 = por %p151, %p152
      %s154 = ssub.s32 %s25, %s39
      %p155 = scmp.eq.s32.totalorder %s154, 0
      %s157 = sadd.s32 %s156, 1
      %s158 = scalar_select %p155, %s156, %s157
      %p161 = pneg %p155
      %p162 = scmp.eq.s32.totalorder %s17, 1
      %p163 = por %p161, %p162
      %p164 = scmp.ne.s32.totalorder %s156, %s159
      %p165 = scmp.eq.s32.totalorder %s17, 0
      %p166 = por %p164, %p165
      %p167 = scmp.ne.s32.totalorder %s156, %s159
      %p168 = scmp.eq.s32.totalorder %s22, 1
      %p169 = por %p167, %p168
      %p170 = scmp.ne.s32.totalorder %s159, %s160
      %p171 = scmp.eq.s32.totalorder %s22, 0
      %p172 = por %p170, %p171
      %p173 = scmp.ne.s32.totalorder %s159, %s160
      %p174 = scmp.eq.s32.totalorder %s23, 1
      %p175 = por %p173, %p174
      %p177 = scmp.ne.s32.totalorder %s160, %s176
      %p178 = scmp.eq.s32.totalorder %s23, 0
      %p179 = por %p177, %p178
      %s180 = ssub.s32 %s24, %s43
      %s181 = ssub.s32 %s25, %s39
      %s182 = sor.u32 %s180, %s181
      %p183 = scmp.eq.s32.totalorder %s182, 0
      %s185 = sadd.s32 %s184, 1
      %s186 = scalar_select %p183, %s184, %s185
      %p189 = pneg %p183
      %p190 = scmp.eq.s32.totalorder %s17, 1
      %p191 = por %p189, %p190
      %p192 = scmp.ne.s32.totalorder %s184, %s187
      %p193 = scmp.eq.s32.totalorder %s17, 0
      %p194 = por %p192, %p193
      %p195 = scmp.ne.s32.totalorder %s184, %s187
      %p196 = scmp.eq.s32.totalorder %s22, 1
      %p197 = por %p195, %p196
      %p198 = scmp.ne.s32.totalorder %s187, %s188
      %p199 = scmp.eq.s32.totalorder %s22, 0
      %p200 = por %p198, %p199
      %p201 = scmp.ne.s32.totalorder %s187, %s188
      %p202 = scmp.eq.s32.totalorder %s23, 1
      %p203 = por %p201, %p202
      %p205 = scmp.ne.s32.totalorder %s188, %s204
      %p206 = scmp.eq.s32.totalorder %s23, 0
      %p207 = por %p205, %p206
      %s208 = ssub.s32 %s25, %s39
      %p209 = scmp.eq.s32.totalorder %s208, 0
      %s211 = sadd.s32 %s210, 1
      %s212 = scalar_select %p209, %s210, %s211
      %p215 = pneg %p209
      %p216 = scmp.eq.s32.totalorder %s17, 1
      %p217 = por %p215, %p216
      %p218 = scmp.ne.s32.totalorder %s210, %s213
      %p219 = scmp.eq.s32.totalorder %s17, 0
      %p220 = por %p218, %p219
      %p221 = scmp.ne.s32.totalorder %s210, %s213
      %p222 = scmp.eq.s32.totalorder %s22, 1
      %p223 = por %p221, %p222
      %p224 = scmp.ne.s32.totalorder %s213, %s214
      %p225 = scmp.eq.s32.totalorder %s22, 0
      %p226 = por %p224, %p225
      %p227 = scmp.ne.s32.totalorder %s213, %s214
      %p228 = scmp.eq.s32.totalorder %s23, 1
      %p229 = por %p227, %p228
      %p231 = scmp.ne.s32.totalorder %s214, %s230
      %p232 = scmp.eq.s32.totalorder %s23, 0
      %p233 = por %p231, %p232
      %s234 = ssub.s32 %s25, %s39
      %p235 = scmp.eq.s32.totalorder %s234, 0
      %s237 = sadd.s32 %s236, 1
      %s238 = scalar_select %p235, %s236, %s237
      %p241 = pneg %p235
      %p242 = scmp.eq.s32.totalorder %s17, 1
      %p243 = por %p241, %p242
      %p244 = scmp.ne.s32.totalorder %s236, %s239
      %p245 = scmp.eq.s32.totalorder %s17, 0
      %p246 = por %p244, %p245
      %p247 = scmp.ne.s32.totalorder %s236, %s239
      %p248 = scmp.eq.s32.totalorder %s22, 1
      %p249 = por %p247, %p248
      %p250 = scmp.ne.s32.totalorder %s239, %s240
      %p251 = scmp.eq.s32.totalorder %s22, 0
      %p252 = por %p250, %p251
      %p253 = scmp.ne.s32.totalorder %s239, %s240
      %p254 = scmp.eq.s32.totalorder %s23, 1
      %p255 = por %p253, %p254
      %p257 = scmp.ne.s32.totalorder %s240, %s256
      %p258 = scmp.eq.s32.totalorder %s23, 0
      %p259 = por %p257, %p258
      %s260 = ssub.s32 %s24, %s43
      %s261 = ssub.s32 %s25, %s39
      %s262 = sor.u32 %s260, %s261
      %p263 = scmp.eq.s32.totalorder %s262, 0
      %s265 = sadd.s32 %s264, 1
      %s266 = scalar_select %p263, %s264, %s265
      %p269 = pneg %p263
      %p270 = scmp.eq.s32.totalorder %s17, 1
      %p271 = por %p269, %p270
      %p272 = scmp.ne.s32.totalorder %s264, %s267
      %p273 = scmp.eq.s32.totalorder %s17, 0
      %p274 = por %p272, %p273
      %p275 = scmp.ne.s32.totalorder %s264, %s267
      %p276 = scmp.eq.s32.totalorder %s22, 1
      %p277 = por %p275, %p276
      %p278 = scmp.ne.s32.totalorder %s267, %s268
      %p279 = scmp.eq.s32.totalorder %s22, 0
      %p280 = por %p278, %p279
      %p281 = scmp.ne.s32.totalorder %s267, %s268
      %p282 = scmp.eq.s32.totalorder %s23, 1
      %p283 = por %p281, %p282
      %p285 = scmp.ne.s32.totalorder %s268, %s284
      %p286 = scmp.eq.s32.totalorder %s23, 0
      %p287 = por %p285, %p286
      %p288 = scmp.le.s32.totalorder 1, %s17
      %p289 = scmp.lt.s32.totalorder %s17, 3
      %p290 = pnand %p288, %p289
      %p291 = pneg %p290
      // Predicated region
      $region9: #{_lambda_.3} parent=5 // pred_check
        _
      $region10: #{_lambda_.3} parent=5 // pred_check_branch
        %293 = sbr.rel (%p290) target = $region12
      $region11: #{_lambda_.3} parent=5 // pred_region
        %s294 = ssub.s32 %s17, 1
        // Predicated region
        $region13: #{_lambda_.3} parent=11 // pred_check
          %p295 = pneg %p92
        $region14: #{_lambda_.3} parent=11 // pred_check_branch
          %297 = sbr.rel (%p295) target = $region16
        $region15: #{_lambda_.3} parent=11 // pred_region
          %s298 = smul.u32 48, %s29
          %p299 = scmp.lt.s32.totalorder %s298, 47
          %s300 = scalar_select %p299, %s298, 47
          %p301 = scmp.lt.s32.totalorder %s28, 0
          %s302 = scalar_select %p301, %s28, 0
          %s303 = sadd.s32 %s302, %s300
          %s304 = smul.addr %s303, 4
          %s305 = scalar_lea.vmem %s1, %s304
          %s306 = smul.u32 48, %s29
        $region16: #{_lambda_.3} parent=11 // pred_fallthru
          _
        // Predicated region
        $region17: #{_lambda_.3} parent=11 // pred_check
          %p307 = pneg %p120
        $region18: #{_lambda_.3} parent=11 // pred_check_branch
          %309 = sbr.rel (%p307) target = $region20
        $region19: #{_lambda_.3} parent=11 // pred_region
          %s310 = smul.u32 48, %s29
          %p311 = scmp.lt.s32.totalorder %s310, 47
          %s312 = scalar_select %p311, %s310, 47
          %p313 = scmp.lt.s32.totalorder %s28, 0
          %s314 = scalar_select %p313, %s28, 0
          %s315 = sadd.s32 %s314, %s312
          %s316 = smul.addr %s315, 4
          %s317 = scalar_lea.vmem %s2, %s316
          %s318 = smul.u32 48, %s29
        $region20: #{_lambda_.3} parent=11 // pred_fallthru
          _
        // Predicated region
        $region21: #{_lambda_.3} parent=11 // pred_check
          %p319 = pneg %p146
        $region22: #{_lambda_.3} parent=11 // pred_check_branch
          %321 = sbr.rel (%p319) target = $region24
        $region23: #{_lambda_.3} parent=11 // pred_region
          %p322 = scmp.lt.s32.totalorder %s28, 0
          %s323 = scalar_select %p322, %s28, 0
          %s324 = scalar_lea.vmem %s3, %s323
        $region24: #{_lambda_.3} parent=11 // pred_fallthru
          _
        // Predicated region
        $region25: #{_lambda_.3} parent=11 // pred_check
          %p325 = pneg %p172
        $region26: #{_lambda_.3} parent=11 // pred_check_branch
          %327 = sbr.rel (%p325) target = $region28
        $region27: #{_lambda_.3} parent=11 // pred_region
          %p328 = scmp.lt.s32.totalorder %s28, 0
          %s329 = scalar_select %p328, %s28, 0
          %s330 = scalar_lea.vmem %s4, %s329
        $region28: #{_lambda_.3} parent=11 // pred_fallthru
          _
        // Predicated region
        $region29: #{_lambda_.3} parent=11 // pred_check
          %p331 = pneg %p226
        $region30: #{_lambda_.3} parent=11 // pred_check_branch
          %333 = sbr.rel (%p331) target = $region32
        $region31: #{_lambda_.3} parent=11 // pred_region
          %p334 = scmp.lt.s32.totalorder %s28, 0
          %s335 = scalar_select %p334, %s28, 0
          %s336 = scalar_lea.vmem %s6, %s335
        $region32: #{_lambda_.3} parent=11 // pred_fallthru
          _
        // Predicated region
        $region33: #{_lambda_.3} parent=11 // pred_check
          %p337 = pneg %p252
        $region34: #{_lambda_.3} parent=11 // pred_check_branch
          %339 = sbr.rel (%p337) target = $region36
        $region35: #{_lambda_.3} parent=11 // pred_region
          %p340 = scmp.lt.s32.totalorder %s28, 0
          %s341 = scalar_select %p340, %s28, 0
          %s342 = scalar_lea.vmem %s7, %s341
        $region36: #{_lambda_.3} parent=11 // pred_fallthru
          _
      $region12: #{_lambda_.3} parent=5 // pred_fallthru
        _
      %p343 = scmp.lt.s32.totalorder %s17, 2
      // Predicated region
      $region37: #{_lambda_.3} parent=5 // pred_check
        %p344 = pneg %p343
      $region38: #{_lambda_.3} parent=5 // pred_check_branch
        %346 = sbr.rel (%p344) target = $region40
      $region39: #{_lambda_.3} parent=5 // pred_region
        // Predicated region
        $region41: #{_lambda_.3} parent=39 // pred_check
          %p347 = pneg %p58
        $region42: #{_lambda_.3} parent=39 // pred_check_branch
          %349 = sbr.rel (%p347) target = $region44
        $region43: #{_lambda_.3} parent=39 // pred_region
          %s350 = smul.u32 32, %s24
          %s351 = smul.u32 3, %s26
          %p352 = scmp.lt.s32.totalorder %s350, 63
          %s353 = scalar_select %p352, %s350, 63
          %p354 = scmp.lt.s32.totalorder %s351, 2
          %s355 = scalar_select %p354, %s351, 2
          %s356 = smul.addr %s353, 3
          %s357 = sadd.s32 %s355, %s356
          %s358 = smul.addr %s357, 4
          %s359 = scalar_lea.vmem %s0, %s358
          %s360 = smul.u32 32, %s24
          %s361 = smul.u32 3, %s26
        $region44: #{_lambda_.3} parent=39 // pred_fallthru
          _
        // Predicated region
        $region45: #{_lambda_.3} parent=39 // pred_check
          %p362 = pneg %p194
        $region46: #{_lambda_.3} parent=39 // pred_check_branch
          %364 = sbr.rel (%p362) target = $region48
        $region47: #{_lambda_.3} parent=39 // pred_region
          %s365 = smul.u32 32, %s24
          %p366 = scmp.lt.s32.totalorder %s365, 63
          %s367 = scalar_select %p366, %s365, 63
          %p368 = scmp.lt.s32.totalorder %s25, 0
          %s369 = scalar_select %p368, %s25, 0
          %s370 = sadd.s32 %s369, %s367
          %s371 = smul.addr %s370, 8
          %s372 = scalar_lea.vmem %s5, %s371
          %s373 = smul.u32 32, %s24
        $region48: #{_lambda_.3} parent=39 // pred_fallthru
          _
      $region40: #{_lambda_.3} parent=5 // pred_fallthru
        _
      %p374 = scmp.le.s32.totalorder 1, %s17
      %p375 = scmp.lt.s32.totalorder %s17, 3
      %p376 = pnand %p374, %p375
      %p377 = pneg %p376
      // Predicated region
      $region49: #{_lambda_.3} parent=5 // pred_check
        _
      $region50: #{_lambda_.3} parent=5 // pred_check_branch
        %379 = sbr.rel (%p376) target = $region52
      $region51: #{_lambda_.3} parent=5 // pred_region
        %s380 = ssub.s32 %s17, 1
        %s381 = smul.u32 32, %s27
        %s382 = smul.u32 3, %s29
        %p383 = scmp.lt.s32.totalorder %s381, 63
        %s384 = scalar_select %p383, %s381, 63
        %p385 = scmp.lt.s32.totalorder %s382, 2
        %s386 = scalar_select %p385, %s382, 2
        %s387 = smul.addr %s384, 3
        %s388 = sadd.s32 %s386, %s387
        %s389 = smul.addr %s388, 4
        %s390 = scalar_lea.vmem %s0, %s389
        %p391 = pneg %p64
        %p392 = pneg %p61
        %s393 = smul.u32 48, %s29
        %p394 = scmp.lt.s32.totalorder %s393, 47
        %s395 = scalar_select %p394, %s393, 47
        %p396 = scmp.lt.s32.totalorder %s28, 0
        %s397 = scalar_select %p396, %s28, 0
        %s398 = sadd.s32 %s397, %s395
        %s399 = smul.addr %s398, 4
        %s400 = scalar_lea.vmem %s1, %s399
        %p401 = pneg %p92
        %p402 = pneg %p89
        %s403 = smul.u32 48, %s29
        %p404 = scmp.lt.s32.totalorder %s403, 47
        %s405 = scalar_select %p404, %s403, 47
        %p406 = scmp.lt.s32.totalorder %s28, 0
        %s407 = scalar_select %p406, %s28, 0
        %s408 = sadd.s32 %s407, %s405
        %s409 = smul.addr %s408, 4
        %s410 = scalar_lea.vmem %s2, %s409
        %p411 = pneg %p120
        %p412 = pneg %p117
        %p413 = scmp.lt.s32.totalorder %s28, 0
        %s414 = scalar_select %p413, %s28, 0
        %s415 = scalar_lea.vmem %s3, %s414
        %p416 = pneg %p146
        %p417 = pneg %p143
        %p418 = scmp.lt.s32.totalorder %s28, 0
        %s419 = scalar_select %p418, %s28, 0
        %s420 = scalar_lea.vmem %s4, %s419
        %p421 = pneg %p172
        %p422 = pneg %p169
        %s423 = smul.u32 32, %s27
        %p424 = scmp.lt.s32.totalorder %s423, 63
        %s425 = scalar_select %p424, %s423, 63
        %p426 = scmp.lt.s32.totalorder %s28, 0
        %s427 = scalar_select %p426, %s28, 0
        %s428 = sadd.s32 %s427, %s425
        %s429 = smul.addr %s428, 8
        %s430 = scalar_lea.vmem %s5, %s429
        %p431 = pneg %p200
        %p432 = pneg %p197
        %p433 = scmp.lt.s32.totalorder %s28, 0
        %s434 = scalar_select %p433, %s28, 0
        %s435 = scalar_lea.vmem %s6, %s434
        %p436 = pneg %p226
        %p437 = pneg %p223
        %p438 = scmp.lt.s32.totalorder %s28, 0
        %s439 = scalar_select %p438, %s28, 0
        %s440 = scalar_lea.vmem %s7, %s439
        %p441 = pneg %p252
        %p442 = pneg %p249
        %p443 = pneg %p280
        %p444 = pneg %p277
        %s445 = sand.u32 %s267, 1
        %s446 = scalar_lea.sflag [#allocation5], %s445
        %s447 = sand.u32 %s267, 1
        %s448 = smul.addr %s447, 256
        %s449 = scalar_lea.vmem [#allocation4], %s448
        %s450 = smul.u32 32, %s27
        %s451 = smul.u32 3, %s29
        %p452 = scmp.lt.s32.totalorder %s450, 63
        %s453 = scalar_select %p452, %s450, 63
        %p454 = scmp.lt.s32.totalorder %s451, 2
        %s455 = scalar_select %p454, %s451, 2
        %s456 = smul.addr %s453, 3
        %s457 = sadd.s32 %s455, %s456
        %s458 = smul.addr %s457, 4
        %s459 = scalar_lea.vmem %s0, %s458
        %s460 = smul.u32 32, %s27
        %s461 = smul.u32 3, %s29
        %s462 = smul.u32 48, %s29
        %p463 = scmp.lt.s32.totalorder %s462, 47
        %s464 = scalar_select %p463, %s462, 47
        %p465 = scmp.lt.s32.totalorder %s28, 0
        %s466 = scalar_select %p465, %s28, 0
        %s467 = sadd.s32 %s466, %s464
        %s468 = smul.addr %s467, 4
        %s469 = scalar_lea.vmem %s1, %s468
        %s470 = smul.u32 48, %s29
        %s471 = smul.u32 48, %s29
        %p472 = scmp.lt.s32.totalorder %s471, 47
        %s473 = scalar_select %p472, %s471, 47
        %p474 = scmp.lt.s32.totalorder %s28, 0
        %s475 = scalar_select %p474, %s28, 0
        %s476 = sadd.s32 %s475, %s473
        %s477 = smul.addr %s476, 4
        %s478 = scalar_lea.vmem %s2, %s477
        %s479 = smul.u32 48, %s29
        %p480 = scmp.lt.s32.totalorder %s28, 0
        %s481 = scalar_select %p480, %s28, 0
        %s482 = scalar_lea.vmem %s3, %s481
        %p483 = scmp.lt.s32.totalorder %s28, 0
        %s484 = scalar_select %p483, %s28, 0
        %s485 = scalar_lea.vmem %s4, %s484
        %s486 = smul.u32 32, %s27
        %p487 = scmp.lt.s32.totalorder %s486, 63
        %s488 = scalar_select %p487, %s486, 63
        %p489 = scmp.lt.s32.totalorder %s28, 0
        %s490 = scalar_select %p489, %s28, 0
        %s491 = sadd.s32 %s490, %s488
        %s492 = smul.addr %s491, 8
        %s493 = scalar_lea.vmem %s5, %s492
        %s494 = smul.u32 32, %s27
        %p495 = scmp.lt.s32.totalorder %s28, 0
        %s496 = scalar_select %p495, %s28, 0
        %s497 = scalar_lea.vmem %s6, %s496
        %p498 = scmp.lt.s32.totalorder %s28, 0
        %s499 = scalar_select %p498, %s28, 0
        %s500 = scalar_lea.vmem %s7, %s499
        %s501 = smul.u32 32, %s27
        %p503 = scmp.eq.s32.totalorder %s29, 0
        // Predicated region
        $region53: #{_lambda_.3} parent=51 // pred_check
          %p504 = pneg %p503
        $region54: #{_lambda_.3} parent=51 // pred_check_branch
          %506 = sbr.rel (%p504) target = $region56
        $region55: #{_lambda_.3} parent=51 // pred_region
          %v507 = vld [vmem:[%s482] sm:$0x1]
          %v509 = vlaneseq
          %v510 = vshrl.u32 %v509, 7
          %v511 = vsub.s32 0, %v510
          %v512 = vrot.slane %v507, %v511
          %514 = vst [vmem:[#allocation2] sm:$0xff] %v512
          %515 = vst [vmem:[#allocation2 + $0x8] sm:$0xff] %v512
          %516 = vst [vmem:[#allocation2 + $0x10] sm:$0xff] %v512
          %517 = vst [vmem:[#allocation2 + $0x18] sm:$0xff] %v512
          %518 = vst [vmem:[#allocation2 + $0x20] sm:$0xff] %v512
          %519 = vst [vmem:[#allocation2 + $0x28] sm:$0xff] %v512
          %520 = vst [vmem:[#allocation2 + $0x30] sm:$0xff] %v512
          %521 = vst [vmem:[#allocation2 + $0x38] sm:$0xff] %v512
          %522 = vst [vmem:[#allocation2 + $0x40] sm:$0xff] %v512
          %523 = vst [vmem:[#allocation2 + $0x48] sm:$0xff] %v512
          %524 = vst [vmem:[#allocation2 + $0x50] sm:$0xff] %v512
          %525 = vst [vmem:[#allocation2 + $0x58] sm:$0xff] %v512
          %526 = vst [vmem:[#allocation2 + $0x60] sm:$0xff] %v512
          %527 = vst [vmem:[#allocation2 + $0x68] sm:$0xff] %v512
          %528 = vst [vmem:[#allocation2 + $0x70] sm:$0xff] %v512
          %529 = vst [vmem:[#allocation2 + $0x78] sm:$0xff] %v512
          %530 = vst [vmem:[#allocation2 + $0x80] sm:$0xff] %v512
          %531 = vst [vmem:[#allocation2 + $0x88] sm:$0xff] %v512
          %532 = vst [vmem:[#allocation2 + $0x90] sm:$0xff] %v512
          %533 = vst [vmem:[#allocation2 + $0x98] sm:$0xff] %v512
          %534 = vst [vmem:[#allocation2 + $0xa0] sm:$0xff] %v512
          %535 = vst [vmem:[#allocation2 + $0xa8] sm:$0xff] %v512
          %536 = vst [vmem:[#allocation2 + $0xb0] sm:$0xff] %v512
          %537 = vst [vmem:[#allocation2 + $0xb8] sm:$0xff] %v512
          %538 = vst [vmem:[#allocation2 + $0xc0] sm:$0xff] %v512
          %539 = vst [vmem:[#allocation2 + $0xc8] sm:$0xff] %v512
          %540 = vst [vmem:[#allocation2 + $0xd0] sm:$0xff] %v512
          %541 = vst [vmem:[#allocation2 + $0xd8] sm:$0xff] %v512
          %542 = vst [vmem:[#allocation2 + $0xe0] sm:$0xff] %v512
          %543 = vst [vmem:[#allocation2 + $0xe8] sm:$0xff] %v512
          %544 = vst [vmem:[#allocation2 + $0xf0] sm:$0xff] %v512
          %545 = vst [vmem:[#allocation2 + $0xf8] sm:$0xff] %v512
          %v546 = vld [vmem:[%s485] sm:$0x1]
          %v548 = vlaneseq
          %v549 = vshrl.u32 %v548, 7
          %v550 = vsub.s32 0, %v549
          %v551 = vrot.slane %v546, %v550
          %553 = vst [vmem:[#allocation3] sm:$0xff] %v551
          %554 = vst [vmem:[#allocation3 + $0x8] sm:$0xff] %v551
          %555 = vst [vmem:[#allocation3 + $0x10] sm:$0xff] %v551
          %556 = vst [vmem:[#allocation3 + $0x18] sm:$0xff] %v551
          %557 = vst [vmem:[#allocation3 + $0x20] sm:$0xff] %v551
          %558 = vst [vmem:[#allocation3 + $0x28] sm:$0xff] %v551
          %559 = vst [vmem:[#allocation3 + $0x30] sm:$0xff] %v551
          %560 = vst [vmem:[#allocation3 + $0x38] sm:$0xff] %v551
          %561 = vst [vmem:[#allocation3 + $0x40] sm:$0xff] %v551
          %562 = vst [vmem:[#allocation3 + $0x48] sm:$0xff] %v551
          %563 = vst [vmem:[#allocation3 + $0x50] sm:$0xff] %v551
          %564 = vst [vmem:[#allocation3 + $0x58] sm:$0xff] %v551
          %565 = vst [vmem:[#allocation3 + $0x60] sm:$0xff] %v551
          %566 = vst [vmem:[#allocation3 + $0x68] sm:$0xff] %v551
          %567 = vst [vmem:[#allocation3 + $0x70] sm:$0xff] %v551
          %568 = vst [vmem:[#allocation3 + $0x78] sm:$0xff] %v551
          %569 = vst [vmem:[#allocation3 + $0x80] sm:$0xff] %v551
          %570 = vst [vmem:[#allocation3 + $0x88] sm:$0xff] %v551
          %571 = vst [vmem:[#allocation3 + $0x90] sm:$0xff] %v551
          %572 = vst [vmem:[#allocation3 + $0x98] sm:$0xff] %v551
          %573 = vst [vmem:[#allocation3 + $0xa0] sm:$0xff] %v551
          %574 = vst [vmem:[#allocation3 + $0xa8] sm:$0xff] %v551
          %575 = vst [vmem:[#allocation3 + $0xb0] sm:$0xff] %v551
          %576 = vst [vmem:[#allocation3 + $0xb8] sm:$0xff] %v551
          %577 = vst [vmem:[#allocation3 + $0xc0] sm:$0xff] %v551
          %578 = vst [vmem:[#allocation3 + $0xc8] sm:$0xff] %v551
          %579 = vst [vmem:[#allocation3 + $0xd0] sm:$0xff] %v551
          %580 = vst [vmem:[#allocation3 + $0xd8] sm:$0xff] %v551
          %581 = vst [vmem:[#allocation3 + $0xe0] sm:$0xff] %v551
          %582 = vst [vmem:[#allocation3 + $0xe8] sm:$0xff] %v551
          %583 = vst [vmem:[#allocation3 + $0xf0] sm:$0xff] %v551
          %584 = vst [vmem:[#allocation3 + $0xf8] sm:$0xff] %v551
        $region56: #{_lambda_.3} parent=51 // pred_fallthru
          _
        %v585 = vld [vmem:[%s459] sm:$0xff]
        %v586 = vld [vmem:[%s459 + $0x8] sm:$0xf]
        %v587 = vld [vmem:[%s459 + $0xc] sm:$0xff]
        %v588 = vld [vmem:[%s459 + $0x14] sm:$0xf]
        %v589 = vld [vmem:[%s459 + $0x18] sm:$0xff]
        %v590 = vld [vmem:[%s459 + $0x20] sm:$0xf]
        %v591 = vld [vmem:[%s459 + $0x24] sm:$0xff]
        %v592 = vld [vmem:[%s459 + $0x2c] sm:$0xf]
        %v593 = vld [vmem:[%s459 + $0x30] sm:$0xff]
        %v594 = vld [vmem:[%s459 + $0x38] sm:$0xf]
        %v595 = vld [vmem:[%s459 + $0x3c] sm:$0xff]
        %v596 = vld [vmem:[%s459 + $0x44] sm:$0xf]
        %v597 = vld [vmem:[%s459 + $0x48] sm:$0xff]
        %v598 = vld [vmem:[%s459 + $0x50] sm:$0xf]
        %v599 = vld [vmem:[%s459 + $0x54] sm:$0xff]
        %v600 = vld [vmem:[%s459 + $0x5c] sm:$0xf]
        %v601 = vld [vmem:[%s459 + $0x60] sm:$0xff]
        %v602 = vld [vmem:[%s459 + $0x68] sm:$0xf]
        %v603 = vld [vmem:[%s459 + $0x6c] sm:$0xff]
        %v604 = vld [vmem:[%s459 + $0x74] sm:$0xf]
        %v605 = vld [vmem:[%s459 + $0x78] sm:$0xff]
        %v606 = vld [vmem:[%s459 + $0x80] sm:$0xf]
        %v607 = vld [vmem:[%s459 + $0x84] sm:$0xff]
        %v608 = vld [vmem:[%s459 + $0x8c] sm:$0xf]
        %v609 = vld [vmem:[%s459 + $0x90] sm:$0xff]
        %v610 = vld [vmem:[%s459 + $0x98] sm:$0xf]
        %v611 = vld [vmem:[%s459 + $0x9c] sm:$0xff]
        %v612 = vld [vmem:[%s459 + $0xa4] sm:$0xf]
        %v613 = vld [vmem:[%s459 + $0xa8] sm:$0xff]
        %v614 = vld [vmem:[%s459 + $0xb0] sm:$0xf]
        %v615 = vld [vmem:[%s459 + $0xb4] sm:$0xff]
        %v616 = vld [vmem:[%s459 + $0xbc] sm:$0xf]
        %v617 = vld [vmem:[%s459 + $0xc0] sm:$0xff]
        %v618 = vld [vmem:[%s459 + $0xc8] sm:$0xf]
        %v619 = vld [vmem:[%s459 + $0xcc] sm:$0xff]
        %v620 = vld [vmem:[%s459 + $0xd4] sm:$0xf]
        %v621 = vld [vmem:[%s459 + $0xd8] sm:$0xff]
        %v622 = vld [vmem:[%s459 + $0xe0] sm:$0xf]
        %v623 = vld [vmem:[%s459 + $0xe4] sm:$0xff]
        %v624 = vld [vmem:[%s459 + $0xec] sm:$0xf]
        %v625 = vld [vmem:[%s459 + $0xf0] sm:$0xff]
        %v626 = vld [vmem:[%s459 + $0xf8] sm:$0xf]
        %v627 = vld [vmem:[%s459 + $0xfc] sm:$0xff]
        %v628 = vld [vmem:[%s459 + $0x104] sm:$0xf]
        %v629 = vld [vmem:[%s459 + $0x108] sm:$0xff]
        %v630 = vld [vmem:[%s459 + $0x110] sm:$0xf]
        %v631 = vld [vmem:[%s459 + $0x114] sm:$0xff]
        %v632 = vld [vmem:[%s459 + $0x11c] sm:$0xf]
        %v633 = vld [vmem:[%s459 + $0x120] sm:$0xff]
        %v634 = vld [vmem:[%s459 + $0x128] sm:$0xf]
        %v635 = vld [vmem:[%s459 + $0x12c] sm:$0xff]
        %v636 = vld [vmem:[%s459 + $0x134] sm:$0xf]
        %v637 = vld [vmem:[%s459 + $0x138] sm:$0xff]
        %v638 = vld [vmem:[%s459 + $0x140] sm:$0xf]
        %v639 = vld [vmem:[%s459 + $0x144] sm:$0xff]
        %v640 = vld [vmem:[%s459 + $0x14c] sm:$0xf]
        %v641 = vld [vmem:[%s459 + $0x150] sm:$0xff]
        %v642 = vld [vmem:[%s459 + $0x158] sm:$0xf]
        %v643 = vld [vmem:[%s459 + $0x15c] sm:$0xff]
        %v644 = vld [vmem:[%s459 + $0x164] sm:$0xf]
        %v645 = vld [vmem:[%s459 + $0x168] sm:$0xff]
        %v646 = vld [vmem:[%s459 + $0x170] sm:$0xf]
        %v647 = vld [vmem:[%s459 + $0x174] sm:$0xff]
        %v648 = vld [vmem:[%s459 + $0x17c] sm:$0xf]
        %v649 = vld [vmem:[#allocation2] sm:$0xff]
        %v650 = vld [vmem:[#allocation2 + $0x8] sm:$0xff]
        %v651 = vld [vmem:[#allocation2 + $0x10] sm:$0xff]
        %v652 = vld [vmem:[#allocation2 + $0x18] sm:$0xff]
        %v653 = vld [vmem:[#allocation2 + $0x20] sm:$0xff]
        %v654 = vld [vmem:[#allocation2 + $0x28] sm:$0xff]
        %v655 = vld [vmem:[#allocation2 + $0x30] sm:$0xff]
        %v656 = vld [vmem:[#allocation2 + $0x38] sm:$0xff]
        %v657 = vld [vmem:[#allocation2 + $0x40] sm:$0xff]
        %v658 = vld [vmem:[#allocation2 + $0x48] sm:$0xff]
        %v659 = vld [vmem:[#allocation2 + $0x50] sm:$0xff]
        %v660 = vld [vmem:[#allocation2 + $0x58] sm:$0xff]
        %v661 = vld [vmem:[#allocation2 + $0x60] sm:$0xff]
        %v662 = vld [vmem:[#allocation2 + $0x68] sm:$0xff]
        %v663 = vld [vmem:[#allocation2 + $0x70] sm:$0xff]
        %v664 = vld [vmem:[#allocation2 + $0x78] sm:$0xff]
        %v665 = vld [vmem:[#allocation2 + $0x80] sm:$0xff]
        %v666 = vld [vmem:[#allocation2 + $0x88] sm:$0xff]
        %v667 = vld [vmem:[#allocation2 + $0x90] sm:$0xff]
        %v668 = vld [vmem:[#allocation2 + $0x98] sm:$0xff]
        %v669 = vld [vmem:[#allocation2 + $0xa0] sm:$0xff]
        %v670 = vld [vmem:[#allocation2 + $0xa8] sm:$0xff]
        %v671 = vld [vmem:[#allocation2 + $0xb0] sm:$0xff]
        %v672 = vld [vmem:[#allocation2 + $0xb8] sm:$0xff]
        %v673 = vld [vmem:[#allocation2 + $0xc0] sm:$0xff]
        %v674 = vld [vmem:[#allocation2 + $0xc8] sm:$0xff]
        %v675 = vld [vmem:[#allocation2 + $0xd0] sm:$0xff]
        %v676 = vld [vmem:[#allocation2 + $0xd8] sm:$0xff]
        %v677 = vld [vmem:[#allocation2 + $0xe0] sm:$0xff]
        %v678 = vld [vmem:[#allocation2 + $0xe8] sm:$0xff]
        %v679 = vld [vmem:[#allocation2 + $0xf0] sm:$0xff]
        %v680 = vld [vmem:[#allocation2 + $0xf8] sm:$0xff]
        %v681 = vld [vmem:[%s469] sm:$0xf]
        %v682 = vld [vmem:[%s469 + $0x4] sm:$0xf]
        %v683 = vld [vmem:[%s469 + $0x8] sm:$0xf]
        %v684 = vld [vmem:[%s469 + $0xc] sm:$0xf]
        %v685 = vld [vmem:[%s469 + $0x10] sm:$0xf]
        %v686 = vld [vmem:[%s469 + $0x14] sm:$0xf]
        %v687 = vld [vmem:[%s469 + $0x18] sm:$0xf]
        %v688 = vld [vmem:[%s469 + $0x1c] sm:$0xf]
        %v689 = vld [vmem:[%s469 + $0x20] sm:$0xf]
        %v690 = vld [vmem:[%s469 + $0x24] sm:$0xf]
        %v691 = vld [vmem:[%s469 + $0x28] sm:$0xf]
        %v692 = vld [vmem:[%s469 + $0x2c] sm:$0xf]
        %v693 = vld [vmem:[%s469 + $0x30] sm:$0xf]
        %v694 = vld [vmem:[%s469 + $0x34] sm:$0xf]
        %v695 = vld [vmem:[%s469 + $0x38] sm:$0xf]
        %v696 = vld [vmem:[%s469 + $0x3c] sm:$0xf]
        %v697 = vld [vmem:[%s469 + $0x40] sm:$0xf]
        %v698 = vld [vmem:[%s469 + $0x44] sm:$0xf]
        %v699 = vld [vmem:[%s469 + $0x48] sm:$0xf]
        %v700 = vld [vmem:[%s469 + $0x4c] sm:$0xf]
        %v701 = vld [vmem:[%s469 + $0x50] sm:$0xf]
        %v702 = vld [vmem:[%s469 + $0x54] sm:$0xf]
        %v703 = vld [vmem:[%s469 + $0x58] sm:$0xf]
        %v704 = vld [vmem:[%s469 + $0x5c] sm:$0xf]
        %v705 = vld [vmem:[%s469 + $0x60] sm:$0xf]
        %v706 = vld [vmem:[%s469 + $0x64] sm:$0xf]
        %v707 = vld [vmem:[%s469 + $0x68] sm:$0xf]
        %v708 = vld [vmem:[%s469 + $0x6c] sm:$0xf]
        %v709 = vld [vmem:[%s469 + $0x70] sm:$0xf]
        %v710 = vld [vmem:[%s469 + $0x74] sm:$0xf]
        %v711 = vld [vmem:[%s469 + $0x78] sm:$0xf]
        %v712 = vld [vmem:[%s469 + $0x7c] sm:$0xf]
        %v713 = vld [vmem:[%s469 + $0x80] sm:$0xf]
        %v714 = vld [vmem:[%s469 + $0x84] sm:$0xf]
        %v715 = vld [vmem:[%s469 + $0x88] sm:$0xf]
        %v716 = vld [vmem:[%s469 + $0x8c] sm:$0xf]
        %v717 = vld [vmem:[%s469 + $0x90] sm:$0xf]
        %v718 = vld [vmem:[%s469 + $0x94] sm:$0xf]
        %v719 = vld [vmem:[%s469 + $0x98] sm:$0xf]
        %v720 = vld [vmem:[%s469 + $0x9c] sm:$0xf]
        %v721 = vld [vmem:[%s469 + $0xa0] sm:$0xf]
        %v722 = vld [vmem:[%s469 + $0xa4] sm:$0xf]
        %v723 = vld [vmem:[%s469 + $0xa8] sm:$0xf]
        %v724 = vld [vmem:[%s469 + $0xac] sm:$0xf]
        %v725 = vld [vmem:[%s469 + $0xb0] sm:$0xf]
        %v726 = vld [vmem:[%s469 + $0xb4] sm:$0xf]
        %v727 = vld [vmem:[%s469 + $0xb8] sm:$0xf]
        %v728 = vld [vmem:[%s469 + $0xbc] sm:$0xf]
        %v793 = vunpack.c.l.b16 %v585
        %v794 = vunpack.c.h.b16 %v585
        %v795 = vunpack.c.l.b16 %v586
        %v796 = vunpack.c.l.b16 %v587
        %v797 = vunpack.c.h.b16 %v587
        %v798 = vunpack.c.l.b16 %v588
        %v799 = vunpack.c.l.b16 %v589
        %v800 = vunpack.c.h.b16 %v589
        %v801 = vunpack.c.l.b16 %v590
        %v802 = vunpack.c.l.b16 %v591
        %v803 = vunpack.c.h.b16 %v591
        %v804 = vunpack.c.l.b16 %v592
        %v805 = vunpack.c.l.b16 %v593
        %v806 = vunpack.c.h.b16 %v593
        %v807 = vunpack.c.l.b16 %v594
        %v808 = vunpack.c.l.b16 %v595
        %v809 = vunpack.c.h.b16 %v595
        %v810 = vunpack.c.l.b16 %v596
        %v811 = vunpack.c.l.b16 %v597
        %v812 = vunpack.c.h.b16 %v597
        %v813 = vunpack.c.l.b16 %v598
        %v814 = vunpack.c.l.b16 %v599
        %v815 = vunpack.c.h.b16 %v599
        %v816 = vunpack.c.l.b16 %v600
        %v817 = vunpack.c.l.b16 %v601
        %v818 = vunpack.c.h.b16 %v601
        %v819 = vunpack.c.l.b16 %v602
        %v820 = vunpack.c.l.b16 %v603
        %v821 = vunpack.c.h.b16 %v603
        %v822 = vunpack.c.l.b16 %v604
        %v823 = vunpack.c.l.b16 %v605
        %v824 = vunpack.c.h.b16 %v605
        %v825 = vunpack.c.l.b16 %v606
        %v826 = vunpack.c.l.b16 %v607
        %v827 = vunpack.c.h.b16 %v607
        %v828 = vunpack.c.l.b16 %v608
        %v829 = vunpack.c.l.b16 %v609
        %v830 = vunpack.c.h.b16 %v609
        %v831 = vunpack.c.l.b16 %v610
        %v832 = vunpack.c.l.b16 %v611
        %v833 = vunpack.c.h.b16 %v611
        %v834 = vunpack.c.l.b16 %v612
        %v835 = vunpack.c.l.b16 %v613
        %v836 = vunpack.c.h.b16 %v613
        %v837 = vunpack.c.l.b16 %v614
        %v838 = vunpack.c.l.b16 %v615
        %v839 = vunpack.c.h.b16 %v615
        %v840 = vunpack.c.l.b16 %v616
        %v841 = vunpack.c.l.b16 %v617
        %v842 = vunpack.c.h.b16 %v617
        %v843 = vunpack.c.l.b16 %v618
        %v844 = vunpack.c.l.b16 %v619
        %v845 = vunpack.c.h.b16 %v619
        %v846 = vunpack.c.l.b16 %v620
        %v847 = vunpack.c.l.b16 %v621
        %v848 = vunpack.c.h.b16 %v621
        %v849 = vunpack.c.l.b16 %v622
        %v850 = vunpack.c.l.b16 %v623
        %v851 = vunpack.c.h.b16 %v623
        %v852 = vunpack.c.l.b16 %v624
        %v853 = vunpack.c.l.b16 %v625
        %v854 = vunpack.c.h.b16 %v625
        %v855 = vunpack.c.l.b16 %v626
        %v856 = vunpack.c.l.b16 %v627
        %v857 = vunpack.c.h.b16 %v627
        %v858 = vunpack.c.l.b16 %v628
        %v859 = vunpack.c.l.b16 %v629
        %v860 = vunpack.c.h.b16 %v629
        %v861 = vunpack.c.l.b16 %v630
        %v862 = vunpack.c.l.b16 %v631
        %v863 = vunpack.c.h.b16 %v631
        %v864 = vunpack.c.l.b16 %v632
        %v865 = vunpack.c.l.b16 %v633
        %v866 = vunpack.c.h.b16 %v633
        %v867 = vunpack.c.l.b16 %v634
        %v868 = vunpack.c.l.b16 %v635
        %v869 = vunpack.c.h.b16 %v635
        %v870 = vunpack.c.l.b16 %v636
        %v871 = vunpack.c.l.b16 %v637
        %v872 = vunpack.c.h.b16 %v637
        %v873 = vunpack.c.l.b16 %v638
        %v874 = vunpack.c.l.b16 %v639
        %v875 = vunpack.c.h.b16 %v639
        %v876 = vunpack.c.l.b16 %v640
        %v877 = vunpack.c.l.b16 %v641
        %v878 = vunpack.c.h.b16 %v641
        %v879 = vunpack.c.l.b16 %v642
        %v880 = vunpack.c.l.b16 %v643
        %v881 = vunpack.c.h.b16 %v643
        %v882 = vunpack.c.l.b16 %v644
        %v883 = vunpack.c.l.b16 %v645
        %v884 = vunpack.c.h.b16 %v645
        %v885 = vunpack.c.l.b16 %v646
        %v886 = vunpack.c.l.b16 %v647
        %v887 = vunpack.c.h.b16 %v647
        %v888 = vunpack.c.l.b16 %v648
        %v889 = vpack.c.b16 %v796, %v793
        %v890 = vpack.c.b16 %v797, %v794
        %v891 = vpack.c.b16 %v798, %v795
        %v892 = vpack.c.b16 %v802, %v799
        %v893 = vpack.c.b16 %v803, %v800
        %v894 = vpack.c.b16 %v804, %v801
        %v895 = vpack.c.b16 %v808, %v805
        %v896 = vpack.c.b16 %v809, %v806
        %v897 = vpack.c.b16 %v810, %v807
        %v898 = vpack.c.b16 %v814, %v811
        %v899 = vpack.c.b16 %v815, %v812
        %v900 = vpack.c.b16 %v816, %v813
        %v901 = vpack.c.b16 %v820, %v817
        %v902 = vpack.c.b16 %v821, %v818
        %v903 = vpack.c.b16 %v822, %v819
        %v904 = vpack.c.b16 %v826, %v823
        %v905 = vpack.c.b16 %v827, %v824
        %v906 = vpack.c.b16 %v828, %v825
        %v907 = vpack.c.b16 %v832, %v829
        %v908 = vpack.c.b16 %v833, %v830
        %v909 = vpack.c.b16 %v834, %v831
        %v910 = vpack.c.b16 %v838, %v835
        %v911 = vpack.c.b16 %v839, %v836
        %v912 = vpack.c.b16 %v840, %v837
        %v913 = vpack.c.b16 %v844, %v841
        %v914 = vpack.c.b16 %v845, %v842
        %v915 = vpack.c.b16 %v846, %v843
        %v916 = vpack.c.b16 %v850, %v847
        %v917 = vpack.c.b16 %v851, %v848
        %v918 = vpack.c.b16 %v852, %v849
        %v919 = vpack.c.b16 %v856, %v853
        %v920 = vpack.c.b16 %v857, %v854
        %v921 = vpack.c.b16 %v858, %v855
        %v922 = vpack.c.b16 %v862, %v859
        %v923 = vpack.c.b16 %v863, %v860
        %v924 = vpack.c.b16 %v864, %v861
        %v925 = vpack.c.b16 %v868, %v865
        %v926 = vpack.c.b16 %v869, %v866
        %v927 = vpack.c.b16 %v870, %v867
        %v928 = vpack.c.b16 %v874, %v871
        %v929 = vpack.c.b16 %v875, %v872
        %v930 = vpack.c.b16 %v876, %v873
        %v931 = vpack.c.b16 %v880, %v877
        %v932 = vpack.c.b16 %v881, %v878
        %v933 = vpack.c.b16 %v882, %v879
        %v934 = vpack.c.b16 %v886, %v883
        %v935 = vpack.c.b16 %v887, %v884
        %v936 = vpack.c.b16 %v888, %v885
        %v1033 = vunpack.c.l.b16 %v681
        %v1034 = vunpack.c.l.b16 %v682
        %v1035 = vunpack.c.l.b16 %v683
        %v1036 = vunpack.c.l.b16 %v684
        %v1037 = vunpack.c.l.b16 %v685
        %v1038 = vunpack.c.l.b16 %v686
        %v1039 = vunpack.c.l.b16 %v687
        %v1040 = vunpack.c.l.b16 %v688
        %v1041 = vunpack.c.l.b16 %v689
        %v1042 = vunpack.c.l.b16 %v690
        %v1043 = vunpack.c.l.b16 %v691
        %v1044 = vunpack.c.l.b16 %v692
        %v1045 = vunpack.c.l.b16 %v693
        %v1046 = vunpack.c.l.b16 %v694
        %v1047 = vunpack.c.l.b16 %v695
        %v1048 = vunpack.c.l.b16 %v696
        %v1049 = vunpack.c.l.b16 %v697
        %v1050 = vunpack.c.l.b16 %v698
        %v1051 = vunpack.c.l.b16 %v699
        %v1052 = vunpack.c.l.b16 %v700
        %v1053 = vunpack.c.l.b16 %v701
        %v1054 = vunpack.c.l.b16 %v702
        %v1055 = vunpack.c.l.b16 %v703
        %v1056 = vunpack.c.l.b16 %v704
        %v1057 = vunpack.c.l.b16 %v705
        %v1058 = vunpack.c.l.b16 %v706
        %v1059 = vunpack.c.l.b16 %v707
        %v1060 = vunpack.c.l.b16 %v708
        %v1061 = vunpack.c.l.b16 %v709
        %v1062 = vunpack.c.l.b16 %v710
        %v1063 = vunpack.c.l.b16 %v711
        %v1064 = vunpack.c.l.b16 %v712
        %v1065 = vunpack.c.l.b16 %v713
        %v1066 = vunpack.c.l.b16 %v714
        %v1067 = vunpack.c.l.b16 %v715
        %v1068 = vunpack.c.l.b16 %v716
        %v1069 = vunpack.c.l.b16 %v717
        %v1070 = vunpack.c.l.b16 %v718
        %v1071 = vunpack.c.l.b16 %v719
        %v1072 = vunpack.c.l.b16 %v720
        %v1073 = vunpack.c.l.b16 %v721
        %v1074 = vunpack.c.l.b16 %v722
        %v1075 = vunpack.c.l.b16 %v723
        %v1076 = vunpack.c.l.b16 %v724
        %v1077 = vunpack.c.l.b16 %v725
        %v1078 = vunpack.c.l.b16 %v726
        %v1079 = vunpack.c.l.b16 %v727
        %v1080 = vunpack.c.l.b16 %v728
        %v1081 = vpack.c.b16 %v1034, %v1033
        %v1082 = vpack.c.b16 %v1036, %v1035
        %v1083 = vpack.c.b16 %v1038, %v1037
        %v1084 = vpack.c.b16 %v1040, %v1039
        %v1085 = vpack.c.b16 %v1042, %v1041
        %v1086 = vpack.c.b16 %v1044, %v1043
        %v1087 = vpack.c.b16 %v1046, %v1045
        %v1088 = vpack.c.b16 %v1048, %v1047
        %v1089 = vpack.c.b16 %v1050, %v1049
        %v1090 = vpack.c.b16 %v1052, %v1051
        %v1091 = vpack.c.b16 %v1054, %v1053
        %v1092 = vpack.c.b16 %v1056, %v1055
        %v1093 = vpack.c.b16 %v1058, %v1057
        %v1094 = vpack.c.b16 %v1060, %v1059
        %v1095 = vpack.c.b16 %v1062, %v1061
        %v1096 = vpack.c.b16 %v1064, %v1063
        %v1097 = vpack.c.b16 %v1066, %v1065
        %v1098 = vpack.c.b16 %v1068, %v1067
        %v1099 = vpack.c.b16 %v1070, %v1069
        %v1100 = vpack.c.b16 %v1072, %v1071
        %v1101 = vpack.c.b16 %v1074, %v1073
        %v1102 = vpack.c.b16 %v1076, %v1075
        %v1103 = vpack.c.b16 %v1078, %v1077
        %v1104 = vpack.c.b16 %v1080, %v1079
        %1129 = vmatprep.subr.bf16.mxu0 0
        %1130 = vmatpush1.bf16.msra.mxu0 %v1088
        %1131 = vmatprep.subr.bf16.mxu0 0
        %1132 = vmatpush1.bf16.msra.mxu0 %v1087
        %1133 = vmatprep.subr.bf16.mxu0 0
        %1134 = vmatpush1.bf16.msra.mxu0 %v1086
        %1135 = vmatprep.subr.bf16.mxu0 0
        %1136 = vmatpush1.bf16.msra.mxu0 %v1085
        %1137 = vmatprep.subr.bf16.mxu0 0
        %1138 = vmatpush1.bf16.msra.mxu0 %v1084
        %1139 = vmatprep.subr.bf16.mxu0 0
        %1140 = vmatpush1.bf16.msra.mxu0 %v1083
        %1141 = vmatprep.subr.bf16.mxu0 0
        %1142 = vmatpush1.bf16.msra.mxu0 %v1082
        %1143 = vmatprep.subr.bf16.mxu0 0
        %1144 = vmatpush1.bf16.msra.mxu0 %v1081
        %1145 = vmatprep.subr.bf16.mxu0 0
        %1146 = vmatpush2.bf16.msra.mxu0 %v1096
        %1147 = vmatprep.subr.bf16.mxu0 0
        %1148 = vmatpush2.bf16.msra.mxu0 %v1095
        %1149 = vmatprep.subr.bf16.mxu0 0
        %1150 = vmatpush2.bf16.msra.mxu0 %v1094
        %1151 = vmatprep.subr.bf16.mxu0 0
        %1152 = vmatpush2.bf16.msra.mxu0 %v1093
        %1153 = vmatprep.subr.bf16.mxu0 0
        %1154 = vmatpush2.bf16.msra.mxu0 %v1092
        %1155 = vmatprep.subr.bf16.mxu0 0
        %1156 = vmatpush2.bf16.msra.mxu0 %v1091
        %1157 = vmatprep.subr.bf16.mxu0 0
        %1158 = vmatpush2.bf16.msra.mxu0 %v1090
        %1159 = vmatprep.subr.bf16.mxu0 0
        %1160 = vmatpush2.bf16.msra.mxu0 %v1089
        %1161 = vmatprep.mubr.bf16.mxu0 %v890
        %1162 = vmatmul.mubr.bf16.gmra.mxu0 %v889
        %v1163 = vpop.f32.mrf.mxu0
        %v1164 = vadd.f32 0.0, %v1163
        %v1165 = vpop.f32.mrf.mxu0
        %v1166 = vpop.f32.mrf.mxu0
        %v1167 = vadd.f32 0.0, %v1166
        %v1168 = vpop.f32.mrf.mxu0
        %1169 = vmatprep.mubr.bf16.mxu0 %v893
        %1170 = vmatmul.mubr.bf16.gmra.mxu0 %v892
        %v1171 = vpop.f32.mrf.mxu0
        %v1172 = vadd.f32 0.0, %v1171
        %v1173 = vpop.f32.mrf.mxu0
        %v1174 = vpop.f32.mrf.mxu0
        %v1175 = vadd.f32 0.0, %v1174
        %v1176 = vpop.f32.mrf.mxu0
        %1177 = vmatprep.mubr.bf16.mxu0 %v896
        %1178 = vmatmul.mubr.bf16.gmra.mxu0 %v895
        %v1179 = vpop.f32.mrf.mxu0
        %v1180 = vadd.f32 0.0, %v1179
        %v1181 = vpop.f32.mrf.mxu0
        %v1182 = vpop.f32.mrf.mxu0
        %v1183 = vadd.f32 0.0, %v1182
        %v1184 = vpop.f32.mrf.mxu0
        %1185 = vmatprep.mubr.bf16.mxu0 %v899
        %1186 = vmatmul.mubr.bf16.gmra.mxu0 %v898
        %v1187 = vpop.f32.mrf.mxu0
        %v1188 = vadd.f32 0.0, %v1187
        %v1189 = vpop.f32.mrf.mxu0
        %v1190 = vpop.f32.mrf.mxu0
        %v1191 = vadd.f32 0.0, %v1190
        %v1192 = vpop.f32.mrf.mxu0
        %1193 = vmatprep.mubr.bf16.mxu0 %v902
        %1194 = vmatmul.mubr.bf16.gmra.mxu0 %v901
        %v1195 = vpop.f32.mrf.mxu0
        %v1196 = vadd.f32 0.0, %v1195
        %v1197 = vpop.f32.mrf.mxu0
        %v1198 = vpop.f32.mrf.mxu0
        %v1199 = vadd.f32 0.0, %v1198
        %v1200 = vpop.f32.mrf.mxu0
        %1201 = vmatprep.mubr.bf16.mxu0 %v905
        %1202 = vmatmul.mubr.bf16.gmra.mxu0 %v904
        %v1203 = vpop.f32.mrf.mxu0
        %v1204 = vadd.f32 0.0, %v1203
        %v1205 = vpop.f32.mrf.mxu0
        %v1206 = vpop.f32.mrf.mxu0
        %v1207 = vadd.f32 0.0, %v1206
        %v1208 = vpop.f32.mrf.mxu0
        %1209 = vmatprep.mubr.bf16.mxu0 %v908
        %1210 = vmatmul.mubr.bf16.gmra.mxu0 %v907
        %v1211 = vpop.f32.mrf.mxu0
        %v1212 = vadd.f32 0.0, %v1211
        %v1213 = vpop.f32.mrf.mxu0
        %v1214 = vpop.f32.mrf.mxu0
        %v1215 = vadd.f32 0.0, %v1214
        %v1216 = vpop.f32.mrf.mxu0
        %1217 = vmatprep.mubr.bf16.mxu0 %v911
        %1218 = vmatmul.mubr.bf16.gmra.mxu0 %v910
        %v1219 = vpop.f32.mrf.mxu0
        %v1220 = vadd.f32 0.0, %v1219
        %v1221 = vpop.f32.mrf.mxu0
        %v1222 = vpop.f32.mrf.mxu0
        %v1223 = vadd.f32 0.0, %v1222
        %v1224 = vpop.f32.mrf.mxu0
        %1225 = vmatprep.mubr.bf16.mxu0 %v914
        %1226 = vmatmul.mubr.bf16.gmra.mxu0 %v913
        %v1227 = vpop.f32.mrf.mxu0
        %v1228 = vadd.f32 0.0, %v1227
        %v1229 = vpop.f32.mrf.mxu0
        %v1230 = vpop.f32.mrf.mxu0
        %v1231 = vadd.f32 0.0, %v1230
        %v1232 = vpop.f32.mrf.mxu0
        %1233 = vmatprep.mubr.bf16.mxu0 %v917
        %1234 = vmatmul.mubr.bf16.gmra.mxu0 %v916
        %v1235 = vpop.f32.mrf.mxu0
        %v1236 = vadd.f32 0.0, %v1235
        %v1237 = vpop.f32.mrf.mxu0
        %v1238 = vpop.f32.mrf.mxu0
        %v1239 = vadd.f32 0.0, %v1238
        %v1240 = vpop.f32.mrf.mxu0
        %1241 = vmatprep.mubr.bf16.mxu0 %v920
        %1242 = vmatmul.mubr.bf16.gmra.mxu0 %v919
        %v1243 = vpop.f32.mrf.mxu0
        %v1244 = vadd.f32 0.0, %v1243
        %v1245 = vpop.f32.mrf.mxu0
        %v1246 = vpop.f32.mrf.mxu0
        %v1247 = vadd.f32 0.0, %v1246
        %v1248 = vpop.f32.mrf.mxu0
        %1249 = vmatprep.mubr.bf16.mxu0 %v923
        %1250 = vmatmul.mubr.bf16.gmra.mxu0 %v922
        %v1251 = vpop.f32.mrf.mxu0
        %v1252 = vadd.f32 0.0, %v1251
        %v1253 = vpop.f32.mrf.mxu0
        %v1254 = vpop.f32.mrf.mxu0
        %v1255 = vadd.f32 0.0, %v1254
        %v1256 = vpop.f32.mrf.mxu0
        %1257 = vmatprep.mubr.bf16.mxu0 %v926
        %1258 = vmatmul.mubr.bf16.gmra.mxu0 %v925
        %v1259 = vpop.f32.mrf.mxu0
        %v1260 = vadd.f32 0.0, %v1259
        %v1261 = vpop.f32.mrf.mxu0
        %v1262 = vpop.f32.mrf.mxu0
        %v1263 = vadd.f32 0.0, %v1262
        %v1264 = vpop.f32.mrf.mxu0
        %1265 = vmatprep.mubr.bf16.mxu0 %v929
        %1266 = vmatmul.mubr.bf16.gmra.mxu0 %v928
        %v1267 = vpop.f32.mrf.mxu0
        %v1268 = vadd.f32 0.0, %v1267
        %v1269 = vpop.f32.mrf.mxu0
        %v1270 = vpop.f32.mrf.mxu0
        %v1271 = vadd.f32 0.0, %v1270
        %v1272 = vpop.f32.mrf.mxu0
        %1273 = vmatprep.mubr.bf16.mxu0 %v932
        %1274 = vmatmul.mubr.bf16.gmra.mxu0 %v931
        %v1275 = vpop.f32.mrf.mxu0
        %v1276 = vadd.f32 0.0, %v1275
        %v1277 = vpop.f32.mrf.mxu0
        %v1278 = vpop.f32.mrf.mxu0
        %v1279 = vadd.f32 0.0, %v1278
        %v1280 = vpop.f32.mrf.mxu0
        %1281 = vmatprep.mubr.bf16.mxu0 %v935
        %1282 = vmatmul.mubr.bf16.gmra.mxu0 %v934
        %v1283 = vpop.f32.mrf.mxu0
        %v1284 = vadd.f32 0.0, %v1283
        %v1285 = vpop.f32.mrf.mxu0
        %v1286 = vpop.f32.mrf.mxu0
        %v1287 = vadd.f32 0.0, %v1286
        %v1288 = vpop.f32.mrf.mxu0
        %1289 = vdwg.mxu0
        %1290 = vmatprep.subr.bf16.mxu0 0
        %1291 = vmatpush1.bf16.msra.mxu0 %v1104
        %1292 = vmatprep.subr.bf16.mxu0 0
        %1293 = vmatpush1.bf16.msra.mxu0 %v1103
        %1294 = vmatprep.subr.bf16.mxu0 0
        %1295 = vmatpush1.bf16.msra.mxu0 %v1102
        %1296 = vmatprep.subr.bf16.mxu0 0
        %1297 = vmatpush1.bf16.msra.mxu0 %v1101
        %1298 = vmatprep.subr.bf16.mxu0 0
        %1299 = vmatpush1.bf16.msra.mxu0 %v1100
        %1300 = vmatprep.subr.bf16.mxu0 0
        %1301 = vmatpush1.bf16.msra.mxu0 %v1099
        %1302 = vmatprep.subr.bf16.mxu0 0
        %1303 = vmatpush1.bf16.msra.mxu0 %v1098
        %1304 = vmatprep.subr.bf16.mxu0 0
        %1305 = vmatpush1.bf16.msra.mxu0 %v1097
        %1306 = vmatprep.subr.bf16.mxu0 0
        %1307 = vmatpush2.bf16.msra.mxu0 0
        %1308 = vmatprep.subr.bf16.mxu0 0
        %1309 = vmatpush2.bf16.msra.mxu0 0
        %1310 = vmatprep.subr.bf16.mxu0 0
        %1311 = vmatpush2.bf16.msra.mxu0 0
        %1312 = vmatprep.subr.bf16.mxu0 0
        %1313 = vmatpush2.bf16.msra.mxu0 0
        %1314 = vmatprep.subr.bf16.mxu0 0
        %1315 = vmatpush2.bf16.msra.mxu0 0
        %1316 = vmatprep.subr.bf16.mxu0 0
        %1317 = vmatpush2.bf16.msra.mxu0 0
        %1318 = vmatprep.subr.bf16.mxu0 0
        %1319 = vmatpush2.bf16.msra.mxu0 0
        %1320 = vmatprep.subr.bf16.mxu0 0
        %1321 = vmatpush2.bf16.msra.mxu0 0
        %1322 = vmatprep.mubr.bf16.mxu0 0
        %1323 = vmatmul.mubr.bf16.gmra.mxu0 %v891
        %v1324 = vpop.f32.mrf.mxu0
        %v1325 = vadd.f32 %v1164, %v1324
        %v1326 = vpop.f32.mrf.mxu0
        %v1327 = vpop.f32.mrf.mxu0
        %v1328 = vadd.f32 %v1167, %v1327
        %v1329 = vpop.f32.mrf.mxu0
        %1330 = vmatprep.mubr.bf16.mxu0 0
        %1331 = vmatmul.mubr.bf16.gmra.mxu0 %v894
        %v1332 = vpop.f32.mrf.mxu0
        %v1333 = vadd.f32 %v1172, %v1332
        %v1334 = vpop.f32.mrf.mxu0
        %v1335 = vpop.f32.mrf.mxu0
        %v1336 = vadd.f32 %v1175, %v1335
        %v1337 = vpop.f32.mrf.mxu0
        %1338 = vmatprep.mubr.bf16.mxu0 0
        %1339 = vmatmul.mubr.bf16.gmra.mxu0 %v897
        %v1340 = vpop.f32.mrf.mxu0
        %v1341 = vadd.f32 %v1180, %v1340
        %v1342 = vpop.f32.mrf.mxu0
        %v1343 = vpop.f32.mrf.mxu0
        %v1344 = vadd.f32 %v1183, %v1343
        %v1345 = vpop.f32.mrf.mxu0
        %1346 = vmatprep.mubr.bf16.mxu0 0
        %1347 = vmatmul.mubr.bf16.gmra.mxu0 %v900
        %v1348 = vpop.f32.mrf.mxu0
        %v1349 = vadd.f32 %v1188, %v1348
        %v1350 = vpop.f32.mrf.mxu0
        %v1351 = vpop.f32.mrf.mxu0
        %v1352 = vadd.f32 %v1191, %v1351
        %v1353 = vpop.f32.mrf.mxu0
        %1354 = vmatprep.mubr.bf16.mxu0 0
        %1355 = vmatmul.mubr.bf16.gmra.mxu0 %v903
        %v1356 = vpop.f32.mrf.mxu0
        %v1357 = vadd.f32 %v1196, %v1356
        %v1358 = vpop.f32.mrf.mxu0
        %v1359 = vpop.f32.mrf.mxu0
        %v1360 = vadd.f32 %v1199, %v1359
        %v1361 = vpop.f32.mrf.mxu0
        %1362 = vmatprep.mubr.bf16.mxu0 0
        %1363 = vmatmul.mubr.bf16.gmra.mxu0 %v906
        %v1364 = vpop.f32.mrf.mxu0
        %v1365 = vadd.f32 %v1204, %v1364
        %v1366 = vpop.f32.mrf.mxu0
        %v1367 = vpop.f32.mrf.mxu0
        %v1368 = vadd.f32 %v1207, %v1367
        %v1369 = vpop.f32.mrf.mxu0
        %1370 = vmatprep.mubr.bf16.mxu0 0
        %1371 = vmatmul.mubr.bf16.gmra.mxu0 %v909
        %v1372 = vpop.f32.mrf.mxu0
        %v1373 = vadd.f32 %v1212, %v1372
        %v1374 = vpop.f32.mrf.mxu0
        %v1375 = vpop.f32.mrf.mxu0
        %v1376 = vadd.f32 %v1215, %v1375
        %v1377 = vpop.f32.mrf.mxu0
        %1378 = vmatprep.mubr.bf16.mxu0 0
        %1379 = vmatmul.mubr.bf16.gmra.mxu0 %v912
        %v1380 = vpop.f32.mrf.mxu0
        %v1381 = vadd.f32 %v1220, %v1380
        %v1382 = vpop.f32.mrf.mxu0
        %v1383 = vpop.f32.mrf.mxu0
        %v1384 = vadd.f32 %v1223, %v1383
        %v1385 = vpop.f32.mrf.mxu0
        %1386 = vmatprep.mubr.bf16.mxu0 0
        %1387 = vmatmul.mubr.bf16.gmra.mxu0 %v915
        %v1388 = vpop.f32.mrf.mxu0
        %v1389 = vadd.f32 %v1228, %v1388
        %v1390 = vpop.f32.mrf.mxu0
        %v1391 = vpop.f32.mrf.mxu0
        %v1392 = vadd.f32 %v1231, %v1391
        %v1393 = vpop.f32.mrf.mxu0
        %1394 = vmatprep.mubr.bf16.mxu0 0
        %1395 = vmatmul.mubr.bf16.gmra.mxu0 %v918
        %v1396 = vpop.f32.mrf.mxu0
        %v1397 = vadd.f32 %v1236, %v1396
        %v1398 = vpop.f32.mrf.mxu0
        %v1399 = vpop.f32.mrf.mxu0
        %v1400 = vadd.f32 %v1239, %v1399
        %v1401 = vpop.f32.mrf.mxu0
        %1402 = vmatprep.mubr.bf16.mxu0 0
        %1403 = vmatmul.mubr.bf16.gmra.mxu0 %v921
        %v1404 = vpop.f32.mrf.mxu0
        %v1405 = vadd.f32 %v1244, %v1404
        %v1406 = vpop.f32.mrf.mxu0
        %v1407 = vpop.f32.mrf.mxu0
        %v1408 = vadd.f32 %v1247, %v1407
        %v1409 = vpop.f32.mrf.mxu0
        %1410 = vmatprep.mubr.bf16.mxu0 0
        %1411 = vmatmul.mubr.bf16.gmra.mxu0 %v924
        %v1412 = vpop.f32.mrf.mxu0
        %v1413 = vadd.f32 %v1252, %v1412
        %v1414 = vpop.f32.mrf.mxu0
        %v1415 = vpop.f32.mrf.mxu0
        %v1416 = vadd.f32 %v1255, %v1415
        %v1417 = vpop.f32.mrf.mxu0
        %1418 = vmatprep.mubr.bf16.mxu0 0
        %1419 = vmatmul.mubr.bf16.gmra.mxu0 %v927
        %v1420 = vpop.f32.mrf.mxu0
        %v1421 = vadd.f32 %v1260, %v1420
        %v1422 = vpop.f32.mrf.mxu0
        %v1423 = vpop.f32.mrf.mxu0
        %v1424 = vadd.f32 %v1263, %v1423
        %v1425 = vpop.f32.mrf.mxu0
        %1426 = vmatprep.mubr.bf16.mxu0 0
        %1427 = vmatmul.mubr.bf16.gmra.mxu0 %v930
        %v1428 = vpop.f32.mrf.mxu0
        %v1429 = vadd.f32 %v1268, %v1428
        %v1430 = vpop.f32.mrf.mxu0
        %v1431 = vpop.f32.mrf.mxu0
        %v1432 = vadd.f32 %v1271, %v1431
        %v1433 = vpop.f32.mrf.mxu0
        %1434 = vmatprep.mubr.bf16.mxu0 0
        %1435 = vmatmul.mubr.bf16.gmra.mxu0 %v933
        %v1436 = vpop.f32.mrf.mxu0
        %v1437 = vadd.f32 %v1276, %v1436
        %v1438 = vpop.f32.mrf.mxu0
        %v1439 = vpop.f32.mrf.mxu0
        %v1440 = vadd.f32 %v1279, %v1439
        %v1441 = vpop.f32.mrf.mxu0
        %1442 = vmatprep.mubr.bf16.mxu0 0
        %1443 = vmatmul.mubr.bf16.gmra.mxu0 %v936
        %v1444 = vpop.f32.mrf.mxu0
        %v1445 = vadd.f32 %v1284, %v1444
        %v1446 = vpop.f32.mrf.mxu0
        %v1447 = vpop.f32.mrf.mxu0
        %v1448 = vadd.f32 %v1287, %v1447
        %v1449 = vpop.f32.mrf.mxu0
        %1450 = vdwg.mxu0
        %v1451 = vadd.f32 %v649, %v1325
        %v1452 = vadd.f32 %v650, %v1328
        %v1453 = vadd.f32 %v651, %v1333
        %v1454 = vadd.f32 %v652, %v1336
        %v1455 = vadd.f32 %v653, %v1341
        %v1456 = vadd.f32 %v654, %v1344
        %v1457 = vadd.f32 %v655, %v1349
        %v1458 = vadd.f32 %v656, %v1352
        %v1459 = vadd.f32 %v657, %v1357
        %v1460 = vadd.f32 %v658, %v1360
        %v1461 = vadd.f32 %v659, %v1365
        %v1462 = vadd.f32 %v660, %v1368
        %v1463 = vadd.f32 %v661, %v1373
        %v1464 = vadd.f32 %v662, %v1376
        %v1465 = vadd.f32 %v663, %v1381
        %v1466 = vadd.f32 %v664, %v1384
        %v1467 = vadd.f32 %v665, %v1389
        %v1468 = vadd.f32 %v666, %v1392
        %v1469 = vadd.f32 %v667, %v1397
        %v1470 = vadd.f32 %v668, %v1400
        %v1471 = vadd.f32 %v669, %v1405
        %v1472 = vadd.f32 %v670, %v1408
        %v1473 = vadd.f32 %v671, %v1413
        %v1474 = vadd.f32 %v672, %v1416
        %v1475 = vadd.f32 %v673, %v1421
        %v1476 = vadd.f32 %v674, %v1424
        %v1477 = vadd.f32 %v675, %v1429
        %v1478 = vadd.f32 %v676, %v1432
        %v1479 = vadd.f32 %v677, %v1437
        %v1480 = vadd.f32 %v678, %v1440
        %v1481 = vadd.f32 %v679, %v1445
        %v1482 = vadd.f32 %v680, %v1448
        %1483 = vst [vmem:[#allocation2] sm:$0xff] %v1451
        %1484 = vst [vmem:[#allocation2 + $0x8] sm:$0xff] %v1452
        %1485 = vst [vmem:[#allocation2 + $0x10] sm:$0xff] %v1453
        %1486 = vst [vmem:[#allocation2 + $0x18] sm:$0xff] %v1454
        %1487 = vst [vmem:[#allocation2 + $0x20] sm:$0xff] %v1455
        %1488 = vst [vmem:[#allocation2 + $0x28] sm:$0xff] %v1456
        %1489 = vst [vmem:[#allocation2 + $0x30] sm:$0xff] %v1457
        %1490 = vst [vmem:[#allocation2 + $0x38] sm:$0xff] %v1458
        %1491 = vst [vmem:[#allocation2 + $0x40] sm:$0xff] %v1459
        %1492 = vst [vmem:[#allocation2 + $0x48] sm:$0xff] %v1460
        %1493 = vst [vmem:[#allocation2 + $0x50] sm:$0xff] %v1461
        %1494 = vst [vmem:[#allocation2 + $0x58] sm:$0xff] %v1462
        %1495 = vst [vmem:[#allocation2 + $0x60] sm:$0xff] %v1463
        %1496 = vst [vmem:[#allocation2 + $0x68] sm:$0xff] %v1464
        %1497 = vst [vmem:[#allocation2 + $0x70] sm:$0xff] %v1465
        %1498 = vst [vmem:[#allocation2 + $0x78] sm:$0xff] %v1466
        %1499 = vst [vmem:[#allocation2 + $0x80] sm:$0xff] %v1467
        %1500 = vst [vmem:[#allocation2 + $0x88] sm:$0xff] %v1468
        %1501 = vst [vmem:[#allocation2 + $0x90] sm:$0xff] %v1469
        %1502 = vst [vmem:[#allocation2 + $0x98] sm:$0xff] %v1470
        %1503 = vst [vmem:[#allocation2 + $0xa0] sm:$0xff] %v1471
        %1504 = vst [vmem:[#allocation2 + $0xa8] sm:$0xff] %v1472
        %1505 = vst [vmem:[#allocation2 + $0xb0] sm:$0xff] %v1473
        %1506 = vst [vmem:[#allocation2 + $0xb8] sm:$0xff] %v1474
        %1507 = vst [vmem:[#allocation2 + $0xc0] sm:$0xff] %v1475
        %1508 = vst [vmem:[#allocation2 + $0xc8] sm:$0xff] %v1476
        %1509 = vst [vmem:[#allocation2 + $0xd0] sm:$0xff] %v1477
        %1510 = vst [vmem:[#allocation2 + $0xd8] sm:$0xff] %v1478
        %1511 = vst [vmem:[#allocation2 + $0xe0] sm:$0xff] %v1479
        %1512 = vst [vmem:[#allocation2 + $0xe8] sm:$0xff] %v1480
        %1513 = vst [vmem:[#allocation2 + $0xf0] sm:$0xff] %v1481
        %1514 = vst [vmem:[#allocation2 + $0xf8] sm:$0xff] %v1482
        %v1515 = vld [vmem:[#allocation3] sm:$0xff]
        %v1516 = vld [vmem:[#allocation3 + $0x8] sm:$0xff]
        %v1517 = vld [vmem:[#allocation3 + $0x10] sm:$0xff]
        %v1518 = vld [vmem:[#allocation3 + $0x18] sm:$0xff]
        %v1519 = vld [vmem:[#allocation3 + $0x20] sm:$0xff]
        %v1520 = vld [vmem:[#allocation3 + $0x28] sm:$0xff]
        %v1521 = vld [vmem:[#allocation3 + $0x30] sm:$0xff]
        %v1522 = vld [vmem:[#allocation3 + $0x38] sm:$0xff]
        %v1523 = vld [vmem:[#allocation3 + $0x40] sm:$0xff]
        %v1524 = vld [vmem:[#allocation3 + $0x48] sm:$0xff]
        %v1525 = vld [vmem:[#allocation3 + $0x50] sm:$0xff]
        %v1526 = vld [vmem:[#allocation3 + $0x58] sm:$0xff]
        %v1527 = vld [vmem:[#allocation3 + $0x60] sm:$0xff]
        %v1528 = vld [vmem:[#allocation3 + $0x68] sm:$0xff]
        %v1529 = vld [vmem:[#allocation3 + $0x70] sm:$0xff]
        %v1530 = vld [vmem:[#allocation3 + $0x78] sm:$0xff]
        %v1531 = vld [vmem:[#allocation3 + $0x80] sm:$0xff]
        %v1532 = vld [vmem:[#allocation3 + $0x88] sm:$0xff]
        %v1533 = vld [vmem:[#allocation3 + $0x90] sm:$0xff]
        %v1534 = vld [vmem:[#allocation3 + $0x98] sm:$0xff]
        %v1535 = vld [vmem:[#allocation3 + $0xa0] sm:$0xff]
        %v1536 = vld [vmem:[#allocation3 + $0xa8] sm:$0xff]
        %v1537 = vld [vmem:[#allocation3 + $0xb0] sm:$0xff]
        %v1538 = vld [vmem:[#allocation3 + $0xb8] sm:$0xff]
        %v1539 = vld [vmem:[#allocation3 + $0xc0] sm:$0xff]
        %v1540 = vld [vmem:[#allocation3 + $0xc8] sm:$0xff]
        %v1541 = vld [vmem:[#allocation3 + $0xd0] sm:$0xff]
        %v1542 = vld [vmem:[#allocation3 + $0xd8] sm:$0xff]
        %v1543 = vld [vmem:[#allocation3 + $0xe0] sm:$0xff]
        %v1544 = vld [vmem:[#allocation3 + $0xe8] sm:$0xff]
        %v1545 = vld [vmem:[#allocation3 + $0xf0] sm:$0xff]
        %v1546 = vld [vmem:[#allocation3 + $0xf8] sm:$0xff]
        %v1547 = vld [vmem:[%s478] sm:$0xf]
        %v1548 = vld [vmem:[%s478 + $0x4] sm:$0xf]
        %v1549 = vld [vmem:[%s478 + $0x8] sm:$0xf]
        %v1550 = vld [vmem:[%s478 + $0xc] sm:$0xf]
        %v1551 = vld [vmem:[%s478 + $0x10] sm:$0xf]
        %v1552 = vld [vmem:[%s478 + $0x14] sm:$0xf]
        %v1553 = vld [vmem:[%s478 + $0x18] sm:$0xf]
        %v1554 = vld [vmem:[%s478 + $0x1c] sm:$0xf]
        %v1555 = vld [vmem:[%s478 + $0x20] sm:$0xf]
        %v1556 = vld [vmem:[%s478 + $0x24] sm:$0xf]
        %v1557 = vld [vmem:[%s478 + $0x28] sm:$0xf]
        %v1558 = vld [vmem:[%s478 + $0x2c] sm:$0xf]
        %v1559 = vld [vmem:[%s478 + $0x30] sm:$0xf]
        %v1560 = vld [vmem:[%s478 + $0x34] sm:$0xf]
        %v1561 = vld [vmem:[%s478 + $0x38] sm:$0xf]
        %v1562 = vld [vmem:[%s478 + $0x3c] sm:$0xf]
        %v1563 = vld [vmem:[%s478 + $0x40] sm:$0xf]
        %v1564 = vld [vmem:[%s478 + $0x44] sm:$0xf]
        %v1565 = vld [vmem:[%s478 + $0x48] sm:$0xf]
        %v1566 = vld [vmem:[%s478 + $0x4c] sm:$0xf]
        %v1567 = vld [vmem:[%s478 + $0x50] sm:$0xf]
        %v1568 = vld [vmem:[%s478 + $0x54] sm:$0xf]
        %v1569 = vld [vmem:[%s478 + $0x58] sm:$0xf]
        %v1570 = vld [vmem:[%s478 + $0x5c] sm:$0xf]
        %v1571 = vld [vmem:[%s478 + $0x60] sm:$0xf]
        %v1572 = vld [vmem:[%s478 + $0x64] sm:$0xf]
        %v1573 = vld [vmem:[%s478 + $0x68] sm:$0xf]
        %v1574 = vld [vmem:[%s478 + $0x6c] sm:$0xf]
        %v1575 = vld [vmem:[%s478 + $0x70] sm:$0xf]
        %v1576 = vld [vmem:[%s478 + $0x74] sm:$0xf]
        %v1577 = vld [vmem:[%s478 + $0x78] sm:$0xf]
        %v1578 = vld [vmem:[%s478 + $0x7c] sm:$0xf]
        %v1579 = vld [vmem:[%s478 + $0x80] sm:$0xf]
        %v1580 = vld [vmem:[%s478 + $0x84] sm:$0xf]
        %v1581 = vld [vmem:[%s478 + $0x88] sm:$0xf]
        %v1582 = vld [vmem:[%s478 + $0x8c] sm:$0xf]
        %v1583 = vld [vmem:[%s478 + $0x90] sm:$0xf]
        %v1584 = vld [vmem:[%s478 + $0x94] sm:$0xf]
        %v1585 = vld [vmem:[%s478 + $0x98] sm:$0xf]
        %v1586 = vld [vmem:[%s478 + $0x9c] sm:$0xf]
        %v1587 = vld [vmem:[%s478 + $0xa0] sm:$0xf]
        %v1588 = vld [vmem:[%s478 + $0xa4] sm:$0xf]
        %v1589 = vld [vmem:[%s478 + $0xa8] sm:$0xf]
        %v1590 = vld [vmem:[%s478 + $0xac] sm:$0xf]
        %v1591 = vld [vmem:[%s478 + $0xb0] sm:$0xf]
        %v1592 = vld [vmem:[%s478 + $0xb4] sm:$0xf]
        %v1593 = vld [vmem:[%s478 + $0xb8] sm:$0xf]
        %v1594 = vld [vmem:[%s478 + $0xbc] sm:$0xf]
        %v1643 = vunpack.c.l.b16 %v1547
        %v1644 = vunpack.c.l.b16 %v1548
        %v1645 = vunpack.c.l.b16 %v1549
        %v1646 = vunpack.c.l.b16 %v1550
        %v1647 = vunpack.c.l.b16 %v1551
        %v1648 = vunpack.c.l.b16 %v1552
        %v1649 = vunpack.c.l.b16 %v1553
        %v1650 = vunpack.c.l.b16 %v1554
        %v1651 = vunpack.c.l.b16 %v1555
        %v1652 = vunpack.c.l.b16 %v1556
        %v1653 = vunpack.c.l.b16 %v1557
        %v1654 = vunpack.c.l.b16 %v1558
        %v1655 = vunpack.c.l.b16 %v1559
        %v1656 = vunpack.c.l.b16 %v1560
        %v1657 = vunpack.c.l.b16 %v1561
        %v1658 = vunpack.c.l.b16 %v1562
        %v1659 = vunpack.c.l.b16 %v1563
        %v1660 = vunpack.c.l.b16 %v1564
        %v1661 = vunpack.c.l.b16 %v1565
        %v1662 = vunpack.c.l.b16 %v1566
        %v1663 = vunpack.c.l.b16 %v1567
        %v1664 = vunpack.c.l.b16 %v1568
        %v1665 = vunpack.c.l.b16 %v1569
        %v1666 = vunpack.c.l.b16 %v1570
        %v1667 = vunpack.c.l.b16 %v1571
        %v1668 = vunpack.c.l.b16 %v1572
        %v1669 = vunpack.c.l.b16 %v1573
        %v1670 = vunpack.c.l.b16 %v1574
        %v1671 = vunpack.c.l.b16 %v1575
        %v1672 = vunpack.c.l.b16 %v1576
        %v1673 = vunpack.c.l.b16 %v1577
        %v1674 = vunpack.c.l.b16 %v1578
        %v1675 = vunpack.c.l.b16 %v1579
        %v1676 = vunpack.c.l.b16 %v1580
        %v1677 = vunpack.c.l.b16 %v1581
        %v1678 = vunpack.c.l.b16 %v1582
        %v1679 = vunpack.c.l.b16 %v1583
        %v1680 = vunpack.c.l.b16 %v1584
        %v1681 = vunpack.c.l.b16 %v1585
        %v1682 = vunpack.c.l.b16 %v1586
        %v1683 = vunpack.c.l.b16 %v1587
        %v1684 = vunpack.c.l.b16 %v1588
        %v1685 = vunpack.c.l.b16 %v1589
        %v1686 = vunpack.c.l.b16 %v1590
        %v1687 = vunpack.c.l.b16 %v1591
        %v1688 = vunpack.c.l.b16 %v1592
        %v1689 = vunpack.c.l.b16 %v1593
        %v1690 = vunpack.c.l.b16 %v1594
        %v1691 = vpack.c.b16 %v1644, %v1643
        %v1692 = vpack.c.b16 %v1646, %v1645
        %v1693 = vpack.c.b16 %v1648, %v1647
        %v1694 = vpack.c.b16 %v1650, %v1649
        %v1695 = vpack.c.b16 %v1652, %v1651
        %v1696 = vpack.c.b16 %v1654, %v1653
        %v1697 = vpack.c.b16 %v1656, %v1655
        %v1698 = vpack.c.b16 %v1658, %v1657
        %v1699 = vpack.c.b16 %v1660, %v1659
        %v1700 = vpack.c.b16 %v1662, %v1661
        %v1701 = vpack.c.b16 %v1664, %v1663
        %v1702 = vpack.c.b16 %v1666, %v1665
        %v1703 = vpack.c.b16 %v1668, %v1667
        %v1704 = vpack.c.b16 %v1670, %v1669
        %v1705 = vpack.c.b16 %v1672, %v1671
        %v1706 = vpack.c.b16 %v1674, %v1673
        %v1707 = vpack.c.b16 %v1676, %v1675
        %v1708 = vpack.c.b16 %v1678, %v1677
        %v1709 = vpack.c.b16 %v1680, %v1679
        %v1710 = vpack.c.b16 %v1682, %v1681
        %v1711 = vpack.c.b16 %v1684, %v1683
        %v1712 = vpack.c.b16 %v1686, %v1685
        %v1713 = vpack.c.b16 %v1688, %v1687
        %v1714 = vpack.c.b16 %v1690, %v1689
        %1739 = vmatprep.subr.bf16.mxu0 0
        %1740 = vmatpush1.bf16.msra.mxu0 %v1698
        %1741 = vmatprep.subr.bf16.mxu0 0
        %1742 = vmatpush1.bf16.msra.mxu0 %v1697
        %1743 = vmatprep.subr.bf16.mxu0 0
        %1744 = vmatpush1.bf16.msra.mxu0 %v1696
        %1745 = vmatprep.subr.bf16.mxu0 0
        %1746 = vmatpush1.bf16.msra.mxu0 %v1695
        %1747 = vmatprep.subr.bf16.mxu0 0
        %1748 = vmatpush1.bf16.msra.mxu0 %v1694
        %1749 = vmatprep.subr.bf16.mxu0 0
        %1750 = vmatpush1.bf16.msra.mxu0 %v1693
        %1751 = vmatprep.subr.bf16.mxu0 0
        %1752 = vmatpush1.bf16.msra.mxu0 %v1692
        %1753 = vmatprep.subr.bf16.mxu0 0
        %1754 = vmatpush1.bf16.msra.mxu0 %v1691
        %1755 = vmatprep.subr.bf16.mxu0 0
        %1756 = vmatpush2.bf16.msra.mxu0 %v1706
        %1757 = vmatprep.subr.bf16.mxu0 0
        %1758 = vmatpush2.bf16.msra.mxu0 %v1705
        %1759 = vmatprep.subr.bf16.mxu0 0
        %1760 = vmatpush2.bf16.msra.mxu0 %v1704
        %1761 = vmatprep.subr.bf16.mxu0 0
        %1762 = vmatpush2.bf16.msra.mxu0 %v1703
        %1763 = vmatprep.subr.bf16.mxu0 0
        %1764 = vmatpush2.bf16.msra.mxu0 %v1702
        %1765 = vmatprep.subr.bf16.mxu0 0
        %1766 = vmatpush2.bf16.msra.mxu0 %v1701
        %1767 = vmatprep.subr.bf16.mxu0 0
        %1768 = vmatpush2.bf16.msra.mxu0 %v1700
        %1769 = vmatprep.subr.bf16.mxu0 0
        %1770 = vmatpush2.bf16.msra.mxu0 %v1699
        %1771 = vmatprep.mubr.bf16.mxu0 %v890
        %1772 = vmatmul.mubr.bf16.gmra.mxu0 %v889
        %v1773 = vpop.f32.mrf.mxu0
        %v1774 = vadd.f32 0.0, %v1773
        %v1775 = vpop.f32.mrf.mxu0
        %v1776 = vpop.f32.mrf.mxu0
        %v1777 = vadd.f32 0.0, %v1776
        %v1778 = vpop.f32.mrf.mxu0
        %1779 = vmatprep.mubr.bf16.mxu0 %v893
        %1780 = vmatmul.mubr.bf16.gmra.mxu0 %v892
        %v1781 = vpop.f32.mrf.mxu0
        %v1782 = vadd.f32 0.0, %v1781
        %v1783 = vpop.f32.mrf.mxu0
        %v1784 = vpop.f32.mrf.mxu0
        %v1785 = vadd.f32 0.0, %v1784
        %v1786 = vpop.f32.mrf.mxu0
        %1787 = vmatprep.mubr.bf16.mxu0 %v896
        %1788 = vmatmul.mubr.bf16.gmra.mxu0 %v895
        %v1789 = vpop.f32.mrf.mxu0
        %v1790 = vadd.f32 0.0, %v1789
        %v1791 = vpop.f32.mrf.mxu0
        %v1792 = vpop.f32.mrf.mxu0
        %v1793 = vadd.f32 0.0, %v1792
        %v1794 = vpop.f32.mrf.mxu0
        %1795 = vmatprep.mubr.bf16.mxu0 %v899
        %1796 = vmatmul.mubr.bf16.gmra.mxu0 %v898
        %v1797 = vpop.f32.mrf.mxu0
        %v1798 = vadd.f32 0.0, %v1797
        %v1799 = vpop.f32.mrf.mxu0
        %v1800 = vpop.f32.mrf.mxu0
        %v1801 = vadd.f32 0.0, %v1800
        %v1802 = vpop.f32.mrf.mxu0
        %1803 = vmatprep.mubr.bf16.mxu0 %v902
        %1804 = vmatmul.mubr.bf16.gmra.mxu0 %v901
        %v1805 = vpop.f32.mrf.mxu0
        %v1806 = vadd.f32 0.0, %v1805
        %v1807 = vpop.f32.mrf.mxu0
        %v1808 = vpop.f32.mrf.mxu0
        %v1809 = vadd.f32 0.0, %v1808
        %v1810 = vpop.f32.mrf.mxu0
        %1811 = vmatprep.mubr.bf16.mxu0 %v905
        %1812 = vmatmul.mubr.bf16.gmra.mxu0 %v904
        %v1813 = vpop.f32.mrf.mxu0
        %v1814 = vadd.f32 0.0, %v1813
        %v1815 = vpop.f32.mrf.mxu0
        %v1816 = vpop.f32.mrf.mxu0
        %v1817 = vadd.f32 0.0, %v1816
        %v1818 = vpop.f32.mrf.mxu0
        %1819 = vmatprep.mubr.bf16.mxu0 %v908
        %1820 = vmatmul.mubr.bf16.gmra.mxu0 %v907
        %v1821 = vpop.f32.mrf.mxu0
        %v1822 = vadd.f32 0.0, %v1821
        %v1823 = vpop.f32.mrf.mxu0
        %v1824 = vpop.f32.mrf.mxu0
        %v1825 = vadd.f32 0.0, %v1824
        %v1826 = vpop.f32.mrf.mxu0
        %1827 = vmatprep.mubr.bf16.mxu0 %v911
        %1828 = vmatmul.mubr.bf16.gmra.mxu0 %v910
        %v1829 = vpop.f32.mrf.mxu0
        %v1830 = vadd.f32 0.0, %v1829
        %v1831 = vpop.f32.mrf.mxu0
        %v1832 = vpop.f32.mrf.mxu0
        %v1833 = vadd.f32 0.0, %v1832
        %v1834 = vpop.f32.mrf.mxu0
        %1835 = vmatprep.mubr.bf16.mxu0 %v914
        %1836 = vmatmul.mubr.bf16.gmra.mxu0 %v913
        %v1837 = vpop.f32.mrf.mxu0
        %v1838 = vadd.f32 0.0, %v1837
        %v1839 = vpop.f32.mrf.mxu0
        %v1840 = vpop.f32.mrf.mxu0
        %v1841 = vadd.f32 0.0, %v1840
        %v1842 = vpop.f32.mrf.mxu0
        %1843 = vmatprep.mubr.bf16.mxu0 %v917
        %1844 = vmatmul.mubr.bf16.gmra.mxu0 %v916
        %v1845 = vpop.f32.mrf.mxu0
        %v1846 = vadd.f32 0.0, %v1845
        %v1847 = vpop.f32.mrf.mxu0
        %v1848 = vpop.f32.mrf.mxu0
        %v1849 = vadd.f32 0.0, %v1848
        %v1850 = vpop.f32.mrf.mxu0
        %1851 = vmatprep.mubr.bf16.mxu0 %v920
        %1852 = vmatmul.mubr.bf16.gmra.mxu0 %v919
        %v1853 = vpop.f32.mrf.mxu0
        %v1854 = vadd.f32 0.0, %v1853
        %v1855 = vpop.f32.mrf.mxu0
        %v1856 = vpop.f32.mrf.mxu0
        %v1857 = vadd.f32 0.0, %v1856
        %v1858 = vpop.f32.mrf.mxu0
        %1859 = vmatprep.mubr.bf16.mxu0 %v923
        %1860 = vmatmul.mubr.bf16.gmra.mxu0 %v922
        %v1861 = vpop.f32.mrf.mxu0
        %v1862 = vadd.f32 0.0, %v1861
        %v1863 = vpop.f32.mrf.mxu0
        %v1864 = vpop.f32.mrf.mxu0
        %v1865 = vadd.f32 0.0, %v1864
        %v1866 = vpop.f32.mrf.mxu0
        %1867 = vmatprep.mubr.bf16.mxu0 %v926
        %1868 = vmatmul.mubr.bf16.gmra.mxu0 %v925
        %v1869 = vpop.f32.mrf.mxu0
        %v1870 = vadd.f32 0.0, %v1869
        %v1871 = vpop.f32.mrf.mxu0
        %v1872 = vpop.f32.mrf.mxu0
        %v1873 = vadd.f32 0.0, %v1872
        %v1874 = vpop.f32.mrf.mxu0
        %1875 = vmatprep.mubr.bf16.mxu0 %v929
        %1876 = vmatmul.mubr.bf16.gmra.mxu0 %v928
        %v1877 = vpop.f32.mrf.mxu0
        %v1878 = vadd.f32 0.0, %v1877
        %v1879 = vpop.f32.mrf.mxu0
        %v1880 = vpop.f32.mrf.mxu0
        %v1881 = vadd.f32 0.0, %v1880
        %v1882 = vpop.f32.mrf.mxu0
        %1883 = vmatprep.mubr.bf16.mxu0 %v932
        %1884 = vmatmul.mubr.bf16.gmra.mxu0 %v931
        %v1885 = vpop.f32.mrf.mxu0
        %v1886 = vadd.f32 0.0, %v1885
        %v1887 = vpop.f32.mrf.mxu0
        %v1888 = vpop.f32.mrf.mxu0
        %v1889 = vadd.f32 0.0, %v1888
        %v1890 = vpop.f32.mrf.mxu0
        %1891 = vmatprep.mubr.bf16.mxu0 %v935
        %1892 = vmatmul.mubr.bf16.gmra.mxu0 %v934
        %v1893 = vpop.f32.mrf.mxu0
        %v1894 = vadd.f32 0.0, %v1893
        %v1895 = vpop.f32.mrf.mxu0
        %v1896 = vpop.f32.mrf.mxu0
        %v1897 = vadd.f32 0.0, %v1896
        %v1898 = vpop.f32.mrf.mxu0
        %1899 = vdwg.mxu0
        %1900 = vmatprep.subr.bf16.mxu0 0
        %1901 = vmatpush1.bf16.msra.mxu0 %v1714
        %1902 = vmatprep.subr.bf16.mxu0 0
        %1903 = vmatpush1.bf16.msra.mxu0 %v1713
        %1904 = vmatprep.subr.bf16.mxu0 0
        %1905 = vmatpush1.bf16.msra.mxu0 %v1712
        %1906 = vmatprep.subr.bf16.mxu0 0
        %1907 = vmatpush1.bf16.msra.mxu0 %v1711
        %1908 = vmatprep.subr.bf16.mxu0 0
        %1909 = vmatpush1.bf16.msra.mxu0 %v1710
        %1910 = vmatprep.subr.bf16.mxu0 0
        %1911 = vmatpush1.bf16.msra.mxu0 %v1709
        %1912 = vmatprep.subr.bf16.mxu0 0
        %1913 = vmatpush1.bf16.msra.mxu0 %v1708
        %1914 = vmatprep.subr.bf16.mxu0 0
        %1915 = vmatpush1.bf16.msra.mxu0 %v1707
        %1916 = vmatprep.subr.bf16.mxu0 0
        %1917 = vmatpush2.bf16.msra.mxu0 0
        %1918 = vmatprep.subr.bf16.mxu0 0
        %1919 = vmatpush2.bf16.msra.mxu0 0
        %1920 = vmatprep.subr.bf16.mxu0 0
        %1921 = vmatpush2.bf16.msra.mxu0 0
        %1922 = vmatprep.subr.bf16.mxu0 0
        %1923 = vmatpush2.bf16.msra.mxu0 0
        %1924 = vmatprep.subr.bf16.mxu0 0
        %1925 = vmatpush2.bf16.msra.mxu0 0
        %1926 = vmatprep.subr.bf16.mxu0 0
        %1927 = vmatpush2.bf16.msra.mxu0 0
        %1928 = vmatprep.subr.bf16.mxu0 0
        %1929 = vmatpush2.bf16.msra.mxu0 0
        %1930 = vmatprep.subr.bf16.mxu0 0
        %1931 = vmatpush2.bf16.msra.mxu0 0
        %1932 = vmatprep.mubr.bf16.mxu0 0
        %1933 = vmatmul.mubr.bf16.gmra.mxu0 %v891
        %v1934 = vpop.f32.mrf.mxu0
        %v1935 = vadd.f32 %v1774, %v1934
        %v1936 = vpop.f32.mrf.mxu0
        %v1937 = vpop.f32.mrf.mxu0
        %v1938 = vadd.f32 %v1777, %v1937
        %v1939 = vpop.f32.mrf.mxu0
        %1940 = vmatprep.mubr.bf16.mxu0 0
        %1941 = vmatmul.mubr.bf16.gmra.mxu0 %v894
        %v1942 = vpop.f32.mrf.mxu0
        %v1943 = vadd.f32 %v1782, %v1942
        %v1944 = vpop.f32.mrf.mxu0
        %v1945 = vpop.f32.mrf.mxu0
        %v1946 = vadd.f32 %v1785, %v1945
        %v1947 = vpop.f32.mrf.mxu0
        %1948 = vmatprep.mubr.bf16.mxu0 0
        %1949 = vmatmul.mubr.bf16.gmra.mxu0 %v897
        %v1950 = vpop.f32.mrf.mxu0
        %v1951 = vadd.f32 %v1790, %v1950
        %v1952 = vpop.f32.mrf.mxu0
        %v1953 = vpop.f32.mrf.mxu0
        %v1954 = vadd.f32 %v1793, %v1953
        %v1955 = vpop.f32.mrf.mxu0
        %1956 = vmatprep.mubr.bf16.mxu0 0
        %1957 = vmatmul.mubr.bf16.gmra.mxu0 %v900
        %v1958 = vpop.f32.mrf.mxu0
        %v1959 = vadd.f32 %v1798, %v1958
        %v1960 = vpop.f32.mrf.mxu0
        %v1961 = vpop.f32.mrf.mxu0
        %v1962 = vadd.f32 %v1801, %v1961
        %v1963 = vpop.f32.mrf.mxu0
        %1964 = vmatprep.mubr.bf16.mxu0 0
        %1965 = vmatmul.mubr.bf16.gmra.mxu0 %v903
        %v1966 = vpop.f32.mrf.mxu0
        %v1967 = vadd.f32 %v1806, %v1966
        %v1968 = vpop.f32.mrf.mxu0
        %v1969 = vpop.f32.mrf.mxu0
        %v1970 = vadd.f32 %v1809, %v1969
        %v1971 = vpop.f32.mrf.mxu0
        %1972 = vmatprep.mubr.bf16.mxu0 0
        %1973 = vmatmul.mubr.bf16.gmra.mxu0 %v906
        %v1974 = vpop.f32.mrf.mxu0
        %v1975 = vadd.f32 %v1814, %v1974
        %v1976 = vpop.f32.mrf.mxu0
        %v1977 = vpop.f32.mrf.mxu0
        %v1978 = vadd.f32 %v1817, %v1977
        %v1979 = vpop.f32.mrf.mxu0
        %1980 = vmatprep.mubr.bf16.mxu0 0
        %1981 = vmatmul.mubr.bf16.gmra.mxu0 %v909
        %v1982 = vpop.f32.mrf.mxu0
        %v1983 = vadd.f32 %v1822, %v1982
        %v1984 = vpop.f32.mrf.mxu0
        %v1985 = vpop.f32.mrf.mxu0
        %v1986 = vadd.f32 %v1825, %v1985
        %v1987 = vpop.f32.mrf.mxu0
        %1988 = vmatprep.mubr.bf16.mxu0 0
        %1989 = vmatmul.mubr.bf16.gmra.mxu0 %v912
        %v1990 = vpop.f32.mrf.mxu0
        %v1991 = vadd.f32 %v1830, %v1990
        %v1992 = vpop.f32.mrf.mxu0
        %v1993 = vpop.f32.mrf.mxu0
        %v1994 = vadd.f32 %v1833, %v1993
        %v1995 = vpop.f32.mrf.mxu0
        %1996 = vmatprep.mubr.bf16.mxu0 0
        %1997 = vmatmul.mubr.bf16.gmra.mxu0 %v915
        %v1998 = vpop.f32.mrf.mxu0
        %v1999 = vadd.f32 %v1838, %v1998
        %v2000 = vpop.f32.mrf.mxu0
        %v2001 = vpop.f32.mrf.mxu0
        %v2002 = vadd.f32 %v1841, %v2001
        %v2003 = vpop.f32.mrf.mxu0
        %2004 = vmatprep.mubr.bf16.mxu0 0
        %2005 = vmatmul.mubr.bf16.gmra.mxu0 %v918
        %v2006 = vpop.f32.mrf.mxu0
        %v2007 = vadd.f32 %v1846, %v2006
        %v2008 = vpop.f32.mrf.mxu0
        %v2009 = vpop.f32.mrf.mxu0
        %v2010 = vadd.f32 %v1849, %v2009
        %v2011 = vpop.f32.mrf.mxu0
        %2012 = vmatprep.mubr.bf16.mxu0 0
        %2013 = vmatmul.mubr.bf16.gmra.mxu0 %v921
        %v2014 = vpop.f32.mrf.mxu0
        %v2015 = vadd.f32 %v1854, %v2014
        %v2016 = vpop.f32.mrf.mxu0
        %v2017 = vpop.f32.mrf.mxu0
        %v2018 = vadd.f32 %v1857, %v2017
        %v2019 = vpop.f32.mrf.mxu0
        %2020 = vmatprep.mubr.bf16.mxu0 0
        %2021 = vmatmul.mubr.bf16.gmra.mxu0 %v924
        %v2022 = vpop.f32.mrf.mxu0
        %v2023 = vadd.f32 %v1862, %v2022
        %v2024 = vpop.f32.mrf.mxu0
        %v2025 = vpop.f32.mrf.mxu0
        %v2026 = vadd.f32 %v1865, %v2025
        %v2027 = vpop.f32.mrf.mxu0
        %2028 = vmatprep.mubr.bf16.mxu0 0
        %2029 = vmatmul.mubr.bf16.gmra.mxu0 %v927
        %v2030 = vpop.f32.mrf.mxu0
        %v2031 = vadd.f32 %v1870, %v2030
        %v2032 = vpop.f32.mrf.mxu0
        %v2033 = vpop.f32.mrf.mxu0
        %v2034 = vadd.f32 %v1873, %v2033
        %v2035 = vpop.f32.mrf.mxu0
        %2036 = vmatprep.mubr.bf16.mxu0 0
        %2037 = vmatmul.mubr.bf16.gmra.mxu0 %v930
        %v2038 = vpop.f32.mrf.mxu0
        %v2039 = vadd.f32 %v1878, %v2038
        %v2040 = vpop.f32.mrf.mxu0
        %v2041 = vpop.f32.mrf.mxu0
        %v2042 = vadd.f32 %v1881, %v2041
        %v2043 = vpop.f32.mrf.mxu0
        %2044 = vmatprep.mubr.bf16.mxu0 0
        %2045 = vmatmul.mubr.bf16.gmra.mxu0 %v933
        %v2046 = vpop.f32.mrf.mxu0
        %v2047 = vadd.f32 %v1886, %v2046
        %v2048 = vpop.f32.mrf.mxu0
        %v2049 = vpop.f32.mrf.mxu0
        %v2050 = vadd.f32 %v1889, %v2049
        %v2051 = vpop.f32.mrf.mxu0
        %2052 = vmatprep.mubr.bf16.mxu0 0
        %2053 = vmatmul.mubr.bf16.gmra.mxu0 %v936
        %v2054 = vpop.f32.mrf.mxu0
        %v2055 = vadd.f32 %v1894, %v2054
        %v2056 = vpop.f32.mrf.mxu0
        %v2057 = vpop.f32.mrf.mxu0
        %v2058 = vadd.f32 %v1897, %v2057
        %v2059 = vpop.f32.mrf.mxu0
        %2060 = vdwg.mxu0
        %v2061 = vadd.f32 %v1515, %v1935
        %v2062 = vadd.f32 %v1516, %v1938
        %v2063 = vadd.f32 %v1517, %v1943
        %v2064 = vadd.f32 %v1518, %v1946
        %v2065 = vadd.f32 %v1519, %v1951
        %v2066 = vadd.f32 %v1520, %v1954
        %v2067 = vadd.f32 %v1521, %v1959
        %v2068 = vadd.f32 %v1522, %v1962
        %v2069 = vadd.f32 %v1523, %v1967
        %v2070 = vadd.f32 %v1524, %v1970
        %v2071 = vadd.f32 %v1525, %v1975
        %v2072 = vadd.f32 %v1526, %v1978
        %v2073 = vadd.f32 %v1527, %v1983
        %v2074 = vadd.f32 %v1528, %v1986
        %v2075 = vadd.f32 %v1529, %v1991
        %v2076 = vadd.f32 %v1530, %v1994
        %v2077 = vadd.f32 %v1531, %v1999
        %v2078 = vadd.f32 %v1532, %v2002
        %v2079 = vadd.f32 %v1533, %v2007
        %v2080 = vadd.f32 %v1534, %v2010
        %v2081 = vadd.f32 %v1535, %v2015
        %v2082 = vadd.f32 %v1536, %v2018
        %v2083 = vadd.f32 %v1537, %v2023
        %v2084 = vadd.f32 %v1538, %v2026
        %v2085 = vadd.f32 %v1539, %v2031
        %v2086 = vadd.f32 %v1540, %v2034
        %v2087 = vadd.f32 %v1541, %v2039
        %v2088 = vadd.f32 %v1542, %v2042
        %v2089 = vadd.f32 %v1543, %v2047
        %v2090 = vadd.f32 %v1544, %v2050
        %v2091 = vadd.f32 %v1545, %v2055
        %v2092 = vadd.f32 %v1546, %v2058
        %2093 = vst [vmem:[#allocation3] sm:$0xff] %v2061
        %2094 = vst [vmem:[#allocation3 + $0x8] sm:$0xff] %v2062
        %2095 = vst [vmem:[#allocation3 + $0x10] sm:$0xff] %v2063
        %2096 = vst [vmem:[#allocation3 + $0x18] sm:$0xff] %v2064
        %2097 = vst [vmem:[#allocation3 + $0x20] sm:$0xff] %v2065
        %2098 = vst [vmem:[#allocation3 + $0x28] sm:$0xff] %v2066
        %2099 = vst [vmem:[#allocation3 + $0x30] sm:$0xff] %v2067
        %2100 = vst [vmem:[#allocation3 + $0x38] sm:$0xff] %v2068
        %2101 = vst [vmem:[#allocation3 + $0x40] sm:$0xff] %v2069
        %2102 = vst [vmem:[#allocation3 + $0x48] sm:$0xff] %v2070
        %2103 = vst [vmem:[#allocation3 + $0x50] sm:$0xff] %v2071
        %2104 = vst [vmem:[#allocation3 + $0x58] sm:$0xff] %v2072
        %2105 = vst [vmem:[#allocation3 + $0x60] sm:$0xff] %v2073
        %2106 = vst [vmem:[#allocation3 + $0x68] sm:$0xff] %v2074
        %2107 = vst [vmem:[#allocation3 + $0x70] sm:$0xff] %v2075
        %2108 = vst [vmem:[#allocation3 + $0x78] sm:$0xff] %v2076
        %2109 = vst [vmem:[#allocation3 + $0x80] sm:$0xff] %v2077
        %2110 = vst [vmem:[#allocation3 + $0x88] sm:$0xff] %v2078
        %2111 = vst [vmem:[#allocation3 + $0x90] sm:$0xff] %v2079
        %2112 = vst [vmem:[#allocation3 + $0x98] sm:$0xff] %v2080
        %2113 = vst [vmem:[#allocation3 + $0xa0] sm:$0xff] %v2081
        %2114 = vst [vmem:[#allocation3 + $0xa8] sm:$0xff] %v2082
        %2115 = vst [vmem:[#allocation3 + $0xb0] sm:$0xff] %v2083
        %2116 = vst [vmem:[#allocation3 + $0xb8] sm:$0xff] %v2084
        %2117 = vst [vmem:[#allocation3 + $0xc0] sm:$0xff] %v2085
        %2118 = vst [vmem:[#allocation3 + $0xc8] sm:$0xff] %v2086
        %2119 = vst [vmem:[#allocation3 + $0xd0] sm:$0xff] %v2087
        %2120 = vst [vmem:[#allocation3 + $0xd8] sm:$0xff] %v2088
        %2121 = vst [vmem:[#allocation3 + $0xe0] sm:$0xff] %v2089
        %2122 = vst [vmem:[#allocation3 + $0xe8] sm:$0xff] %v2090
        %2123 = vst [vmem:[#allocation3 + $0xf0] sm:$0xff] %v2091
        %2124 = vst [vmem:[#allocation3 + $0xf8] sm:$0xff] %v2092
        // Predicated region
        $region57: #{_lambda_.3} parent=51 // pred_check
          %p2125 = pneg %p503
        $region58: #{_lambda_.3} parent=51 // pred_check_branch
          %2127 = sbr.rel (%p2125) target = $region60
        $region59: #{_lambda_.3} parent=51 // pred_region
          %v2128 = vld [vmem:[%s493] sm:$0xff]
          %v2129 = vld [vmem:[%s493 + $0x8] sm:$0xff]
          %v2130 = vld [vmem:[%s493 + $0x10] sm:$0xff]
          %v2131 = vld [vmem:[%s493 + $0x18] sm:$0xff]
          %v2132 = vld [vmem:[%s493 + $0x20] sm:$0xff]
          %v2133 = vld [vmem:[%s493 + $0x28] sm:$0xff]
          %v2134 = vld [vmem:[%s493 + $0x30] sm:$0xff]
          %v2135 = vld [vmem:[%s493 + $0x38] sm:$0xff]
          %v2136 = vld [vmem:[%s493 + $0x40] sm:$0xff]
          %v2137 = vld [vmem:[%s493 + $0x48] sm:$0xff]
          %v2138 = vld [vmem:[%s493 + $0x50] sm:$0xff]
          %v2139 = vld [vmem:[%s493 + $0x58] sm:$0xff]
          %v2140 = vld [vmem:[%s493 + $0x60] sm:$0xff]
          %v2141 = vld [vmem:[%s493 + $0x68] sm:$0xff]
          %v2142 = vld [vmem:[%s493 + $0x70] sm:$0xff]
          %v2143 = vld [vmem:[%s493 + $0x78] sm:$0xff]
          %v2144 = vld [vmem:[%s493 + $0x80] sm:$0xff]
          %v2145 = vld [vmem:[%s493 + $0x88] sm:$0xff]
          %v2146 = vld [vmem:[%s493 + $0x90] sm:$0xff]
          %v2147 = vld [vmem:[%s493 + $0x98] sm:$0xff]
          %v2148 = vld [vmem:[%s493 + $0xa0] sm:$0xff]
          %v2149 = vld [vmem:[%s493 + $0xa8] sm:$0xff]
          %v2150 = vld [vmem:[%s493 + $0xb0] sm:$0xff]
          %v2151 = vld [vmem:[%s493 + $0xb8] sm:$0xff]
          %v2152 = vld [vmem:[%s493 + $0xc0] sm:$0xff]
          %v2153 = vld [vmem:[%s493 + $0xc8] sm:$0xff]
          %v2154 = vld [vmem:[%s493 + $0xd0] sm:$0xff]
          %v2155 = vld [vmem:[%s493 + $0xd8] sm:$0xff]
          %v2156 = vld [vmem:[%s493 + $0xe0] sm:$0xff]
          %v2157 = vld [vmem:[%s493 + $0xe8] sm:$0xff]
          %v2158 = vld [vmem:[%s493 + $0xf0] sm:$0xff]
          %v2159 = vld [vmem:[%s493 + $0xf8] sm:$0xff]
          %v2160 = vld [vmem:[%s497] sm:$0x1]
          %v2162 = vlaneseq
          %v2163 = vshrl.u32 %v2162, 7
          %v2164 = vsub.s32 0, %v2163
          %v2165 = vrot.slane %v2160, %v2164
          %v2167 = vmul.f32 %v2128, %v2165
          %v2168 = vmul.f32 %v2129, %v2165
          %v2169 = vmul.f32 %v2130, %v2165
          %v2170 = vmul.f32 %v2131, %v2165
          %v2171 = vmul.f32 %v2132, %v2165
          %v2172 = vmul.f32 %v2133, %v2165
          %v2173 = vmul.f32 %v2134, %v2165
          %v2174 = vmul.f32 %v2135, %v2165
          %v2175 = vmul.f32 %v2136, %v2165
          %v2176 = vmul.f32 %v2137, %v2165
          %v2177 = vmul.f32 %v2138, %v2165
          %v2178 = vmul.f32 %v2139, %v2165
          %v2179 = vmul.f32 %v2140, %v2165
          %v2180 = vmul.f32 %v2141, %v2165
          %v2181 = vmul.f32 %v2142, %v2165
          %v2182 = vmul.f32 %v2143, %v2165
          %v2183 = vmul.f32 %v2144, %v2165
          %v2184 = vmul.f32 %v2145, %v2165
          %v2185 = vmul.f32 %v2146, %v2165
          %v2186 = vmul.f32 %v2147, %v2165
          %v2187 = vmul.f32 %v2148, %v2165
          %v2188 = vmul.f32 %v2149, %v2165
          %v2189 = vmul.f32 %v2150, %v2165
          %v2190 = vmul.f32 %v2151, %v2165
          %v2191 = vmul.f32 %v2152, %v2165
          %v2192 = vmul.f32 %v2153, %v2165
          %v2193 = vmul.f32 %v2154, %v2165
          %v2194 = vmul.f32 %v2155, %v2165
          %v2195 = vmul.f32 %v2156, %v2165
          %v2196 = vmul.f32 %v2157, %v2165
          %v2197 = vmul.f32 %v2158, %v2165
          %v2198 = vmul.f32 %v2159, %v2165
          %v2199 = vld [vmem:[%s500] sm:$0x1]
          %v2201 = vlaneseq
          %v2202 = vshrl.u32 %v2201, 7
          %v2203 = vsub.s32 0, %v2202
          %v2204 = vrot.slane %v2199, %v2203
          %v2206 = vadd.f32 %v2167, %v2204
          %v2207 = vadd.f32 %v2168, %v2204
          %v2208 = vadd.f32 %v2169, %v2204
          %v2209 = vadd.f32 %v2170, %v2204
          %v2210 = vadd.f32 %v2171, %v2204
          %v2211 = vadd.f32 %v2172, %v2204
          %v2212 = vadd.f32 %v2173, %v2204
          %v2213 = vadd.f32 %v2174, %v2204
          %v2214 = vadd.f32 %v2175, %v2204
          %v2215 = vadd.f32 %v2176, %v2204
          %v2216 = vadd.f32 %v2177, %v2204
          %v2217 = vadd.f32 %v2178, %v2204
          %v2218 = vadd.f32 %v2179, %v2204
          %v2219 = vadd.f32 %v2180, %v2204
          %v2220 = vadd.f32 %v2181, %v2204
          %v2221 = vadd.f32 %v2182, %v2204
          %v2222 = vadd.f32 %v2183, %v2204
          %v2223 = vadd.f32 %v2184, %v2204
          %v2224 = vadd.f32 %v2185, %v2204
          %v2225 = vadd.f32 %v2186, %v2204
          %v2226 = vadd.f32 %v2187, %v2204
          %v2227 = vadd.f32 %v2188, %v2204
          %v2228 = vadd.f32 %v2189, %v2204
          %v2229 = vadd.f32 %v2190, %v2204
          %v2230 = vadd.f32 %v2191, %v2204
          %v2231 = vadd.f32 %v2192, %v2204
          %v2232 = vadd.f32 %v2193, %v2204
          %v2233 = vadd.f32 %v2194, %v2204
          %v2234 = vadd.f32 %v2195, %v2204
          %v2235 = vadd.f32 %v2196, %v2204
          %v2236 = vadd.f32 %v2197, %v2204
          %v2237 = vadd.f32 %v2198, %v2204
          %v2238 = vld [vmem:[#allocation2] sm:$0xff]
          %v2239 = vld [vmem:[#allocation2 + $0x8] sm:$0xff]
          %v2240 = vld [vmem:[#allocation2 + $0x10] sm:$0xff]
          %v2241 = vld [vmem:[#allocation2 + $0x18] sm:$0xff]
          %v2242 = vld [vmem:[#allocation2 + $0x20] sm:$0xff]
          %v2243 = vld [vmem:[#allocation2 + $0x28] sm:$0xff]
          %v2244 = vld [vmem:[#allocation2 + $0x30] sm:$0xff]
          %v2245 = vld [vmem:[#allocation2 + $0x38] sm:$0xff]
          %v2246 = vld [vmem:[#allocation2 + $0x40] sm:$0xff]
          %v2247 = vld [vmem:[#allocation2 + $0x48] sm:$0xff]
          %v2248 = vld [vmem:[#allocation2 + $0x50] sm:$0xff]
          %v2249 = vld [vmem:[#allocation2 + $0x58] sm:$0xff]
          %v2250 = vld [vmem:[#allocation2 + $0x60] sm:$0xff]
          %v2251 = vld [vmem:[#allocation2 + $0x68] sm:$0xff]
          %v2252 = vld [vmem:[#allocation2 + $0x70] sm:$0xff]
          %v2253 = vld [vmem:[#allocation2 + $0x78] sm:$0xff]
          %v2254 = vld [vmem:[#allocation2 + $0x80] sm:$0xff]
          %v2255 = vld [vmem:[#allocation2 + $0x88] sm:$0xff]
          %v2256 = vld [vmem:[#allocation2 + $0x90] sm:$0xff]
          %v2257 = vld [vmem:[#allocation2 + $0x98] sm:$0xff]
          %v2258 = vld [vmem:[#allocation2 + $0xa0] sm:$0xff]
          %v2259 = vld [vmem:[#allocation2 + $0xa8] sm:$0xff]
          %v2260 = vld [vmem:[#allocation2 + $0xb0] sm:$0xff]
          %v2261 = vld [vmem:[#allocation2 + $0xb8] sm:$0xff]
          %v2262 = vld [vmem:[#allocation2 + $0xc0] sm:$0xff]
          %v2263 = vld [vmem:[#allocation2 + $0xc8] sm:$0xff]
          %v2264 = vld [vmem:[#allocation2 + $0xd0] sm:$0xff]
          %v2265 = vld [vmem:[#allocation2 + $0xd8] sm:$0xff]
          %v2266 = vld [vmem:[#allocation2 + $0xe0] sm:$0xff]
          %v2267 = vld [vmem:[#allocation2 + $0xe8] sm:$0xff]
          %v2268 = vld [vmem:[#allocation2 + $0xf0] sm:$0xff]
          %v2269 = vld [vmem:[#allocation2 + $0xf8] sm:$0xff]
          %v2270 = vadd.f32 %v2238, 1.0
          %v2271 = vadd.f32 %v2239, 1.0
          %v2272 = vadd.f32 %v2240, 1.0
          %v2273 = vadd.f32 %v2241, 1.0
          %v2274 = vadd.f32 %v2242, 1.0
          %v2275 = vadd.f32 %v2243, 1.0
          %v2276 = vadd.f32 %v2244, 1.0
          %v2277 = vadd.f32 %v2245, 1.0
          %v2278 = vadd.f32 %v2246, 1.0
          %v2279 = vadd.f32 %v2247, 1.0
          %v2280 = vadd.f32 %v2248, 1.0
          %v2281 = vadd.f32 %v2249, 1.0
          %v2282 = vadd.f32 %v2250, 1.0
          %v2283 = vadd.f32 %v2251, 1.0
          %v2284 = vadd.f32 %v2252, 1.0
          %v2285 = vadd.f32 %v2253, 1.0
          %v2286 = vadd.f32 %v2254, 1.0
          %v2287 = vadd.f32 %v2255, 1.0
          %v2288 = vadd.f32 %v2256, 1.0
          %v2289 = vadd.f32 %v2257, 1.0
          %v2290 = vadd.f32 %v2258, 1.0
          %v2291 = vadd.f32 %v2259, 1.0
          %v2292 = vadd.f32 %v2260, 1.0
          %v2293 = vadd.f32 %v2261, 1.0
          %v2294 = vadd.f32 %v2262, 1.0
          %v2295 = vadd.f32 %v2263, 1.0
          %v2296 = vadd.f32 %v2264, 1.0
          %v2297 = vadd.f32 %v2265, 1.0
          %v2298 = vadd.f32 %v2266, 1.0
          %v2299 = vadd.f32 %v2267, 1.0
          %v2300 = vadd.f32 %v2268, 1.0
          %v2301 = vadd.f32 %v2269, 1.0
          %v2302 = vmul.f32 %v2206, %v2270
          %v2303 = vmul.f32 %v2207, %v2271
          %v2304 = vmul.f32 %v2208, %v2272
          %v2305 = vmul.f32 %v2209, %v2273
          %v2306 = vmul.f32 %v2210, %v2274
          %v2307 = vmul.f32 %v2211, %v2275
          %v2308 = vmul.f32 %v2212, %v2276
          %v2309 = vmul.f32 %v2213, %v2277
          %v2310 = vmul.f32 %v2214, %v2278
          %v2311 = vmul.f32 %v2215, %v2279
          %v2312 = vmul.f32 %v2216, %v2280
          %v2313 = vmul.f32 %v2217, %v2281
          %v2314 = vmul.f32 %v2218, %v2282
          %v2315 = vmul.f32 %v2219, %v2283
          %v2316 = vmul.f32 %v2220, %v2284
          %v2317 = vmul.f32 %v2221, %v2285
          %v2318 = vmul.f32 %v2222, %v2286
          %v2319 = vmul.f32 %v2223, %v2287
          %v2320 = vmul.f32 %v2224, %v2288
          %v2321 = vmul.f32 %v2225, %v2289
          %v2322 = vmul.f32 %v2226, %v2290
          %v2323 = vmul.f32 %v2227, %v2291
          %v2324 = vmul.f32 %v2228, %v2292
          %v2325 = vmul.f32 %v2229, %v2293
          %v2326 = vmul.f32 %v2230, %v2294
          %v2327 = vmul.f32 %v2231, %v2295
          %v2328 = vmul.f32 %v2232, %v2296
          %v2329 = vmul.f32 %v2233, %v2297
          %v2330 = vmul.f32 %v2234, %v2298
          %v2331 = vmul.f32 %v2235, %v2299
          %v2332 = vmul.f32 %v2236, %v2300
          %v2333 = vmul.f32 %v2237, %v2301
          %v2334 = vld [vmem:[#allocation3] sm:$0xff]
          %v2335 = vld [vmem:[#allocation3 + $0x8] sm:$0xff]
          %v2336 = vld [vmem:[#allocation3 + $0x10] sm:$0xff]
          %v2337 = vld [vmem:[#allocation3 + $0x18] sm:$0xff]
          %v2338 = vld [vmem:[#allocation3 + $0x20] sm:$0xff]
          %v2339 = vld [vmem:[#allocation3 + $0x28] sm:$0xff]
          %v2340 = vld [vmem:[#allocation3 + $0x30] sm:$0xff]
          %v2341 = vld [vmem:[#allocation3 + $0x38] sm:$0xff]
          %v2342 = vld [vmem:[#allocation3 + $0x40] sm:$0xff]
          %v2343 = vld [vmem:[#allocation3 + $0x48] sm:$0xff]
          %v2344 = vld [vmem:[#allocation3 + $0x50] sm:$0xff]
          %v2345 = vld [vmem:[#allocation3 + $0x58] sm:$0xff]
          %v2346 = vld [vmem:[#allocation3 + $0x60] sm:$0xff]
          %v2347 = vld [vmem:[#allocation3 + $0x68] sm:$0xff]
          %v2348 = vld [vmem:[#allocation3 + $0x70] sm:$0xff]
          %v2349 = vld [vmem:[#allocation3 + $0x78] sm:$0xff]
          %v2350 = vld [vmem:[#allocation3 + $0x80] sm:$0xff]
          %v2351 = vld [vmem:[#allocation3 + $0x88] sm:$0xff]
          %v2352 = vld [vmem:[#allocation3 + $0x90] sm:$0xff]
          %v2353 = vld [vmem:[#allocation3 + $0x98] sm:$0xff]
          %v2354 = vld [vmem:[#allocation3 + $0xa0] sm:$0xff]
          %v2355 = vld [vmem:[#allocation3 + $0xa8] sm:$0xff]
          %v2356 = vld [vmem:[#allocation3 + $0xb0] sm:$0xff]
          %v2357 = vld [vmem:[#allocation3 + $0xb8] sm:$0xff]
          %v2358 = vld [vmem:[#allocation3 + $0xc0] sm:$0xff]
          %v2359 = vld [vmem:[#allocation3 + $0xc8] sm:$0xff]
          %v2360 = vld [vmem:[#allocation3 + $0xd0] sm:$0xff]
          %v2361 = vld [vmem:[#allocation3 + $0xd8] sm:$0xff]
          %v2362 = vld [vmem:[#allocation3 + $0xe0] sm:$0xff]
          %v2363 = vld [vmem:[#allocation3 + $0xe8] sm:$0xff]
          %v2364 = vld [vmem:[#allocation3 + $0xf0] sm:$0xff]
          %v2365 = vld [vmem:[#allocation3 + $0xf8] sm:$0xff]
          %v2366 = vadd.f32 %v2302, %v2334
          %v2367 = vadd.f32 %v2303, %v2335
          %v2368 = vadd.f32 %v2304, %v2336
          %v2369 = vadd.f32 %v2305, %v2337
          %v2370 = vadd.f32 %v2306, %v2338
          %v2371 = vadd.f32 %v2307, %v2339
          %v2372 = vadd.f32 %v2308, %v2340
          %v2373 = vadd.f32 %v2309, %v2341
          %v2374 = vadd.f32 %v2310, %v2342
          %v2375 = vadd.f32 %v2311, %v2343
          %v2376 = vadd.f32 %v2312, %v2344
          %v2377 = vadd.f32 %v2313, %v2345
          %v2378 = vadd.f32 %v2314, %v2346
          %v2379 = vadd.f32 %v2315, %v2347
          %v2380 = vadd.f32 %v2316, %v2348
          %v2381 = vadd.f32 %v2317, %v2349
          %v2382 = vadd.f32 %v2318, %v2350
          %v2383 = vadd.f32 %v2319, %v2351
          %v2384 = vadd.f32 %v2320, %v2352
          %v2385 = vadd.f32 %v2321, %v2353
          %v2386 = vadd.f32 %v2322, %v2354
          %v2387 = vadd.f32 %v2323, %v2355
          %v2388 = vadd.f32 %v2324, %v2356
          %v2389 = vadd.f32 %v2325, %v2357
          %v2390 = vadd.f32 %v2326, %v2358
          %v2391 = vadd.f32 %v2327, %v2359
          %v2392 = vadd.f32 %v2328, %v2360
          %v2393 = vadd.f32 %v2329, %v2361
          %v2394 = vadd.f32 %v2330, %v2362
          %v2395 = vadd.f32 %v2331, %v2363
          %v2396 = vadd.f32 %v2332, %v2364
          %v2397 = vadd.f32 %v2333, %v2365
          %2398 = vst [vmem:[%s449] sm:$0xff] %v2366
          %2399 = vst [vmem:[%s449 + $0x8] sm:$0xff] %v2367
          %2400 = vst [vmem:[%s449 + $0x10] sm:$0xff] %v2368
          %2401 = vst [vmem:[%s449 + $0x18] sm:$0xff] %v2369
          %2402 = vst [vmem:[%s449 + $0x20] sm:$0xff] %v2370
          %2403 = vst [vmem:[%s449 + $0x28] sm:$0xff] %v2371
          %2404 = vst [vmem:[%s449 + $0x30] sm:$0xff] %v2372
          %2405 = vst [vmem:[%s449 + $0x38] sm:$0xff] %v2373
          %2406 = vst [vmem:[%s449 + $0x40] sm:$0xff] %v2374
          %2407 = vst [vmem:[%s449 + $0x48] sm:$0xff] %v2375
          %2408 = vst [vmem:[%s449 + $0x50] sm:$0xff] %v2376
          %2409 = vst [vmem:[%s449 + $0x58] sm:$0xff] %v2377
          %2410 = vst [vmem:[%s449 + $0x60] sm:$0xff] %v2378
          %2411 = vst [vmem:[%s449 + $0x68] sm:$0xff] %v2379
          %2412 = vst [vmem:[%s449 + $0x70] sm:$0xff] %v2380
          %2413 = vst [vmem:[%s449 + $0x78] sm:$0xff] %v2381
          %2414 = vst [vmem:[%s449 + $0x80] sm:$0xff] %v2382
          %2415 = vst [vmem:[%s449 + $0x88] sm:$0xff] %v2383
          %2416 = vst [vmem:[%s449 + $0x90] sm:$0xff] %v2384
          %2417 = vst [vmem:[%s449 + $0x98] sm:$0xff] %v2385
          %2418 = vst [vmem:[%s449 + $0xa0] sm:$0xff] %v2386
          %2419 = vst [vmem:[%s449 + $0xa8] sm:$0xff] %v2387
          %2420 = vst [vmem:[%s449 + $0xb0] sm:$0xff] %v2388
          %2421 = vst [vmem:[%s449 + $0xb8] sm:$0xff] %v2389
          %2422 = vst [vmem:[%s449 + $0xc0] sm:$0xff] %v2390
          %2423 = vst [vmem:[%s449 + $0xc8] sm:$0xff] %v2391
          %2424 = vst [vmem:[%s449 + $0xd0] sm:$0xff] %v2392
          %2425 = vst [vmem:[%s449 + $0xd8] sm:$0xff] %v2393
          %2426 = vst [vmem:[%s449 + $0xe0] sm:$0xff] %v2394
          %2427 = vst [vmem:[%s449 + $0xe8] sm:$0xff] %v2395
          %2428 = vst [vmem:[%s449 + $0xf0] sm:$0xff] %v2396
          %2429 = vst [vmem:[%s449 + $0xf8] sm:$0xff] %v2397
        $region60: #{_lambda_.3} parent=51 // pred_fallthru
          _
        %s2430 = sand.u32 %s267, 1
        %s2431 = scalar_lea.sflag [#allocation5], %s2430
        %s2432 = sand.u32 %s267, 1
        %s2433 = smul.addr %s2432, 256
        %s2434 = scalar_lea.vmem [#allocation4], %s2433
        // Predicated region
        $region61: #{_lambda_.3} parent=51 // pred_check
          %p2435 = pneg %p277
        $region62: #{_lambda_.3} parent=51 // pred_check_branch
          %2437 = sbr.rel (%p2435) target = $region64
        $region63: #{_lambda_.3} parent=51 // pred_region
          %s2438 = smul.u32 32, %s27
          %s2440 = ssub.s32 4096, 4096
          %2441 = vsyncadd %s2431, %s2440
          %s2442 = sadd.s32 %s28, %s2438
          %s2443 = smul.addr %s2442, 128
          %s2444 = scalar_lea.hbm %s8, %s2443
          %s2445 = sshll.u32 %s2434, 4
          %s2446 = int_to_ptr.vmem [resolvable:$true] %s2445
          %2451 = dma.vmem_to_hbm [thread:$0]  %s2446, 4096, %s2444, %s2431, 128, 128, 8
        $region64: #{_lambda_.3} parent=51 // pred_fallthru
          _
      $region52: #{_lambda_.3} parent=5 // pred_fallthru
        _
      %p2452 = scmp.le.s32.totalorder 2, %s17
      // Predicated region
      $region65: #{_lambda_.3} parent=5 // pred_check
        %p2453 = pneg %p2452
      $region66: #{_lambda_.3} parent=5 // pred_check_branch
        %2455 = sbr.rel (%p2453) target = $region68
      $region67: #{_lambda_.3} parent=5 // pred_region
        %s2456 = ssub.s32 %s17, 2
        // Predicated region
        $region69: #{_lambda_.3} parent=67 // pred_check
          %p2457 = pneg %p283
        $region70: #{_lambda_.3} parent=67 // pred_check_branch
          %2459 = sbr.rel (%p2457) target = $region72
        $region71: #{_lambda_.3} parent=67 // pred_region
          %s2460 = sand.u32 %s268, 1
          %s2461 = scalar_lea.sflag [#allocation5], %s2460
          %s2462 = sand.u32 %s268, 1
          %s2463 = smul.addr %s2462, 256
          %s2464 = scalar_lea.vmem [#allocation4], %s2463
          %2465 = dma.done %s2461, 4096
        $region72: #{_lambda_.3} parent=67 // pred_fallthru
          _
      $region68: #{_lambda_.3} parent=5 // pred_fallthru
        _
    $region6: #{_lambda_.3} parent=1 // loop_footer
      %s21 = sadd.s32 1, %s17
    $region7: #{_lambda_.3} parent=1 // loop_footer_branch
      %16 = sbr.rel target = $region3
    $region8: #{_lambda_.3} parent=1 // loop_exit
      _
    %2466 = vsyncpa [#allocation5], 1
    %s2467 = scalar_lea.sflag [#allocation5], 1
    %2468 = vsyncpa %s2467, 1

</llo_original>
